<compile_context>
chip_gen: v6e
topology: v6e:2x2x1
jax: 0.10.0
libtpu: 0.0.40
codegen_flags: <defaults>
</compile_context>

<pallas_src>
import jax
import jax.numpy as jnp
from jax import lax
from jax.experimental import pallas as pl
from jax.experimental.pallas import tpu as pltpu  # imported for completeness; no grid/scratch needed here

NUM_LABELS = 2
BN_EPS = 1e-5


# ----------------------------------------------------------------------------
# Pallas kernels
# ----------------------------------------------------------------------------
def _conv_block_kernel(patches_ref, w_ref, scale_ref, bias_ref, out_ref):
    """Fused 3x3 conv (im2col matmul, batch folded into M) + BatchNorm(eval)
    + 2x2 MaxPool (elementwise max over 4 pre-grouped pool positions) + ReLU.

    patches_ref: (4, M, K) bf16   M = N*(H//2)*(W//2), K = 9*Cin
    w_ref:       (K, Cout) bf16   flattened HWIO conv weight
    scale_ref:   (1, Cout) f32    gamma / sqrt(var + eps)
    bias_ref:    (1, Cout) f32    beta - mean * scale
    out_ref:     (M, Cout) f32    pooled activations
    """
    w = w_ref[...]
    m, cout = out_ref.shape
    # Hoist broadcasts out of the unrolled loop (JAX does not CSE broadcasts).
    scale = jnp.broadcast_to(scale_ref[...], (m, cout))
    bias = jnp.broadcast_to(bias_ref[...], (m, cout))
    acc = None
    for p in range(4):  # static unroll over the 4 pool-window positions
        y = jnp.dot(patches_ref[p], w, preferred_element_type=jnp.float32)
        a = y * scale + bias                        # BatchNorm (eval) affine
        acc = a if acc is None else jnp.maximum(acc, a)  # MaxPool 2x2
    out_ref[...] = jnp.maximum(acc, 0.0).astype(out_ref.dtype)  # ReLU after max


def _conv_block_head_kernel(patches_ref, w_ref, scale_ref, bias_ref,
                            w1_ref, b1_ref, w2_ref, b2_ref, out_ref):
    """Layer-4 conv block fused with AdaptiveAvgPool(1) (identity at 1x1
    spatial) and the MLP head: Linear(256,128) -> ReLU -> Dropout(eval=id)
    -> Linear(128, NUM_LABELS)."""
    w = w_ref[...]
    acc = None
    for p in range(4):
        y = jnp.dot(patches_ref[p], w, preferred_element_type=jnp.float32)
        a = y * scale_ref[...] + bias_ref[...]
        acc = a if acc is None else jnp.maximum(acc, a)
    feat = jnp.maximum(acc, 0.0)                    # (N, 256) pooled features
    h = jnp.dot(feat.astype(jnp.bfloat16), w1_ref[...],
                preferred_element_type=jnp.float32) + b1_ref[...]
    h = jnp.maximum(h, 0.0)
    # TODO(synk): Dropout(0.5) is the identity in eval mode; training-mode RNG
    # dropout is not implemented here.
    o = jnp.dot(h.astype(jnp.bfloat16), w2_ref[...],
                preferred_element_type=jnp.float32) + b2_ref[...]
    out_ref[...] = o.astype(out_ref.dtype)


# ----------------------------------------------------------------------------
# Glue + wrappers
# ----------------------------------------------------------------------------
def _pooled_im2col(x_nhwc):
    """x (N,H,W,Cin) -> bf16 patches (4, N*(H//2)*(W//2), 9*Cin), grouped by
    2x2 pool-window position so the in-kernel maxpool is a pure elementwise
    max.  Uses stride-2 slices + stack (no 6-D transpose)."""
    N, H, W, Cin = x_nhwc.shape
    Hp, Wp = H // 2, W // 2
    K = 9 * Cin
    xp = jnp.pad(x_nhwc, ((0, 0), (1, 1), (1, 1), (0, 0)))
    taps = [xp[:, ky:ky + H, kx:kx + W, :] for ky in range(3) for kx in range(3)]
    col = jnp.concatenate(taps, axis=-1)                       # (N, H, W, 9*Cin)
    slabs = [col[:, py::2, px::2, :].reshape(N * Hp * Wp, K)
             for py in (0, 1) for px in (0, 1)]
    return jnp.stack(slabs, axis=0).astype(jnp.bfloat16)       # (4, N*S, K)


def conv_block(x_nhwc, w_hwio, bn_scale, bn_bias):
    """(N,H,W,Cin) -> pooled (N, H//2, W//2, Cout).  One pallas_call, no grid:
    the whole batch is a single matmul with M = N*(H//2)*(W//2)."""
    N, H, W, Cin = x_nhwc.shape
    Cout = w_hwio.shape[-1]
    Hp, Wp = H // 2, W // 2
    M, K = N * Hp * Wp, 9 * Cin

    patches = _pooled_im2col(x_nhwc)
    wmat = w_hwio.reshape(K, Cout).astype(jnp.bfloat16)  # (ky,kx,ci) tap order

    out = pl.pallas_call(
        _conv_block_kernel,
        out_shape=jax.ShapeDtypeStruct((M, Cout), jnp.float32),
    )(patches, wmat, bn_scale.reshape(1, Cout), bn_bias.reshape(1, Cout))
    return out.reshape(N, Hp, Wp, Cout)


def conv_block_with_head(x_nhwc, w_hwio, bn_scale, bn_bias, w1, b1, w2, b2):
    """Final conv block fused with avg-pool (identity at 1x1) + MLP head."""
    N, H, W, Cin = x_nhwc.shape
    Cout = w_hwio.shape[-1]
    K = 9 * Cin
    assert H // 2 == 1 and W // 2 == 1, "head fusion assumes 1x1 pooled spatial"

    patches = _pooled_im2col(x_nhwc)                           # (4, N, K)
    wmat = w_hwio.reshape(K, Cout).astype(jnp.bfloat16)

    return pl.pallas_call(
        _conv_block_head_kernel,
        out_shape=jax.ShapeDtypeStruct((N, NUM_LABELS), jnp.float32),
    )(patches, wmat, bn_scale.reshape(1, Cout), bn_bias.reshape(1, Cout),
      w1.astype(jnp.bfloat16), b1.reshape(1, -1).astype(jnp.float32),
      w2.astype(jnp.bfloat16), b2.reshape(1, -1).astype(jnp.float32))


def simple_cnn_forward(params, x_nchw):
    x = jnp.transpose(x_nchw, (0, 2, 3, 1)).astype(jnp.float32)  # NCHW -> NHWC
    convs = params["convs"]
    for layer in convs[:-1]:
        scale = layer["gamma"] / jnp.sqrt(layer["var"] + BN_EPS)
        bias = layer["beta"] - layer["mean"] * scale
        x = conv_block(x, layer["w"], scale, bias)
    last = convs[-1]
    scale = last["gamma"] / jnp.sqrt(last["var"] + BN_EPS)
    bias = last["beta"] - last["mean"] * scale
    return conv_block_with_head(x, last["w"], scale, bias,
                                params["w1"], params["b1"],
                                params["w2"], params["b2"])


# ----------------------------------------------------------------------------
# Deterministic parameter init (synthetic; shapes from SimpleCNN.__init__)
# ----------------------------------------------------------------------------
def init_params(key):
    chans = [1, 32, 64, 128, 256]
    keys = iter(jax.random.split(key, 32))
    convs = []
    for cin, cout in zip(chans[:-1], chans[1:]):
        convs.append(dict(
            w=0.1 * jax.random.normal(next(keys), (3, 3, cin, cout), jnp.float32),
            gamma=1.0 + 0.1 * jax.random.normal(next(keys), (cout,), jnp.float32),
            beta=0.1 * jax.random.normal(next(keys), (cout,), jnp.float32),
            mean=0.1 * jax.random.normal(next(keys), (cout,), jnp.float32),
            var=1.0 + 0.1 * jax.random.uniform(next(keys), (cout,), jnp.float32),
        ))
    return dict(
        convs=convs,
        w1=0.05 * jax.random.normal(next(keys), (256, 128), jnp.float32),
        b1=0.01 * jax.random.normal(next(keys), (128,), jnp.float32),
        w2=0.05 * jax.random.normal(next(keys), (128, NUM_LABELS), jnp.float32),
        b2=0.01 * jax.random.normal(next(keys), (NUM_LABELS,), jnp.float32),
    )


# ----------------------------------------------------------------------------
# Pure-JAX f32 reference (for correctness check)
# ----------------------------------------------------------------------------
def reference_forward(params, x_nchw):
    x = jnp.transpose(x_nchw, (0, 2, 3, 1)).astype(jnp.float32)
    for layer in params["convs"]:
        y = lax.conv_general_dilated(
            x, layer["w"], (1, 1), "SAME",
            dimension_numbers=("NHWC", "HWIO", "NHWC"))
        scale = layer["gamma"] / jnp.sqrt(layer["var"] + BN_EPS)
        y = jnp.maximum(y * scale + (layer["beta"] - layer["mean"] * scale), 0.0)
        x = lax.reduce_window(y, -jnp.inf, lax.max,
                              (1, 2, 2, 1), (1, 2, 2, 1), "VALID")
    feat = x.mean(axis=(1, 2))
    h = jnp.maximum(feat @ params["w1"] + params["b1"], 0.0)
    return h @ params["w2"] + params["b2"]


if __name__ == "__main__":
    key = jax.random.PRNGKey(0)
    pkey, xkey = jax.random.split(key)
    params = init_params(pkey)
    # PyTorch-style NCHW input: batch=2, 1 channel, 16x16 image.
    x = jax.random.normal(xkey, (2, 1, 16, 16), jnp.float32)

    out = jax.block_until_ready(jax.jit(simple_cnn_forward)(params, x))
    ref = jax.block_until_ready(reference_forward(params, x))

    assert out.shape == (2, NUM_LABELS), out.shape
    # bf16 matmul operands (f32 accumulation) -> loosened tolerance vs f32 ref.
    assert jnp.allclose(out, ref, rtol=3e-2, atol=3e-2), (out, ref)
    print("KERNEL_OK")
</pallas_src>

<mosaic_0001>
module attributes {stable_mosaic.version = 11 : i64} {
  func.func @_conv_block_kernel(%arg0: memref<4x128x9xbf16, #tpu.memory_space<vmem>>, %arg1: memref<9x32xbf16, #tpu.memory_space<vmem>>, %arg2: memref<1x32xf32, #tpu.memory_space<vmem>>, %arg3: memref<1x32xf32, #tpu.memory_space<vmem>>, %arg4: memref<128x32xf32, #tpu.memory_space<vmem>>) attributes {dimension_semantics = [], scalar_prefetch = 0 : i64, scratch_operands = 0 : i64, tpu.core_type = #tpu.core_type<tc>} {
    %c0 = arith.constant 0 : index
    %c0_0 = arith.constant 0 : index
    %0 = vector.load %arg1[%c0, %c0_0] : memref<9x32xbf16, #tpu.memory_space<vmem>>, vector<9x32xbf16>
    %c0_1 = arith.constant 0 : index
    %c0_2 = arith.constant 0 : index
    %1 = vector.load %arg2[%c0_1, %c0_2] : memref<1x32xf32, #tpu.memory_space<vmem>>, vector<1x32xf32>
    %2 = vector.shape_cast %1 : vector<1x32xf32> to vector<1x32xf32>
    %3 = vector.broadcast %2 : vector<1x32xf32> to vector<128x32xf32>
    %c0_3 = arith.constant 0 : index
    %c0_4 = arith.constant 0 : index
    %4 = vector.load %arg3[%c0_3, %c0_4] : memref<1x32xf32, #tpu.memory_space<vmem>>, vector<1x32xf32>
    %5 = vector.shape_cast %4 : vector<1x32xf32> to vector<1x32xf32>
    %6 = vector.broadcast %5 : vector<1x32xf32> to vector<128x32xf32>
    %c0_5 = arith.constant 0 : index
    %c0_6 = arith.constant 0 : index
    %c0_7 = arith.constant 0 : index
    %7 = vector.load %arg0[%c0_5, %c0_6, %c0_7] : memref<4x128x9xbf16, #tpu.memory_space<vmem>>, vector<1x128x9xbf16>
    %8 = vector.shape_cast %7 : vector<1x128x9xbf16> to vector<128x9xbf16>
    %cst = arith.constant dense<0.000000e+00> : vector<128x32xf32>
    %9 = tpu.matmul %8, %0, %cst {dimension_numbers = #tpu.dot_dimension_numbers<[1], [0], [0], [1], [0, 0, 1, 1], [], []>} : vector<128x9xbf16>, vector<9x32xbf16>, vector<128x32xf32> -> vector<128x32xf32>
    %10 = arith.mulf %9, %3 : vector<128x32xf32>
    %11 = arith.addf %10, %6 : vector<128x32xf32>
    %c1 = arith.constant 1 : index
    %c0_8 = arith.constant 0 : index
    %c0_9 = arith.constant 0 : index
    %12 = vector.load %arg0[%c1, %c0_8, %c0_9] : memref<4x128x9xbf16, #tpu.memory_space<vmem>>, vector<1x128x9xbf16>
    %13 = vector.shape_cast %12 : vector<1x128x9xbf16> to vector<128x9xbf16>
    %cst_10 = arith.constant dense<0.000000e+00> : vector<128x32xf32>
    %14 = tpu.matmul %13, %0, %cst_10 {dimension_numbers = #tpu.dot_dimension_numbers<[1], [0], [0], [1], [0, 0, 1, 1], [], []>} : vector<128x9xbf16>, vector<9x32xbf16>, vector<128x32xf32> -> vector<128x32xf32>
    %15 = arith.mulf %14, %3 : vector<128x32xf32>
    %16 = arith.addf %15, %6 : vector<128x32xf32>
    %17 = arith.maximumf %11, %16 : vector<128x32xf32>
    %c2 = arith.constant 2 : index
    %c0_11 = arith.constant 0 : index
    %c0_12 = arith.constant 0 : index
    %18 = vector.load %arg0[%c2, %c0_11, %c0_12] : memref<4x128x9xbf16, #tpu.memory_space<vmem>>, vector<1x128x9xbf16>
    %19 = vector.shape_cast %18 : vector<1x128x9xbf16> to vector<128x9xbf16>
    %cst_13 = arith.constant dense<0.000000e+00> : vector<128x32xf32>
    %20 = tpu.matmul %19, %0, %cst_13 {dimension_numbers = #tpu.dot_dimension_numbers<[1], [0], [0], [1], [0, 0, 1, 1], [], []>} : vector<128x9xbf16>, vector<9x32xbf16>, vector<128x32xf32> -> vector<128x32xf32>
    %21 = arith.mulf %20, %3 : vector<128x32xf32>
    %22 = arith.addf %21, %6 : vector<128x32xf32>
    %23 = arith.maximumf %17, %22 : vector<128x32xf32>
    %c3 = arith.constant 3 : index
    %c0_14 = arith.constant 0 : index
    %c0_15 = arith.constant 0 : index
    %24 = vector.load %arg0[%c3, %c0_14, %c0_15] : memref<4x128x9xbf16, #tpu.memory_space<vmem>>, vector<1x128x9xbf16>
    %25 = vector.shape_cast %24 : vector<1x128x9xbf16> to vector<128x9xbf16>
    %cst_16 = arith.constant dense<0.000000e+00> : vector<128x32xf32>
    %26 = tpu.matmul %25, %0, %cst_16 {dimension_numbers = #tpu.dot_dimension_numbers<[1], [0], [0], [1], [0, 0, 1, 1], [], []>} : vector<128x9xbf16>, vector<9x32xbf16>, vector<128x32xf32> -> vector<128x32xf32>
    %27 = arith.mulf %26, %3 : vector<128x32xf32>
    %28 = arith.addf %27, %6 : vector<128x32xf32>
    %29 = arith.maximumf %23, %28 : vector<128x32xf32>
    %cst_17 = arith.constant 0.000000e+00 : f32
    %30 = vector.broadcast %cst_17 : f32 to vector<128x32xf32>
    %31 = arith.maximumf %29, %30 : vector<128x32xf32>
    %c0_18 = arith.constant 0 : index
    %c0_19 = arith.constant 0 : index
    %32 = vector.load %arg4[%c0_18, %c0_19] : memref<128x32xf32, #tpu.memory_space<vmem>>, vector<128x32xf32>
    tpu.vector_store %arg4[%c0_18, %c0_19], %31 {strides = array<i32>} : memref<128x32xf32, #tpu.memory_space<vmem>>, vector<128x32xf32>,
    return
  }
}

module attributes {stable_mosaic.version = 11 : i64} {
  func.func @_conv_block_kernel(%arg0: memref<4x32x288xbf16, #tpu.memory_space<vmem>>, %arg1: memref<288x64xbf16, #tpu.memory_space<vmem>>, %arg2: memref<1x64xf32, #tpu.memory_space<vmem>>, %arg3: memref<1x64xf32, #tpu.memory_space<vmem>>, %arg4: memref<32x64xf32, #tpu.memory_space<vmem>>) attributes {dimension_semantics = [], scalar_prefetch = 0 : i64, scratch_operands = 0 : i64, tpu.core_type = #tpu.core_type<tc>} {
    %c0 = arith.constant 0 : index
    %c0_0 = arith.constant 0 : index
    %0 = vector.load %arg1[%c0, %c0_0] : memref<288x64xbf16, #tpu.memory_space<vmem>>, vector<288x64xbf16>
    %c0_1 = arith.constant 0 : index
    %c0_2 = arith.constant 0 : index
    %1 = vector.load %arg2[%c0_1, %c0_2] : memref<1x64xf32, #tpu.memory_space<vmem>>, vector<1x64xf32>
    %2 = vector.shape_cast %1 : vector<1x64xf32> to vector<1x64xf32>
    %3 = vector.broadcast %2 : vector<1x64xf32> to vector<32x64xf32>
    %c0_3 = arith.constant 0 : index
    %c0_4 = arith.constant 0 : index
    %4 = vector.load %arg3[%c0_3, %c0_4] : memref<1x64xf32, #tpu.memory_space<vmem>>, vector<1x64xf32>
    %5 = vector.shape_cast %4 : vector<1x64xf32> to vector<1x64xf32>
    %6 = vector.broadcast %5 : vector<1x64xf32> to vector<32x64xf32>
    %c0_5 = arith.constant 0 : index
    %c0_6 = arith.constant 0 : index
    %c0_7 = arith.constant 0 : index
    %7 = vector.load %arg0[%c0_5, %c0_6, %c0_7] : memref<4x32x288xbf16, #tpu.memory_space<vmem>>, vector<1x32x288xbf16>
    %8 = vector.shape_cast %7 : vector<1x32x288xbf16> to vector<32x288xbf16>
    %cst = arith.constant dense<0.000000e+00> : vector<32x64xf32>
    %9 = tpu.matmul %8, %0, %cst {dimension_numbers = #tpu.dot_dimension_numbers<[1], [0], [0], [1], [0, 0, 1, 1], [], []>} : vector<32x288xbf16>, vector<288x64xbf16>, vector<32x64xf32> -> vector<32x64xf32>
    %10 = arith.mulf %9, %3 : vector<32x64xf32>
    %11 = arith.addf %10, %6 : vector<32x64xf32>
    %c1 = arith.constant 1 : index
    %c0_8 = arith.constant 0 : index
    %c0_9 = arith.constant 0 : index
    %12 = vector.load %arg0[%c1, %c0_8, %c0_9] : memref<4x32x288xbf16, #tpu.memory_space<vmem>>, vector<1x32x288xbf16>
    %13 = vector.shape_cast %12 : vector<1x32x288xbf16> to vector<32x288xbf16>
    %cst_10 = arith.constant dense<0.000000e+00> : vector<32x64xf32>
    %14 = tpu.matmul %13, %0, %cst_10 {dimension_numbers = #tpu.dot_dimension_numbers<[1], [0], [0], [1], [0, 0, 1, 1], [], []>} : vector<32x288xbf16>, vector<288x64xbf16>, vector<32x64xf32> -> vector<32x64xf32>
    %15 = arith.mulf %14, %3 : vector<32x64xf32>
    %16 = arith.addf %15, %6 : vector<32x64xf32>
    %17 = arith.maximumf %11, %16 : vector<32x64xf32>
    %c2 = arith.constant 2 : index
    %c0_11 = arith.constant 0 : index
    %c0_12 = arith.constant 0 : index
    %18 = vector.load %arg0[%c2, %c0_11, %c0_12] : memref<4x32x288xbf16, #tpu.memory_space<vmem>>, vector<1x32x288xbf16>
    %19 = vector.shape_cast %18 : vector<1x32x288xbf16> to vector<32x288xbf16>
    %cst_13 = arith.constant dense<0.000000e+00> : vector<32x64xf32>
    %20 = tpu.matmul %19, %0, %cst_13 {dimension_numbers = #tpu.dot_dimension_numbers<[1], [0], [0], [1], [0, 0, 1, 1], [], []>} : vector<32x288xbf16>, vector<288x64xbf16>, vector<32x64xf32> -> vector<32x64xf32>
    %21 = arith.mulf %20, %3 : vector<32x64xf32>
    %22 = arith.addf %21, %6 : vector<32x64xf32>
    %23 = arith.maximumf %17, %22 : vector<32x64xf32>
    %c3 = arith.constant 3 : index
    %c0_14 = arith.constant 0 : index
    %c0_15 = arith.constant 0 : index
    %24 = vector.load %arg0[%c3, %c0_14, %c0_15] : memref<4x32x288xbf16, #tpu.memory_space<vmem>>, vector<1x32x288xbf16>
    %25 = vector.shape_cast %24 : vector<1x32x288xbf16> to vector<32x288xbf16>
    %cst_16 = arith.constant dense<0.000000e+00> : vector<32x64xf32>
    %26 = tpu.matmul %25, %0, %cst_16 {dimension_numbers = #tpu.dot_dimension_numbers<[1], [0], [0], [1], [0, 0, 1, 1], [], []>} : vector<32x288xbf16>, vector<288x64xbf16>, vector<32x64xf32> -> vector<32x64xf32>
    %27 = arith.mulf %26, %3 : vector<32x64xf32>
    %28 = arith.addf %27, %6 : vector<32x64xf32>
    %29 = arith.maximumf %23, %28 : vector<32x64xf32>
    %cst_17 = arith.constant 0.000000e+00 : f32
    %30 = vector.broadcast %cst_17 : f32 to vector<32x64xf32>
    %31 = arith.maximumf %29, %30 : vector<32x64xf32>
    %c0_18 = arith.constant 0 : index
    %c0_19 = arith.constant 0 : index
    %32 = vector.load %arg4[%c0_18, %c0_19] : memref<32x64xf32, #tpu.memory_space<vmem>>, vector<32x64xf32>
    tpu.vector_store %arg4[%c0_18, %c0_19], %31 {strides = array<i32>} : memref<32x64xf32, #tpu.memory_space<vmem>>, vector<32x64xf32>,
    return
  }
}

module attributes {stable_mosaic.version = 11 : i64} {
  func.func @_conv_block_kernel(%arg0: memref<4x8x576xbf16, #tpu.memory_space<vmem>>, %arg1: memref<576x128xbf16, #tpu.memory_space<vmem>>, %arg2: memref<1x128xf32, #tpu.memory_space<vmem>>, %arg3: memref<1x128xf32, #tpu.memory_space<vmem>>, %arg4: memref<8x128xf32, #tpu.memory_space<vmem>>) attributes {dimension_semantics = [], scalar_prefetch = 0 : i64, scratch_operands = 0 : i64, tpu.core_type = #tpu.core_type<tc>} {
    %c0 = arith.constant 0 : index
    %c0_0 = arith.constant 0 : index
    %0 = vector.load %arg1[%c0, %c0_0] : memref<576x128xbf16, #tpu.memory_space<vmem>>, vector<576x128xbf16>
    %c0_1 = arith.constant 0 : index
    %c0_2 = arith.constant 0 : index
    %1 = vector.load %arg2[%c0_1, %c0_2] : memref<1x128xf32, #tpu.memory_space<vmem>>, vector<1x128xf32>
    %2 = vector.shape_cast %1 : vector<1x128xf32> to vector<1x128xf32>
    %3 = vector.broadcast %2 : vector<1x128xf32> to vector<8x128xf32>
    %c0_3 = arith.constant 0 : index
    %c0_4 = arith.constant 0 : index
    %4 = vector.load %arg3[%c0_3, %c0_4] : memref<1x128xf32, #tpu.memory_space<vmem>>, vector<1x128xf32>
    %5 = vector.shape_cast %4 : vector<1x128xf32> to vector<1x128xf32>
    %6 = vector.broadcast %5 : vector<1x128xf32> to vector<8x128xf32>
    %c0_5 = arith.constant 0 : index
    %c0_6 = arith.constant 0 : index
    %c0_7 = arith.constant 0 : index
    %7 = vector.load %arg0[%c0_5, %c0_6, %c0_7] : memref<4x8x576xbf16, #tpu.memory_space<vmem>>, vector<1x8x576xbf16>
    %8 = vector.shape_cast %7 : vector<1x8x576xbf16> to vector<8x576xbf16>
    %cst = arith.constant dense<0.000000e+00> : vector<8x128xf32>
    %9 = tpu.matmul %8, %0, %cst {dimension_numbers = #tpu.dot_dimension_numbers<[1], [0], [0], [1], [0, 0, 1, 1], [], []>} : vector<8x576xbf16>, vector<576x128xbf16>, vector<8x128xf32> -> vector<8x128xf32>
    %10 = arith.mulf %9, %3 : vector<8x128xf32>
    %11 = arith.addf %10, %6 : vector<8x128xf32>
    %c1 = arith.constant 1 : index
    %c0_8 = arith.constant 0 : index
    %c0_9 = arith.constant 0 : index
    %12 = vector.load %arg0[%c1, %c0_8, %c0_9] : memref<4x8x576xbf16, #tpu.memory_space<vmem>>, vector<1x8x576xbf16>
    %13 = vector.shape_cast %12 : vector<1x8x576xbf16> to vector<8x576xbf16>
    %cst_10 = arith.constant dense<0.000000e+00> : vector<8x128xf32>
    %14 = tpu.matmul %13, %0, %cst_10 {dimension_numbers = #tpu.dot_dimension_numbers<[1], [0], [0], [1], [0, 0, 1, 1], [], []>} : vector<8x576xbf16>, vector<576x128xbf16>, vector<8x128xf32> -> vector<8x128xf32>
    %15 = arith.mulf %14, %3 : vector<8x128xf32>
    %16 = arith.addf %15, %6 : vector<8x128xf32>
    %17 = arith.maximumf %11, %16 : vector<8x128xf32>
    %c2 = arith.constant 2 : index
    %c0_11 = arith.constant 0 : index
    %c0_12 = arith.constant 0 : index
    %18 = vector.load %arg0[%c2, %c0_11, %c0_12] : memref<4x8x576xbf16, #tpu.memory_space<vmem>>, vector<1x8x576xbf16>
    %19 = vector.shape_cast %18 : vector<1x8x576xbf16> to vector<8x576xbf16>
    %cst_13 = arith.constant dense<0.000000e+00> : vector<8x128xf32>
    %20 = tpu.matmul %19, %0, %cst_13 {dimension_numbers = #tpu.dot_dimension_numbers<[1], [0], [0], [1], [0, 0, 1, 1], [], []>} : vector<8x576xbf16>, vector<576x128xbf16>, vector<8x128xf32> -> vector<8x128xf32>
    %21 = arith.mulf %20, %3 : vector<8x128xf32>
    %22 = arith.addf %21, %6 : vector<8x128xf32>
    %23 = arith.maximumf %17, %22 : vector<8x128xf32>
    %c3 = arith.constant 3 : index
    %c0_14 = arith.constant 0 : index
    %c0_15 = arith.constant 0 : index
    %24 = vector.load %arg0[%c3, %c0_14, %c0_15] : memref<4x8x576xbf16, #tpu.memory_space<vmem>>, vector<1x8x576xbf16>
    %25 = vector.shape_cast %24 : vector<1x8x576xbf16> to vector<8x576xbf16>
    %cst_16 = arith.constant dense<0.000000e+00> : vector<8x128xf32>
    %26 = tpu.matmul %25, %0, %cst_16 {dimension_numbers = #tpu.dot_dimension_numbers<[1], [0], [0], [1], [0, 0, 1, 1], [], []>} : vector<8x576xbf16>, vector<576x128xbf16>, vector<8x128xf32> -> vector<8x128xf32>
    %27 = arith.mulf %26, %3 : vector<8x128xf32>
    %28 = arith.addf %27, %6 : vector<8x128xf32>
    %29 = arith.maximumf %23, %28 : vector<8x128xf32>
    %cst_17 = arith.constant 0.000000e+00 : f32
    %30 = vector.broadcast %cst_17 : f32 to vector<8x128xf32>
    %31 = arith.maximumf %29, %30 : vector<8x128xf32>
    %c0_18 = arith.constant 0 : index
    %c0_19 = arith.constant 0 : index
    %32 = vector.load %arg4[%c0_18, %c0_19] : memref<8x128xf32, #tpu.memory_space<vmem>>, vector<8x128xf32>
    tpu.vector_store %arg4[%c0_18, %c0_19], %31 {strides = array<i32>} : memref<8x128xf32, #tpu.memory_space<vmem>>, vector<8x128xf32>,
    return
  }
}

module attributes {stable_mosaic.version = 11 : i64} {
  func.func @_conv_block_head_kernel(%arg0: memref<4x2x1152xbf16, #tpu.memory_space<vmem>>, %arg1: memref<1152x256xbf16, #tpu.memory_space<vmem>>, %arg2: memref<1x256xf32, #tpu.memory_space<vmem>>, %arg3: memref<1x256xf32, #tpu.memory_space<vmem>>, %arg4: memref<256x128xbf16, #tpu.memory_space<vmem>>, %arg5: memref<1x128xf32, #tpu.memory_space<vmem>>, %arg6: memref<128x2xbf16, #tpu.memory_space<vmem>>, %arg7: memref<1x2xf32, #tpu.memory_space<vmem>>, %arg8: memref<2x2xf32, #tpu.memory_space<vmem>>) attributes {dimension_semantics = [], scalar_prefetch = 0 : i64, scratch_operands = 0 : i64, tpu.core_type = #tpu.core_type<tc>} {
    %c0 = arith.constant 0 : index
    %c0_0 = arith.constant 0 : index
    %0 = vector.load %arg1[%c0, %c0_0] : memref<1152x256xbf16, #tpu.memory_space<vmem>>, vector<1152x256xbf16>
    %c0_1 = arith.constant 0 : index
    %c0_2 = arith.constant 0 : index
    %c0_3 = arith.constant 0 : index
    %1 = vector.load %arg0[%c0_1, %c0_2, %c0_3] : memref<4x2x1152xbf16, #tpu.memory_space<vmem>>, vector<1x2x1152xbf16>
    %2 = vector.shape_cast %1 : vector<1x2x1152xbf16> to vector<2x1152xbf16>
    %cst = arith.constant dense<0.000000e+00> : vector<2x256xf32>
    %3 = tpu.matmul %2, %0, %cst {dimension_numbers = #tpu.dot_dimension_numbers<[1], [0], [0], [1], [0, 0, 1, 1], [], []>} : vector<2x1152xbf16>, vector<1152x256xbf16>, vector<2x256xf32> -> vector<2x256xf32>
    %c0_4 = arith.constant 0 : index
    %c0_5 = arith.constant 0 : index
    %4 = vector.load %arg2[%c0_4, %c0_5] : memref<1x256xf32, #tpu.memory_space<vmem>>, vector<1x256xf32>
    %5 = vector.broadcast %4 : vector<1x256xf32> to vector<2x256xf32>
    %6 = arith.mulf %3, %5 : vector<2x256xf32>
    %c0_6 = arith.constant 0 : index
    %c0_7 = arith.constant 0 : index
    %7 = vector.load %arg3[%c0_6, %c0_7] : memref<1x256xf32, #tpu.memory_space<vmem>>, vector<1x256xf32>
    %8 = vector.broadcast %7 : vector<1x256xf32> to vector<2x256xf32>
    %9 = arith.addf %6, %8 : vector<2x256xf32>
    %c1 = arith.constant 1 : index
    %c0_8 = arith.constant 0 : index
    %c0_9 = arith.constant 0 : index
    %10 = vector.load %arg0[%c1, %c0_8, %c0_9] : memref<4x2x1152xbf16, #tpu.memory_space<vmem>>, vector<1x2x1152xbf16>
    %11 = vector.shape_cast %10 : vector<1x2x1152xbf16> to vector<2x1152xbf16>
    %cst_10 = arith.constant dense<0.000000e+00> : vector<2x256xf32>
    %12 = tpu.matmul %11, %0, %cst_10 {dimension_numbers = #tpu.dot_dimension_numbers<[1], [0], [0], [1], [0, 0, 1, 1], [], []>} : vector<2x1152xbf16>, vector<1152x256xbf16>, vector<2x256xf32> -> vector<2x256xf32>
    %c0_11 = arith.constant 0 : index
    %c0_12 = arith.constant 0 : index
    %13 = vector.load %arg2[%c0_11, %c0_12] : memref<1x256xf32, #tpu.memory_space<vmem>>, vector<1x256xf32>
    %14 = vector.broadcast %13 : vector<1x256xf32> to vector<2x256xf32>
    %15 = arith.mulf %12, %14 : vector<2x256xf32>
    %c0_13 = arith.constant 0 : index
    %c0_14 = arith.constant 0 : index
    %16 = vector.load %arg3[%c0_13, %c0_14] : memref<1x256xf32, #tpu.memory_space<vmem>>, vector<1x256xf32>
    %17 = vector.broadcast %16 : vector<1x256xf32> to vector<2x256xf32>
    %18 = arith.addf %15, %17 : vector<2x256xf32>
    %19 = arith.maximumf %9, %18 : vector<2x256xf32>
    %c2 = arith.constant 2 : index
    %c0_15 = arith.constant 0 : index
    %c0_16 = arith.constant 0 : index
    %20 = vector.load %arg0[%c2, %c0_15, %c0_16] : memref<4x2x1152xbf16, #tpu.memory_space<vmem>>, vector<1x2x1152xbf16>
    %21 = vector.shape_cast %20 : vector<1x2x1152xbf16> to vector<2x1152xbf16>
    %cst_17 = arith.constant dense<0.000000e+00> : vector<2x256xf32>
    %22 = tpu.matmul %21, %0, %cst_17 {dimension_numbers = #tpu.dot_dimension_numbers<[1], [0], [0], [1], [0, 0, 1, 1], [], []>} : vector<2x1152xbf16>, vector<1152x256xbf16>, vector<2x256xf32> -> vector<2x256xf32>
    %c0_18 = arith.constant 0 : index
    %c0_19 = arith.constant 0 : index
    %23 = vector.load %arg2[%c0_18, %c0_19] : memref<1x256xf32, #tpu.memory_space<vmem>>, vector<1x256xf32>
    %24 = vector.broadcast %23 : vector<1x256xf32> to vector<2x256xf32>
    %25 = arith.mulf %22, %24 : vector<2x256xf32>
    %c0_20 = arith.constant 0 : index
    %c0_21 = arith.constant 0 : index
    %26 = vector.load %arg3[%c0_20, %c0_21] : memref<1x256xf32, #tpu.memory_space<vmem>>, vector<1x256xf32>
    %27 = vector.broadcast %26 : vector<1x256xf32> to vector<2x256xf32>
    %28 = arith.addf %25, %27 : vector<2x256xf32>
    %29 = arith.maximumf %19, %28 : vector<2x256xf32>
    %c3 = arith.constant 3 : index
    %c0_22 = arith.constant 0 : index
    %c0_23 = arith.constant 0 : index
    %30 = vector.load %arg0[%c3, %c0_22, %c0_23] : memref<4x2x1152xbf16, #tpu.memory_space<vmem>>, vector<1x2x1152xbf16>
    %31 = vector.shape_cast %30 : vector<1x2x1152xbf16> to vector<2x1152xbf16>
    %cst_24 = arith.constant dense<0.000000e+00> : vector<2x256xf32>
    %32 = tpu.matmul %31, %0, %cst_24 {dimension_numbers = #tpu.dot_dimension_numbers<[1], [0], [0], [1], [0, 0, 1, 1], [], []>} : vector<2x1152xbf16>, vector<1152x256xbf16>, vector<2x256xf32> -> vector<2x256xf32>
    %c0_25 = arith.constant 0 : index
    %c0_26 = arith.constant 0 : index
    %33 = vector.load %arg2[%c0_25, %c0_26] : memref<1x256xf32, #tpu.memory_space<vmem>>, vector<1x256xf32>
    %34 = vector.broadcast %33 : vector<1x256xf32> to vector<2x256xf32>
    %35 = arith.mulf %32, %34 : vector<2x256xf32>
    %c0_27 = arith.constant 0 : index
    %c0_28 = arith.constant 0 : index
    %36 = vector.load %arg3[%c0_27, %c0_28] : memref<1x256xf32, #tpu.memory_space<vmem>>, vector<1x256xf32>
    %37 = vector.broadcast %36 : vector<1x256xf32> to vector<2x256xf32>
    %38 = arith.addf %35, %37 : vector<2x256xf32>
    %39 = arith.maximumf %29, %38 : vector<2x256xf32>
    %cst_29 = arith.constant 0.000000e+00 : f32
    %40 = vector.broadcast %cst_29 : f32 to vector<2x256xf32>
    %41 = arith.maximumf %39, %40 : vector<2x256xf32>
    %42 = arith.truncf %41 : vector<2x256xf32> to vector<2x256xbf16>
    %c0_30 = arith.constant 0 : index
    %c0_31 = arith.constant 0 : index
    %43 = vector.load %arg4[%c0_30, %c0_31] : memref<256x128xbf16, #tpu.memory_space<vmem>>, vector<256x128xbf16>
    %cst_32 = arith.constant dense<0.000000e+00> : vector<2x128xf32>
    %44 = tpu.matmul %42, %43, %cst_32 {dimension_numbers = #tpu.dot_dimension_numbers<[1], [0], [0], [1], [0, 0, 1, 1], [], []>} : vector<2x256xbf16>, vector<256x128xbf16>, vector<2x128xf32> -> vector<2x128xf32>
    %c0_33 = arith.constant 0 : index
    %c0_34 = arith.constant 0 : index
    %45 = vector.load %arg5[%c0_33, %c0_34] : memref<1x128xf32, #tpu.memory_space<vmem>>, vector<1x128xf32>
    %46 = vector.broadcast %45 : vector<1x128xf32> to vector<2x128xf32>
    %47 = arith.addf %44, %46 : vector<2x128xf32>
    %cst_35 = arith.constant 0.000000e+00 : f32
    %48 = vector.broadcast %cst_35 : f32 to vector<2x128xf32>
    %49 = arith.maximumf %47, %48 : vector<2x128xf32>
    %50 = arith.truncf %49 : vector<2x128xf32> to vector<2x128xbf16>
    %c0_36 = arith.constant 0 : index
    %c0_37 = arith.constant 0 : index
    %51 = vector.load %arg6[%c0_36, %c0_37] : memref<128x2xbf16, #tpu.memory_space<vmem>>, vector<128x2xbf16>
    %cst_38 = arith.constant dense<0.000000e+00> : vector<2x2xf32>
    %52 = tpu.matmul %50, %51, %cst_38 {dimension_numbers = #tpu.dot_dimension_numbers<[1], [0], [0], [1], [0, 0, 1, 1], [], []>} : vector<2x128xbf16>, vector<128x2xbf16>, vector<2x2xf32> -> vector<2x2xf32>
    %c0_39 = arith.constant 0 : index
    %c0_40 = arith.constant 0 : index
    %53 = vector.load %arg7[%c0_39, %c0_40] : memref<1x2xf32, #tpu.memory_space<vmem>>, vector<1x2xf32>
    %54 = vector.broadcast %53 : vector<1x2xf32> to vector<2x2xf32>
    %55 = arith.addf %52, %54 : vector<2x2xf32>
    %c0_41 = arith.constant 0 : index
    %c0_42 = arith.constant 0 : index
    %56 = vector.load %arg8[%c0_41, %c0_42] : memref<2x2xf32, #tpu.memory_space<vmem>>, vector<2x2xf32>
    tpu.vector_store %arg8[%c0_41, %c0_42], %55 {strides = array<i32>} : memref<2x2xf32, #tpu.memory_space<vmem>>, vector<2x2xf32>,
    return
  }
}

</mosaic_0001>

<llo_original>
// kernel: simple_cnn_forward.4
$region0: #{simple_cnn_forward.4}
  #allocation0 [shape = 'u32[]', space=smem, size = 0x4, offset = 0x4, fixed_abs, tag = 'smem constant byte address 0x4 - core index']
  #allocation1 [shape = 'u32[144,128]{1,0:T(1,128)}', space=vmem, size = 0x12000, scoped, tag = 'internal scratch']
  %s0 = inlined_call_operand.vmem [shape: bf16[4,128,9], index: 0, kind: input, shape index: {}]
  %s1 = inlined_call_operand.vmem [shape: bf16[9,32], index: 1, kind: input, shape index: {}]
  %s2 = inlined_call_operand.vmem [shape: f32[1,32], index: 2, kind: input, shape index: {}]
  %s3 = inlined_call_operand.vmem [shape: f32[1,32], index: 3, kind: input, shape index: {}]
  %s4 = inlined_call_operand.vmem [shape: f32[128,32], index: 4, kind: output, shape index: {}]
  %s5 = sld [smem:[#allocation0]]
  $region26: #{simple_cnn_forward.4} parent=0
    _
  %s7 = ssub.s32 1, %s5
  %s8 = scalar_select 0, %s7, %s5
  // Predicated region
  $region2: #{simple_cnn_forward.4} parent=0 // pred_check
    _
  $region3: #{simple_cnn_forward.4} parent=0 // pred_check_branch
    %10 = sbr.rel (0) target = $region5
  $region4: #{simple_cnn_forward.4} parent=0 // pred_region
    _
  $region5: #{simple_cnn_forward.4} parent=0 // pred_fallthru
    _
  // Predicated region
  $region6: #{simple_cnn_forward.4} parent=0 // pred_check
    _
  $region7: #{simple_cnn_forward.4} parent=0 // pred_check_branch
    %12 = sbr.rel (0) target = $region9
  $region8: #{simple_cnn_forward.4} parent=0 // pred_region
    _
  $region9: #{simple_cnn_forward.4} parent=0 // pred_fallthru
    _
  // Predicated region
  $region10: #{simple_cnn_forward.4} parent=0 // pred_check
    _
  $region11: #{simple_cnn_forward.4} parent=0 // pred_check_branch
    %14 = sbr.rel (0) target = $region13
  $region12: #{simple_cnn_forward.4} parent=0 // pred_region
    _
  $region13: #{simple_cnn_forward.4} parent=0 // pred_fallthru
    _
  // Predicated region
  $region14: #{simple_cnn_forward.4} parent=0 // pred_check
    _
  $region15: #{simple_cnn_forward.4} parent=0 // pred_check_branch
    %16 = sbr.rel (0) target = $region17
  $region16: #{simple_cnn_forward.4} parent=0 // pred_region
    _
  $region17: #{simple_cnn_forward.4} parent=0 // pred_fallthru
    _
  %v18 = vld [vmem:[%s1] sm:$0xf]
  %v19 = vld [vmem:[%s1 + $0x4] sm:$0x1]
  %v20 = vld [vmem:[%s2] sm:$0x1]
  %v22 = vlaneseq
  %v23 = vshrl.u32 %v22, 7
  %v24 = vsub.s32 0, %v23
  %v25 = vrot.slane %v20, %v24
  %v27 = vld [vmem:[%s3] sm:$0x1]
  %v29 = vlaneseq
  %v30 = vshrl.u32 %v29, 7
  %v31 = vsub.s32 0, %v30
  %v32 = vrot.slane %v27, %v31
  %v34 = vld [vmem:[%s0] sm:$0xf]
  %v35 = vld [vmem:[%s0 + $0x4] sm:$0xf]
  %v36 = vld [vmem:[%s0 + $0x8] sm:$0xf]
  %v37 = vld [vmem:[%s0 + $0xc] sm:$0xf]
  %v38 = vld [vmem:[%s0 + $0x10] sm:$0xf]
  %v39 = vld [vmem:[%s0 + $0x14] sm:$0xf]
  %v40 = vld [vmem:[%s0 + $0x18] sm:$0xf]
  %v41 = vld [vmem:[%s0 + $0x1c] sm:$0xf]
  %v42 = vld [vmem:[%s0 + $0x20] sm:$0xf]
  %v43 = vld [vmem:[%s0 + $0x24] sm:$0xf]
  %v44 = vld [vmem:[%s0 + $0x28] sm:$0xf]
  %v45 = vld [vmem:[%s0 + $0x2c] sm:$0xf]
  %v46 = vld [vmem:[%s0 + $0x30] sm:$0xf]
  %v47 = vld [vmem:[%s0 + $0x34] sm:$0xf]
  %v48 = vld [vmem:[%s0 + $0x38] sm:$0xf]
  %v49 = vld [vmem:[%s0 + $0x3c] sm:$0xf]
  %v66 = vunpack.c.l.b16 %v34
  %v67 = vunpack.c.l.b16 %v35
  %v68 = vunpack.c.l.b16 %v36
  %v69 = vunpack.c.l.b16 %v37
  %v70 = vunpack.c.l.b16 %v38
  %v71 = vunpack.c.l.b16 %v39
  %v72 = vunpack.c.l.b16 %v40
  %v73 = vunpack.c.l.b16 %v41
  %v74 = vunpack.c.l.b16 %v42
  %v75 = vunpack.c.l.b16 %v43
  %v76 = vunpack.c.l.b16 %v44
  %v77 = vunpack.c.l.b16 %v45
  %v78 = vunpack.c.l.b16 %v46
  %v79 = vunpack.c.l.b16 %v47
  %v80 = vunpack.c.l.b16 %v48
  %v81 = vunpack.c.l.b16 %v49
  %v82 = vpack.c.b16 %v67, %v66
  %v83 = vpack.c.b16 %v69, %v68
  %v84 = vpack.c.b16 %v71, %v70
  %v85 = vpack.c.b16 %v73, %v72
  %v86 = vpack.c.b16 %v75, %v74
  %v87 = vpack.c.b16 %v77, %v76
  %v88 = vpack.c.b16 %v79, %v78
  %v89 = vpack.c.b16 %v81, %v80
  %v92 = vunpack.c.l.b16 %v18
  %v93 = vunpack.c.l.b16 %v19
  %v94 = vpack.c.b16 %v93, %v92
  %vm95 = vcmask 72704
  %v97 = vsel %vm95, %v82, 0
  %v100 = vsel %vm95, %v83, 0
  %v103 = vsel %vm95, %v84, 0
  %v106 = vsel %vm95, %v85, 0
  %v109 = vsel %vm95, %v86, 0
  %v112 = vsel %vm95, %v87, 0
  %v115 = vsel %vm95, %v88, 0
  %v118 = vsel %vm95, %v89, 0
  %vm120 = vcmask 1043456
  %vm121 = vcmask 1044480
  %v122 = vsel %vm120, 4294967295, 65535
  %v123 = vsel %vm121, %v122, 0
  %v125 = vand.u32 %v94, %v123
  %127 = vmatprep.subr.bf16.mxu0 0
  %128 = vmatpush1.bf16.msra.mxu0 0
  %129 = vmatprep.subr.bf16.mxu0 0
  %130 = vmatpush1.bf16.msra.mxu0 0
  %131 = vmatprep.subr.bf16.mxu0 0
  %132 = vmatpush1.bf16.msra.mxu0 0
  %133 = vmatprep.subr.bf16.mxu0 0
  %134 = vmatpush1.bf16.msra.mxu0 0
  %135 = vmatprep.subr.bf16.mxu0 0
  %136 = vmatpush1.bf16.msra.mxu0 0
  %137 = vmatprep.subr.bf16.mxu0 0
  %138 = vmatpush1.bf16.msra.mxu0 0
  %139 = vmatprep.subr.bf16.mxu0 0
  %140 = vmatpush1.bf16.msra.mxu0 0
  %141 = vmatprep.subr.bf16.mxu0 0
  %142 = vmatpush1.bf16.msra.mxu0 %v125
  %143 = vmatprep.subr.bf16.mxu0 0
  %144 = vmatpush2.bf16.msra.mxu0 0
  %145 = vmatprep.subr.bf16.mxu0 0
  %146 = vmatpush2.bf16.msra.mxu0 0
  %147 = vmatprep.subr.bf16.mxu0 0
  %148 = vmatpush2.bf16.msra.mxu0 0
  %149 = vmatprep.subr.bf16.mxu0 0
  %150 = vmatpush2.bf16.msra.mxu0 0
  %151 = vmatprep.subr.bf16.mxu0 0
  %152 = vmatpush2.bf16.msra.mxu0 0
  %153 = vmatprep.subr.bf16.mxu0 0
  %154 = vmatpush2.bf16.msra.mxu0 0
  %155 = vmatprep.subr.bf16.mxu0 0
  %156 = vmatpush2.bf16.msra.mxu0 0
  %157 = vmatprep.subr.bf16.mxu0 0
  %158 = vmatpush2.bf16.msra.mxu0 0
  %159 = vmatprep.mubr.bf16.mxu0 0
  %160 = vmatmul.mubr.bf16.gmra.mxu0 %v97
  %v161 = vpop.f32.mrf.mxu0
  %v162 = vadd.f32 0.0, %v161
  %v163 = vpop.f32.mrf.mxu0
  %v164 = vpop.f32.mrf.mxu0
  %v165 = vadd.f32 0.0, %v164
  %v166 = vpop.f32.mrf.mxu0
  %167 = vmatprep.mubr.bf16.mxu0 0
  %168 = vmatmul.mubr.bf16.gmra.mxu0 %v100
  %v169 = vpop.f32.mrf.mxu0
  %v170 = vadd.f32 0.0, %v169
  %v171 = vpop.f32.mrf.mxu0
  %v172 = vpop.f32.mrf.mxu0
  %v173 = vadd.f32 0.0, %v172
  %v174 = vpop.f32.mrf.mxu0
  %175 = vmatprep.mubr.bf16.mxu0 0
  %176 = vmatmul.mubr.bf16.gmra.mxu0 %v103
  %v177 = vpop.f32.mrf.mxu0
  %v178 = vadd.f32 0.0, %v177
  %v179 = vpop.f32.mrf.mxu0
  %v180 = vpop.f32.mrf.mxu0
  %v181 = vadd.f32 0.0, %v180
  %v182 = vpop.f32.mrf.mxu0
  %183 = vmatprep.mubr.bf16.mxu0 0
  %184 = vmatmul.mubr.bf16.gmra.mxu0 %v106
  %v185 = vpop.f32.mrf.mxu0
  %v186 = vadd.f32 0.0, %v185
  %v187 = vpop.f32.mrf.mxu0
  %v188 = vpop.f32.mrf.mxu0
  %v189 = vadd.f32 0.0, %v188
  %v190 = vpop.f32.mrf.mxu0
  %191 = vmatprep.mubr.bf16.mxu0 0
  %192 = vmatmul.mubr.bf16.gmra.mxu0 %v109
  %v193 = vpop.f32.mrf.mxu0
  %v194 = vadd.f32 0.0, %v193
  %v195 = vpop.f32.mrf.mxu0
  %v196 = vpop.f32.mrf.mxu0
  %v197 = vadd.f32 0.0, %v196
  %v198 = vpop.f32.mrf.mxu0
  %199 = vmatprep.mubr.bf16.mxu0 0
  %200 = vmatmul.mubr.bf16.gmra.mxu0 %v112
  %v201 = vpop.f32.mrf.mxu0
  %v202 = vadd.f32 0.0, %v201
  %v203 = vpop.f32.mrf.mxu0
  %v204 = vpop.f32.mrf.mxu0
  %v205 = vadd.f32 0.0, %v204
  %v206 = vpop.f32.mrf.mxu0
  %207 = vmatprep.mubr.bf16.mxu0 0
  %208 = vmatmul.mubr.bf16.gmra.mxu0 %v115
  %v209 = vpop.f32.mrf.mxu0
  %v210 = vadd.f32 0.0, %v209
  %v211 = vpop.f32.mrf.mxu0
  %v212 = vpop.f32.mrf.mxu0
  %v213 = vadd.f32 0.0, %v212
  %v214 = vpop.f32.mrf.mxu0
  %215 = vmatprep.mubr.bf16.mxu0 0
  %216 = vmatmul.mubr.bf16.gmra.mxu0 %v118
  %v217 = vpop.f32.mrf.mxu0
  %v218 = vadd.f32 0.0, %v217
  %v219 = vpop.f32.mrf.mxu0
  %v220 = vpop.f32.mrf.mxu0
  %v221 = vadd.f32 0.0, %v220
  %v222 = vpop.f32.mrf.mxu0
  %223 = vdwg.mxu0
  %v224 = vmul.f32 %v162, %v25
  %v225 = vmul.f32 %v165, %v25
  %v226 = vmul.f32 %v170, %v25
  %v227 = vmul.f32 %v173, %v25
  %v228 = vmul.f32 %v178, %v25
  %v229 = vmul.f32 %v181, %v25
  %v230 = vmul.f32 %v186, %v25
  %v231 = vmul.f32 %v189, %v25
  %v232 = vmul.f32 %v194, %v25
  %v233 = vmul.f32 %v197, %v25
  %v234 = vmul.f32 %v202, %v25
  %v235 = vmul.f32 %v205, %v25
  %v236 = vmul.f32 %v210, %v25
  %v237 = vmul.f32 %v213, %v25
  %v238 = vmul.f32 %v218, %v25
  %v239 = vmul.f32 %v221, %v25
  %v240 = vadd.f32 %v224, %v32
  %v241 = vadd.f32 %v225, %v32
  %v242 = vadd.f32 %v226, %v32
  %v243 = vadd.f32 %v227, %v32
  %v244 = vadd.f32 %v228, %v32
  %v245 = vadd.f32 %v229, %v32
  %v246 = vadd.f32 %v230, %v32
  %v247 = vadd.f32 %v231, %v32
  %v248 = vadd.f32 %v232, %v32
  %v249 = vadd.f32 %v233, %v32
  %v250 = vadd.f32 %v234, %v32
  %v251 = vadd.f32 %v235, %v32
  %v252 = vadd.f32 %v236, %v32
  %v253 = vadd.f32 %v237, %v32
  %v254 = vadd.f32 %v238, %v32
  %v255 = vadd.f32 %v239, %v32
  %s256 = scalar_lea.vmem %s0, 64
  %v257 = vld [vmem:[%s256] sm:$0xf]
  %v258 = vld [vmem:[%s256 + $0x4] sm:$0xf]
  %v259 = vld [vmem:[%s256 + $0x8] sm:$0xf]
  %v260 = vld [vmem:[%s256 + $0xc] sm:$0xf]
  %v261 = vld [vmem:[%s256 + $0x10] sm:$0xf]
  %v262 = vld [vmem:[%s256 + $0x14] sm:$0xf]
  %v263 = vld [vmem:[%s256 + $0x18] sm:$0xf]
  %v264 = vld [vmem:[%s256 + $0x1c] sm:$0xf]
  %v265 = vld [vmem:[%s256 + $0x20] sm:$0xf]
  %v266 = vld [vmem:[%s256 + $0x24] sm:$0xf]
  %v267 = vld [vmem:[%s256 + $0x28] sm:$0xf]
  %v268 = vld [vmem:[%s256 + $0x2c] sm:$0xf]
  %v269 = vld [vmem:[%s256 + $0x30] sm:$0xf]
  %v270 = vld [vmem:[%s256 + $0x34] sm:$0xf]
  %v271 = vld [vmem:[%s256 + $0x38] sm:$0xf]
  %v272 = vld [vmem:[%s256 + $0x3c] sm:$0xf]
  %v289 = vunpack.c.l.b16 %v257
  %v290 = vunpack.c.l.b16 %v258
  %v291 = vunpack.c.l.b16 %v259
  %v292 = vunpack.c.l.b16 %v260
  %v293 = vunpack.c.l.b16 %v261
  %v294 = vunpack.c.l.b16 %v262
  %v295 = vunpack.c.l.b16 %v263
  %v296 = vunpack.c.l.b16 %v264
  %v297 = vunpack.c.l.b16 %v265
  %v298 = vunpack.c.l.b16 %v266
  %v299 = vunpack.c.l.b16 %v267
  %v300 = vunpack.c.l.b16 %v268
  %v301 = vunpack.c.l.b16 %v269
  %v302 = vunpack.c.l.b16 %v270
  %v303 = vunpack.c.l.b16 %v271
  %v304 = vunpack.c.l.b16 %v272
  %v305 = vpack.c.b16 %v290, %v289
  %v306 = vpack.c.b16 %v292, %v291
  %v307 = vpack.c.b16 %v294, %v293
  %v308 = vpack.c.b16 %v296, %v295
  %v309 = vpack.c.b16 %v298, %v297
  %v310 = vpack.c.b16 %v300, %v299
  %v311 = vpack.c.b16 %v302, %v301
  %v312 = vpack.c.b16 %v304, %v303
  %v314 = vsel %vm95, %v305, 0
  %v317 = vsel %vm95, %v306, 0
  %v320 = vsel %vm95, %v307, 0
  %v323 = vsel %vm95, %v308, 0
  %v326 = vsel %vm95, %v309, 0
  %v329 = vsel %vm95, %v310, 0
  %v332 = vsel %vm95, %v311, 0
  %v335 = vsel %vm95, %v312, 0
  %337 = vmatprep.subr.bf16.mxu0 0
  %338 = vmatpush1.bf16.msra.mxu0 0
  %339 = vmatprep.subr.bf16.mxu0 0
  %340 = vmatpush1.bf16.msra.mxu0 0
  %341 = vmatprep.subr.bf16.mxu0 0
  %342 = vmatpush1.bf16.msra.mxu0 0
  %343 = vmatprep.subr.bf16.mxu0 0
  %344 = vmatpush1.bf16.msra.mxu0 0
  %345 = vmatprep.subr.bf16.mxu0 0
  %346 = vmatpush1.bf16.msra.mxu0 0
  %347 = vmatprep.subr.bf16.mxu0 0
  %348 = vmatpush1.bf16.msra.mxu0 0
  %349 = vmatprep.subr.bf16.mxu0 0
  %350 = vmatpush1.bf16.msra.mxu0 0
  %351 = vmatprep.subr.bf16.mxu0 0
  %352 = vmatpush1.bf16.msra.mxu0 %v125
  %353 = vmatprep.subr.bf16.mxu0 0
  %354 = vmatpush2.bf16.msra.mxu0 0
  %355 = vmatprep.subr.bf16.mxu0 0
  %356 = vmatpush2.bf16.msra.mxu0 0
  %357 = vmatprep.subr.bf16.mxu0 0
  %358 = vmatpush2.bf16.msra.mxu0 0
  %359 = vmatprep.subr.bf16.mxu0 0
  %360 = vmatpush2.bf16.msra.mxu0 0
  %361 = vmatprep.subr.bf16.mxu0 0
  %362 = vmatpush2.bf16.msra.mxu0 0
  %363 = vmatprep.subr.bf16.mxu0 0
  %364 = vmatpush2.bf16.msra.mxu0 0
  %365 = vmatprep.subr.bf16.mxu0 0
  %366 = vmatpush2.bf16.msra.mxu0 0
  %367 = vmatprep.subr.bf16.mxu0 0
  %368 = vmatpush2.bf16.msra.mxu0 0
  %369 = vmatprep.mubr.bf16.mxu0 0
  %370 = vmatmul.mubr.bf16.gmra.mxu0 %v314
  %v371 = vpop.f32.mrf.mxu0
  %v372 = vadd.f32 0.0, %v371
  %v373 = vpop.f32.mrf.mxu0
  %v374 = vpop.f32.mrf.mxu0
  %v375 = vadd.f32 0.0, %v374
  %v376 = vpop.f32.mrf.mxu0
  %377 = vmatprep.mubr.bf16.mxu0 0
  %378 = vmatmul.mubr.bf16.gmra.mxu0 %v317
  %v379 = vpop.f32.mrf.mxu0
  %v380 = vadd.f32 0.0, %v379
  %v381 = vpop.f32.mrf.mxu0
  %v382 = vpop.f32.mrf.mxu0
  %v383 = vadd.f32 0.0, %v382
  %v384 = vpop.f32.mrf.mxu0
  %385 = vmatprep.mubr.bf16.mxu0 0
  %386 = vmatmul.mubr.bf16.gmra.mxu0 %v320
  %v387 = vpop.f32.mrf.mxu0
  %v388 = vadd.f32 0.0, %v387
  %v389 = vpop.f32.mrf.mxu0
  %v390 = vpop.f32.mrf.mxu0
  %v391 = vadd.f32 0.0, %v390
  %v392 = vpop.f32.mrf.mxu0
  %393 = vmatprep.mubr.bf16.mxu0 0
  %394 = vmatmul.mubr.bf16.gmra.mxu0 %v323
  %v395 = vpop.f32.mrf.mxu0
  %v396 = vadd.f32 0.0, %v395
  %v397 = vpop.f32.mrf.mxu0
  %v398 = vpop.f32.mrf.mxu0
  %v399 = vadd.f32 0.0, %v398
  %v400 = vpop.f32.mrf.mxu0
  %401 = vmatprep.mubr.bf16.mxu0 0
  %402 = vmatmul.mubr.bf16.gmra.mxu0 %v326
  %v403 = vpop.f32.mrf.mxu0
  %v404 = vadd.f32 0.0, %v403
  %v405 = vpop.f32.mrf.mxu0
  %v406 = vpop.f32.mrf.mxu0
  %v407 = vadd.f32 0.0, %v406
  %v408 = vpop.f32.mrf.mxu0
  %409 = vmatprep.mubr.bf16.mxu0 0
  %410 = vmatmul.mubr.bf16.gmra.mxu0 %v329
  %v411 = vpop.f32.mrf.mxu0
  %v412 = vadd.f32 0.0, %v411
  %v413 = vpop.f32.mrf.mxu0
  %v414 = vpop.f32.mrf.mxu0
  %v415 = vadd.f32 0.0, %v414
  %v416 = vpop.f32.mrf.mxu0
  %417 = vmatprep.mubr.bf16.mxu0 0
  %418 = vmatmul.mubr.bf16.gmra.mxu0 %v332
  %v419 = vpop.f32.mrf.mxu0
  %v420 = vadd.f32 0.0, %v419
  %v421 = vpop.f32.mrf.mxu0
  %v422 = vpop.f32.mrf.mxu0
  %v423 = vadd.f32 0.0, %v422
  %v424 = vpop.f32.mrf.mxu0
  %425 = vmatprep.mubr.bf16.mxu0 0
  %426 = vmatmul.mubr.bf16.gmra.mxu0 %v335
  %v427 = vpop.f32.mrf.mxu0
  %v428 = vadd.f32 0.0, %v427
  %v429 = vpop.f32.mrf.mxu0
  %v430 = vpop.f32.mrf.mxu0
  %v431 = vadd.f32 0.0, %v430
  %v432 = vpop.f32.mrf.mxu0
  %433 = vdwg.mxu0
  %v434 = vmul.f32 %v372, %v25
  %v435 = vmul.f32 %v375, %v25
  %v436 = vmul.f32 %v380, %v25
  %v437 = vmul.f32 %v383, %v25
  %v438 = vmul.f32 %v388, %v25
  %v439 = vmul.f32 %v391, %v25
  %v440 = vmul.f32 %v396, %v25
  %v441 = vmul.f32 %v399, %v25
  %v442 = vmul.f32 %v404, %v25
  %v443 = vmul.f32 %v407, %v25
  %v444 = vmul.f32 %v412, %v25
  %v445 = vmul.f32 %v415, %v25
  %v446 = vmul.f32 %v420, %v25
  %v447 = vmul.f32 %v423, %v25
  %v448 = vmul.f32 %v428, %v25
  %v449 = vmul.f32 %v431, %v25
  %v450 = vadd.f32 %v434, %v32
  %v451 = vadd.f32 %v435, %v32
  %v452 = vadd.f32 %v436, %v32
  %v453 = vadd.f32 %v437, %v32
  %v454 = vadd.f32 %v438, %v32
  %v455 = vadd.f32 %v439, %v32
  %v456 = vadd.f32 %v440, %v32
  %v457 = vadd.f32 %v441, %v32
  %v458 = vadd.f32 %v442, %v32
  %v459 = vadd.f32 %v443, %v32
  %v460 = vadd.f32 %v444, %v32
  %v461 = vadd.f32 %v445, %v32
  %v462 = vadd.f32 %v446, %v32
  %v463 = vadd.f32 %v447, %v32
  %v464 = vadd.f32 %v448, %v32
  %v465 = vadd.f32 %v449, %v32
  %v466 = vmax.f32 %v240, %v450
  %v467 = vmax.f32 %v241, %v451
  %v468 = vmax.f32 %v242, %v452
  %v469 = vmax.f32 %v243, %v453
  %v470 = vmax.f32 %v244, %v454
  %v471 = vmax.f32 %v245, %v455
  %v472 = vmax.f32 %v246, %v456
  %v473 = vmax.f32 %v247, %v457
  %v474 = vmax.f32 %v248, %v458
  %v475 = vmax.f32 %v249, %v459
  %v476 = vmax.f32 %v250, %v460
  %v477 = vmax.f32 %v251, %v461
  %v478 = vmax.f32 %v252, %v462
  %v479 = vmax.f32 %v253, %v463
  %v480 = vmax.f32 %v254, %v464
  %v481 = vmax.f32 %v255, %v465
  %s482 = scalar_lea.vmem %s0, 128
  %v483 = vld [vmem:[%s482] sm:$0xf]
  %v484 = vld [vmem:[%s482 + $0x4] sm:$0xf]
  %v485 = vld [vmem:[%s482 + $0x8] sm:$0xf]
  %v486 = vld [vmem:[%s482 + $0xc] sm:$0xf]
  %v487 = vld [vmem:[%s482 + $0x10] sm:$0xf]
  %v488 = vld [vmem:[%s482 + $0x14] sm:$0xf]
  %v489 = vld [vmem:[%s482 + $0x18] sm:$0xf]
  %v490 = vld [vmem:[%s482 + $0x1c] sm:$0xf]
  %v491 = vld [vmem:[%s482 + $0x20] sm:$0xf]
  %v492 = vld [vmem:[%s482 + $0x24] sm:$0xf]
  %v493 = vld [vmem:[%s482 + $0x28] sm:$0xf]
  %v494 = vld [vmem:[%s482 + $0x2c] sm:$0xf]
  %v495 = vld [vmem:[%s482 + $0x30] sm:$0xf]
  %v496 = vld [vmem:[%s482 + $0x34] sm:$0xf]
  %v497 = vld [vmem:[%s482 + $0x38] sm:$0xf]
  %v498 = vld [vmem:[%s482 + $0x3c] sm:$0xf]
  %v515 = vunpack.c.l.b16 %v483
  %v516 = vunpack.c.l.b16 %v484
  %v517 = vunpack.c.l.b16 %v485
  %v518 = vunpack.c.l.b16 %v486
  %v519 = vunpack.c.l.b16 %v487
  %v520 = vunpack.c.l.b16 %v488
  %v521 = vunpack.c.l.b16 %v489
  %v522 = vunpack.c.l.b16 %v490
  %v523 = vunpack.c.l.b16 %v491
  %v524 = vunpack.c.l.b16 %v492
  %v525 = vunpack.c.l.b16 %v493
  %v526 = vunpack.c.l.b16 %v494
  %v527 = vunpack.c.l.b16 %v495
  %v528 = vunpack.c.l.b16 %v496
  %v529 = vunpack.c.l.b16 %v497
  %v530 = vunpack.c.l.b16 %v498
  %v531 = vpack.c.b16 %v516, %v515
  %v532 = vpack.c.b16 %v518, %v517
  %v533 = vpack.c.b16 %v520, %v519
  %v534 = vpack.c.b16 %v522, %v521
  %v535 = vpack.c.b16 %v524, %v523
  %v536 = vpack.c.b16 %v526, %v525
  %v537 = vpack.c.b16 %v528, %v527
  %v538 = vpack.c.b16 %v530, %v529
  %v540 = vsel %vm95, %v531, 0
  %v543 = vsel %vm95, %v532, 0
  %v546 = vsel %vm95, %v533, 0
  %v549 = vsel %vm95, %v534, 0
  %v552 = vsel %vm95, %v535, 0
  %v555 = vsel %vm95, %v536, 0
  %v558 = vsel %vm95, %v537, 0
  %v561 = vsel %vm95, %v538, 0
  %563 = vmatprep.subr.bf16.mxu0 0
  %564 = vmatpush1.bf16.msra.mxu0 0
  %565 = vmatprep.subr.bf16.mxu0 0
  %566 = vmatpush1.bf16.msra.mxu0 0
  %567 = vmatprep.subr.bf16.mxu0 0
  %568 = vmatpush1.bf16.msra.mxu0 0
  %569 = vmatprep.subr.bf16.mxu0 0
  %570 = vmatpush1.bf16.msra.mxu0 0
  %571 = vmatprep.subr.bf16.mxu0 0
  %572 = vmatpush1.bf16.msra.mxu0 0
  %573 = vmatprep.subr.bf16.mxu0 0
  %574 = vmatpush1.bf16.msra.mxu0 0
  %575 = vmatprep.subr.bf16.mxu0 0
  %576 = vmatpush1.bf16.msra.mxu0 0
  %577 = vmatprep.subr.bf16.mxu0 0
  %578 = vmatpush1.bf16.msra.mxu0 %v125
  %579 = vmatprep.subr.bf16.mxu0 0
  %580 = vmatpush2.bf16.msra.mxu0 0
  %581 = vmatprep.subr.bf16.mxu0 0
  %582 = vmatpush2.bf16.msra.mxu0 0
  %583 = vmatprep.subr.bf16.mxu0 0
  %584 = vmatpush2.bf16.msra.mxu0 0
  %585 = vmatprep.subr.bf16.mxu0 0
  %586 = vmatpush2.bf16.msra.mxu0 0
  %587 = vmatprep.subr.bf16.mxu0 0
  %588 = vmatpush2.bf16.msra.mxu0 0
  %589 = vmatprep.subr.bf16.mxu0 0
  %590 = vmatpush2.bf16.msra.mxu0 0
  %591 = vmatprep.subr.bf16.mxu0 0
  %592 = vmatpush2.bf16.msra.mxu0 0
  %593 = vmatprep.subr.bf16.mxu0 0
  %594 = vmatpush2.bf16.msra.mxu0 0
  %595 = vmatprep.mubr.bf16.mxu0 0
  %596 = vmatmul.mubr.bf16.gmra.mxu0 %v540
  %v597 = vpop.f32.mrf.mxu0
  %v598 = vadd.f32 0.0, %v597
  %v599 = vpop.f32.mrf.mxu0
  %v600 = vpop.f32.mrf.mxu0
  %v601 = vadd.f32 0.0, %v600
  %v602 = vpop.f32.mrf.mxu0
  %603 = vmatprep.mubr.bf16.mxu0 0
  %604 = vmatmul.mubr.bf16.gmra.mxu0 %v543
  %v605 = vpop.f32.mrf.mxu0
  %v606 = vadd.f32 0.0, %v605
  %v607 = vpop.f32.mrf.mxu0
  %v608 = vpop.f32.mrf.mxu0
  %v609 = vadd.f32 0.0, %v608
  %v610 = vpop.f32.mrf.mxu0
  %611 = vmatprep.mubr.bf16.mxu0 0
  %612 = vmatmul.mubr.bf16.gmra.mxu0 %v546
  %v613 = vpop.f32.mrf.mxu0
  %v614 = vadd.f32 0.0, %v613
  %v615 = vpop.f32.mrf.mxu0
  %v616 = vpop.f32.mrf.mxu0
  %v617 = vadd.f32 0.0, %v616
  %v618 = vpop.f32.mrf.mxu0
  %619 = vmatprep.mubr.bf16.mxu0 0
  %620 = vmatmul.mubr.bf16.gmra.mxu0 %v549
  %v621 = vpop.f32.mrf.mxu0
  %v622 = vadd.f32 0.0, %v621
  %v623 = vpop.f32.mrf.mxu0
  %v624 = vpop.f32.mrf.mxu0
  %v625 = vadd.f32 0.0, %v624
  %v626 = vpop.f32.mrf.mxu0
  %627 = vmatprep.mubr.bf16.mxu0 0
  %628 = vmatmul.mubr.bf16.gmra.mxu0 %v552
  %v629 = vpop.f32.mrf.mxu0
  %v630 = vadd.f32 0.0, %v629
  %v631 = vpop.f32.mrf.mxu0
  %v632 = vpop.f32.mrf.mxu0
  %v633 = vadd.f32 0.0, %v632
  %v634 = vpop.f32.mrf.mxu0
  %635 = vmatprep.mubr.bf16.mxu0 0
  %636 = vmatmul.mubr.bf16.gmra.mxu0 %v555
  %v637 = vpop.f32.mrf.mxu0
  %v638 = vadd.f32 0.0, %v637
  %v639 = vpop.f32.mrf.mxu0
  %v640 = vpop.f32.mrf.mxu0
  %v641 = vadd.f32 0.0, %v640
  %v642 = vpop.f32.mrf.mxu0
  %643 = vmatprep.mubr.bf16.mxu0 0
  %644 = vmatmul.mubr.bf16.gmra.mxu0 %v558
  %v645 = vpop.f32.mrf.mxu0
  %v646 = vadd.f32 0.0, %v645
  %v647 = vpop.f32.mrf.mxu0
  %v648 = vpop.f32.mrf.mxu0
  %v649 = vadd.f32 0.0, %v648
  %v650 = vpop.f32.mrf.mxu0
  %651 = vmatprep.mubr.bf16.mxu0 0
  %652 = vmatmul.mubr.bf16.gmra.mxu0 %v561
  %v653 = vpop.f32.mrf.mxu0
  %v654 = vadd.f32 0.0, %v653
  %v655 = vpop.f32.mrf.mxu0
  %v656 = vpop.f32.mrf.mxu0
  %v657 = vadd.f32 0.0, %v656
  %v658 = vpop.f32.mrf.mxu0
  %659 = vdwg.mxu0
  %v660 = vmul.f32 %v598, %v25
  %v661 = vmul.f32 %v601, %v25
  %v662 = vmul.f32 %v606, %v25
  %v663 = vmul.f32 %v609, %v25
  %v664 = vmul.f32 %v614, %v25
  %v665 = vmul.f32 %v617, %v25
  %v666 = vmul.f32 %v622, %v25
  %v667 = vmul.f32 %v625, %v25
  %v668 = vmul.f32 %v630, %v25
  %v669 = vmul.f32 %v633, %v25
  %v670 = vmul.f32 %v638, %v25
  %v671 = vmul.f32 %v641, %v25
  %v672 = vmul.f32 %v646, %v25
  %v673 = vmul.f32 %v649, %v25
  %v674 = vmul.f32 %v654, %v25
  %v675 = vmul.f32 %v657, %v25
  %v676 = vadd.f32 %v660, %v32
  %v677 = vadd.f32 %v661, %v32
  %v678 = vadd.f32 %v662, %v32
  %v679 = vadd.f32 %v663, %v32
  %v680 = vadd.f32 %v664, %v32
  %v681 = vadd.f32 %v665, %v32
  %v682 = vadd.f32 %v666, %v32
  %v683 = vadd.f32 %v667, %v32
  %v684 = vadd.f32 %v668, %v32
  %v685 = vadd.f32 %v669, %v32
  %v686 = vadd.f32 %v670, %v32
  %v687 = vadd.f32 %v671, %v32
  %v688 = vadd.f32 %v672, %v32
  %v689 = vadd.f32 %v673, %v32
  %v690 = vadd.f32 %v674, %v32
  %v691 = vadd.f32 %v675, %v32
  %v692 = vmax.f32 %v466, %v676
  %v693 = vmax.f32 %v467, %v677
  %v694 = vmax.f32 %v468, %v678
  %v695 = vmax.f32 %v469, %v679
  %v696 = vmax.f32 %v470, %v680
  %v697 = vmax.f32 %v471, %v681
  %v698 = vmax.f32 %v472, %v682
  %v699 = vmax.f32 %v473, %v683
  %v700 = vmax.f32 %v474, %v684
  %v701 = vmax.f32 %v475, %v685
  %v702 = vmax.f32 %v476, %v686
  %v703 = vmax.f32 %v477, %v687
  %v704 = vmax.f32 %v478, %v688
  %v705 = vmax.f32 %v479, %v689
  %v706 = vmax.f32 %v480, %v690
  %v707 = vmax.f32 %v481, %v691
  %s708 = scalar_lea.vmem %s0, 192
  %v709 = vld [vmem:[%s708] sm:$0xf]
  %v710 = vld [vmem:[%s708 + $0x4] sm:$0xf]
  %v711 = vld [vmem:[%s708 + $0x8] sm:$0xf]
  %v712 = vld [vmem:[%s708 + $0xc] sm:$0xf]
  %v713 = vld [vmem:[%s708 + $0x10] sm:$0xf]
  %v714 = vld [vmem:[%s708 + $0x14] sm:$0xf]
  %v715 = vld [vmem:[%s708 + $0x18] sm:$0xf]
  %v716 = vld [vmem:[%s708 + $0x1c] sm:$0xf]
  %v717 = vld [vmem:[%s708 + $0x20] sm:$0xf]
  %v718 = vld [vmem:[%s708 + $0x24] sm:$0xf]
  %v719 = vld [vmem:[%s708 + $0x28] sm:$0xf]
  %v720 = vld [vmem:[%s708 + $0x2c] sm:$0xf]
  %v721 = vld [vmem:[%s708 + $0x30] sm:$0xf]
  %v722 = vld [vmem:[%s708 + $0x34] sm:$0xf]
  %v723 = vld [vmem:[%s708 + $0x38] sm:$0xf]
  %v724 = vld [vmem:[%s708 + $0x3c] sm:$0xf]
  %v741 = vunpack.c.l.b16 %v709
  %v742 = vunpack.c.l.b16 %v710
  %v743 = vunpack.c.l.b16 %v711
  %v744 = vunpack.c.l.b16 %v712
  %v745 = vunpack.c.l.b16 %v713
  %v746 = vunpack.c.l.b16 %v714
  %v747 = vunpack.c.l.b16 %v715
  %v748 = vunpack.c.l.b16 %v716
  %v749 = vunpack.c.l.b16 %v717
  %v750 = vunpack.c.l.b16 %v718
  %v751 = vunpack.c.l.b16 %v719
  %v752 = vunpack.c.l.b16 %v720
  %v753 = vunpack.c.l.b16 %v721
  %v754 = vunpack.c.l.b16 %v722
  %v755 = vunpack.c.l.b16 %v723
  %v756 = vunpack.c.l.b16 %v724
  %v757 = vpack.c.b16 %v742, %v741
  %v758 = vpack.c.b16 %v744, %v743
  %v759 = vpack.c.b16 %v746, %v745
  %v760 = vpack.c.b16 %v748, %v747
  %v761 = vpack.c.b16 %v750, %v749
  %v762 = vpack.c.b16 %v752, %v751
  %v763 = vpack.c.b16 %v754, %v753
  %v764 = vpack.c.b16 %v756, %v755
  %v766 = vsel %vm95, %v757, 0
  %v769 = vsel %vm95, %v758, 0
  %v772 = vsel %vm95, %v759, 0
  %v775 = vsel %vm95, %v760, 0
  %v778 = vsel %vm95, %v761, 0
  %v781 = vsel %vm95, %v762, 0
  %v784 = vsel %vm95, %v763, 0
  %v787 = vsel %vm95, %v764, 0
  %789 = vmatprep.subr.bf16.mxu0 0
  %790 = vmatpush1.bf16.msra.mxu0 0
  %791 = vmatprep.subr.bf16.mxu0 0
  %792 = vmatpush1.bf16.msra.mxu0 0
  %793 = vmatprep.subr.bf16.mxu0 0
  %794 = vmatpush1.bf16.msra.mxu0 0
  %795 = vmatprep.subr.bf16.mxu0 0
  %796 = vmatpush1.bf16.msra.mxu0 0
  %797 = vmatprep.subr.bf16.mxu0 0
  %798 = vmatpush1.bf16.msra.mxu0 0
  %799 = vmatprep.subr.bf16.mxu0 0
  %800 = vmatpush1.bf16.msra.mxu0 0
  %801 = vmatprep.subr.bf16.mxu0 0
  %802 = vmatpush1.bf16.msra.mxu0 0
  %803 = vmatprep.subr.bf16.mxu0 0
  %804 = vmatpush1.bf16.msra.mxu0 %v125
  %805 = vmatprep.subr.bf16.mxu0 0
  %806 = vmatpush2.bf16.msra.mxu0 0
  %807 = vmatprep.subr.bf16.mxu0 0
  %808 = vmatpush2.bf16.msra.mxu0 0
  %809 = vmatprep.subr.bf16.mxu0 0
  %810 = vmatpush2.bf16.msra.mxu0 0
  %811 = vmatprep.subr.bf16.mxu0 0
  %812 = vmatpush2.bf16.msra.mxu0 0
  %813 = vmatprep.subr.bf16.mxu0 0
  %814 = vmatpush2.bf16.msra.mxu0 0
  %815 = vmatprep.subr.bf16.mxu0 0
  %816 = vmatpush2.bf16.msra.mxu0 0
  %817 = vmatprep.subr.bf16.mxu0 0
  %818 = vmatpush2.bf16.msra.mxu0 0
  %819 = vmatprep.subr.bf16.mxu0 0
  %820 = vmatpush2.bf16.msra.mxu0 0
  %821 = vmatprep.mubr.bf16.mxu0 0
  %822 = vmatmul.mubr.bf16.gmra.mxu0 %v766
  %v823 = vpop.f32.mrf.mxu0
  %v824 = vadd.f32 0.0, %v823
  %v825 = vpop.f32.mrf.mxu0
  %v826 = vpop.f32.mrf.mxu0
  %v827 = vadd.f32 0.0, %v826
  %v828 = vpop.f32.mrf.mxu0
  %829 = vmatprep.mubr.bf16.mxu0 0
  %830 = vmatmul.mubr.bf16.gmra.mxu0 %v769
  %v831 = vpop.f32.mrf.mxu0
  %v832 = vadd.f32 0.0, %v831
  %v833 = vpop.f32.mrf.mxu0
  %v834 = vpop.f32.mrf.mxu0
  %v835 = vadd.f32 0.0, %v834
  %v836 = vpop.f32.mrf.mxu0
  %837 = vmatprep.mubr.bf16.mxu0 0
  %838 = vmatmul.mubr.bf16.gmra.mxu0 %v772
  %v839 = vpop.f32.mrf.mxu0
  %v840 = vadd.f32 0.0, %v839
  %v841 = vpop.f32.mrf.mxu0
  %v842 = vpop.f32.mrf.mxu0
  %v843 = vadd.f32 0.0, %v842
  %v844 = vpop.f32.mrf.mxu0
  %845 = vmatprep.mubr.bf16.mxu0 0
  %846 = vmatmul.mubr.bf16.gmra.mxu0 %v775
  %v847 = vpop.f32.mrf.mxu0
  %v848 = vadd.f32 0.0, %v847
  %v849 = vpop.f32.mrf.mxu0
  %v850 = vpop.f32.mrf.mxu0
  %v851 = vadd.f32 0.0, %v850
  %v852 = vpop.f32.mrf.mxu0
  %853 = vmatprep.mubr.bf16.mxu0 0
  %854 = vmatmul.mubr.bf16.gmra.mxu0 %v778
  %v855 = vpop.f32.mrf.mxu0
  %v856 = vadd.f32 0.0, %v855
  %v857 = vpop.f32.mrf.mxu0
  %v858 = vpop.f32.mrf.mxu0
  %v859 = vadd.f32 0.0, %v858
  %v860 = vpop.f32.mrf.mxu0
  %861 = vmatprep.mubr.bf16.mxu0 0
  %862 = vmatmul.mubr.bf16.gmra.mxu0 %v781
  %v863 = vpop.f32.mrf.mxu0
  %v864 = vadd.f32 0.0, %v863
  %v865 = vpop.f32.mrf.mxu0
  %v866 = vpop.f32.mrf.mxu0
  %v867 = vadd.f32 0.0, %v866
  %v868 = vpop.f32.mrf.mxu0
  %869 = vmatprep.mubr.bf16.mxu0 0
  %870 = vmatmul.mubr.bf16.gmra.mxu0 %v784
  %v871 = vpop.f32.mrf.mxu0
  %v872 = vadd.f32 0.0, %v871
  %v873 = vpop.f32.mrf.mxu0
  %v874 = vpop.f32.mrf.mxu0
  %v875 = vadd.f32 0.0, %v874
  %v876 = vpop.f32.mrf.mxu0
  %877 = vmatprep.mubr.bf16.mxu0 0
  %878 = vmatmul.mubr.bf16.gmra.mxu0 %v787
  %v879 = vpop.f32.mrf.mxu0
  %v880 = vadd.f32 0.0, %v879
  %v881 = vpop.f32.mrf.mxu0
  %v882 = vpop.f32.mrf.mxu0
  %v883 = vadd.f32 0.0, %v882
  %v884 = vpop.f32.mrf.mxu0
  %885 = vdwg.mxu0
  %v886 = vmul.f32 %v824, %v25
  %v887 = vmul.f32 %v827, %v25
  %v888 = vmul.f32 %v832, %v25
  %v889 = vmul.f32 %v835, %v25
  %v890 = vmul.f32 %v840, %v25
  %v891 = vmul.f32 %v843, %v25
  %v892 = vmul.f32 %v848, %v25
  %v893 = vmul.f32 %v851, %v25
  %v894 = vmul.f32 %v856, %v25
  %v895 = vmul.f32 %v859, %v25
  %v896 = vmul.f32 %v864, %v25
  %v897 = vmul.f32 %v867, %v25
  %v898 = vmul.f32 %v872, %v25
  %v899 = vmul.f32 %v875, %v25
  %v900 = vmul.f32 %v880, %v25
  %v901 = vmul.f32 %v883, %v25
  %v902 = vadd.f32 %v886, %v32
  %v903 = vadd.f32 %v887, %v32
  %v904 = vadd.f32 %v888, %v32
  %v905 = vadd.f32 %v889, %v32
  %v906 = vadd.f32 %v890, %v32
  %v907 = vadd.f32 %v891, %v32
  %v908 = vadd.f32 %v892, %v32
  %v909 = vadd.f32 %v893, %v32
  %v910 = vadd.f32 %v894, %v32
  %v911 = vadd.f32 %v895, %v32
  %v912 = vadd.f32 %v896, %v32
  %v913 = vadd.f32 %v897, %v32
  %v914 = vadd.f32 %v898, %v32
  %v915 = vadd.f32 %v899, %v32
  %v916 = vadd.f32 %v900, %v32
  %v917 = vadd.f32 %v901, %v32
  %v918 = vmax.f32 %v692, %v902
  %v919 = vmax.f32 %v693, %v903
  %v920 = vmax.f32 %v694, %v904
  %v921 = vmax.f32 %v695, %v905
  %v922 = vmax.f32 %v696, %v906
  %v923 = vmax.f32 %v697, %v907
  %v924 = vmax.f32 %v698, %v908
  %v925 = vmax.f32 %v699, %v909
  %v926 = vmax.f32 %v700, %v910
  %v927 = vmax.f32 %v701, %v911
  %v928 = vmax.f32 %v702, %v912
  %v929 = vmax.f32 %v703, %v913
  %v930 = vmax.f32 %v704, %v914
  %v931 = vmax.f32 %v705, %v915
  %v932 = vmax.f32 %v706, %v916
  %v933 = vmax.f32 %v707, %v917
  %v934 = vmax.f32 %v918, 0.0
  %v935 = vmax.f32 %v919, 0.0
  %v936 = vmax.f32 %v920, 0.0
  %v937 = vmax.f32 %v921, 0.0
  %v938 = vmax.f32 %v922, 0.0
  %v939 = vmax.f32 %v923, 0.0
  %v940 = vmax.f32 %v924, 0.0
  %v941 = vmax.f32 %v925, 0.0
  %v942 = vmax.f32 %v926, 0.0
  %v943 = vmax.f32 %v927, 0.0
  %v944 = vmax.f32 %v928, 0.0
  %v945 = vmax.f32 %v929, 0.0
  %v946 = vmax.f32 %v930, 0.0
  %v947 = vmax.f32 %v931, 0.0
  %v948 = vmax.f32 %v932, 0.0
  %v949 = vmax.f32 %v933, 0.0
  %vm950 = vcmask 261120
  %951 = vst.msk [vmem:[%s4] sm:$0xff] %vm950, %v934
  %952 = vst.msk [vmem:[%s4 + $0x8] sm:$0xff] %vm950, %v935
  %953 = vst.msk [vmem:[%s4 + $0x10] sm:$0xff] %vm950, %v936
  %954 = vst.msk [vmem:[%s4 + $0x18] sm:$0xff] %vm950, %v937
  %955 = vst.msk [vmem:[%s4 + $0x20] sm:$0xff] %vm950, %v938
  %956 = vst.msk [vmem:[%s4 + $0x28] sm:$0xff] %vm950, %v939
  %957 = vst.msk [vmem:[%s4 + $0x30] sm:$0xff] %vm950, %v940
  %958 = vst.msk [vmem:[%s4 + $0x38] sm:$0xff] %vm950, %v941
  %959 = vst.msk [vmem:[%s4 + $0x40] sm:$0xff] %vm950, %v942
  %960 = vst.msk [vmem:[%s4 + $0x48] sm:$0xff] %vm950, %v943
  %961 = vst.msk [vmem:[%s4 + $0x50] sm:$0xff] %vm950, %v944
  %962 = vst.msk [vmem:[%s4 + $0x58] sm:$0xff] %vm950, %v945
  %963 = vst.msk [vmem:[%s4 + $0x60] sm:$0xff] %vm950, %v946
  %964 = vst.msk [vmem:[%s4 + $0x68] sm:$0xff] %vm950, %v947
  %965 = vst.msk [vmem:[%s4 + $0x70] sm:$0xff] %vm950, %v948
  %966 = vst.msk [vmem:[%s4 + $0x78] sm:$0xff] %vm950, %v949
  // Predicated region
  $region18: #{simple_cnn_forward.4} parent=0 // pred_check
    _
  $region19: #{simple_cnn_forward.4} parent=0 // pred_check_branch
    %968 = sbr.rel (0) target = $region21
  $region20: #{simple_cnn_forward.4} parent=0 // pred_region
    _
  $region21: #{simple_cnn_forward.4} parent=0 // pred_fallthru
    _
  // Predicated region
  $region22: #{simple_cnn_forward.4} parent=0 // pred_check
    _
  $region23: #{simple_cnn_forward.4} parent=0 // pred_check_branch
    %970 = sbr.rel (0) target = $region25
  $region24: #{simple_cnn_forward.4} parent=0 // pred_region
    _
  $region25: #{simple_cnn_forward.4} parent=0 // pred_fallthru
    _

// kernel: simple_cnn_forward.5
$region0: #{simple_cnn_forward.5}
  #allocation0 [shape = 'u32[]', space=smem, size = 0x4, offset = 0x4, fixed_abs, tag = 'smem constant byte address 0x4 - core index']
  #allocation1 [shape = 'u32[144,128]{1,0:T(1,128)}', space=vmem, size = 0x12000, scoped, tag = 'internal scratch']
  %s0 = inlined_call_operand.vmem [shape: bf16[4,32,288], index: 0, kind: input, shape index: {}]
  %s1 = inlined_call_operand.vmem [shape: bf16[288,64], index: 1, kind: input, shape index: {}]
  %s2 = inlined_call_operand.vmem [shape: f32[1,64], index: 2, kind: input, shape index: {}]
  %s3 = inlined_call_operand.vmem [shape: f32[1,64], index: 3, kind: input, shape index: {}]
  %s4 = inlined_call_operand.vmem [shape: f32[32,64], index: 4, kind: output, shape index: {}]
  %s5 = sld [smem:[#allocation0]]
  $region26: #{simple_cnn_forward.5} parent=0
    _
  %s7 = ssub.s32 1, %s5
  %s8 = scalar_select 0, %s7, %s5
  // Predicated region
  $region2: #{simple_cnn_forward.5} parent=0 // pred_check
    _
  $region3: #{simple_cnn_forward.5} parent=0 // pred_check_branch
    %10 = sbr.rel (0) target = $region5
  $region4: #{simple_cnn_forward.5} parent=0 // pred_region
    _
  $region5: #{simple_cnn_forward.5} parent=0 // pred_fallthru
    _
  // Predicated region
  $region6: #{simple_cnn_forward.5} parent=0 // pred_check
    _
  $region7: #{simple_cnn_forward.5} parent=0 // pred_check_branch
    %12 = sbr.rel (0) target = $region9
  $region8: #{simple_cnn_forward.5} parent=0 // pred_region
    _
  $region9: #{simple_cnn_forward.5} parent=0 // pred_fallthru
    _
  // Predicated region
  $region10: #{simple_cnn_forward.5} parent=0 // pred_check
    _
  $region11: #{simple_cnn_forward.5} parent=0 // pred_check_branch
    %14 = sbr.rel (0) target = $region13
  $region12: #{simple_cnn_forward.5} parent=0 // pred_region
    _
  $region13: #{simple_cnn_forward.5} parent=0 // pred_fallthru
    _
  // Predicated region
  $region14: #{simple_cnn_forward.5} parent=0 // pred_check
    _
  $region15: #{simple_cnn_forward.5} parent=0 // pred_check_branch
    %16 = sbr.rel (0) target = $region17
  $region16: #{simple_cnn_forward.5} parent=0 // pred_region
    _
  $region17: #{simple_cnn_forward.5} parent=0 // pred_fallthru
    _
  %v18 = vld [vmem:[%s1] sm:$0xf]
  %v19 = vld [vmem:[%s1 + $0x4] sm:$0xf]
  %v20 = vld [vmem:[%s1 + $0x8] sm:$0xf]
  %v21 = vld [vmem:[%s1 + $0xc] sm:$0xf]
  %v22 = vld [vmem:[%s1 + $0x10] sm:$0xf]
  %v23 = vld [vmem:[%s1 + $0x14] sm:$0xf]
  %v24 = vld [vmem:[%s1 + $0x18] sm:$0xf]
  %v25 = vld [vmem:[%s1 + $0x1c] sm:$0xf]
  %v26 = vld [vmem:[%s1 + $0x20] sm:$0xf]
  %v27 = vld [vmem:[%s1 + $0x24] sm:$0xf]
  %v28 = vld [vmem:[%s1 + $0x28] sm:$0xf]
  %v29 = vld [vmem:[%s1 + $0x2c] sm:$0xf]
  %v30 = vld [vmem:[%s1 + $0x30] sm:$0xf]
  %v31 = vld [vmem:[%s1 + $0x34] sm:$0xf]
  %v32 = vld [vmem:[%s1 + $0x38] sm:$0xf]
  %v33 = vld [vmem:[%s1 + $0x3c] sm:$0xf]
  %v34 = vld [vmem:[%s1 + $0x40] sm:$0xf]
  %v35 = vld [vmem:[%s1 + $0x44] sm:$0xf]
  %v36 = vld [vmem:[%s1 + $0x48] sm:$0xf]
  %v37 = vld [vmem:[%s1 + $0x4c] sm:$0xf]
  %v38 = vld [vmem:[%s1 + $0x50] sm:$0xf]
  %v39 = vld [vmem:[%s1 + $0x54] sm:$0xf]
  %v40 = vld [vmem:[%s1 + $0x58] sm:$0xf]
  %v41 = vld [vmem:[%s1 + $0x5c] sm:$0xf]
  %v42 = vld [vmem:[%s1 + $0x60] sm:$0xf]
  %v43 = vld [vmem:[%s1 + $0x64] sm:$0xf]
  %v44 = vld [vmem:[%s1 + $0x68] sm:$0xf]
  %v45 = vld [vmem:[%s1 + $0x6c] sm:$0xf]
  %v46 = vld [vmem:[%s1 + $0x70] sm:$0xf]
  %v47 = vld [vmem:[%s1 + $0x74] sm:$0xf]
  %v48 = vld [vmem:[%s1 + $0x78] sm:$0xf]
  %v49 = vld [vmem:[%s1 + $0x7c] sm:$0xf]
  %v50 = vld [vmem:[%s1 + $0x80] sm:$0xf]
  %v51 = vld [vmem:[%s1 + $0x84] sm:$0xf]
  %v52 = vld [vmem:[%s1 + $0x88] sm:$0xf]
  %v53 = vld [vmem:[%s1 + $0x8c] sm:$0xf]
  %v54 = vld [vmem:[%s2] sm:$0x1]
  %v56 = vlaneseq
  %v57 = vshrl.u32 %v56, 7
  %v58 = vsub.s32 0, %v57
  %v59 = vrot.slane %v54, %v58
  %v61 = vld [vmem:[%s3] sm:$0x1]
  %v63 = vlaneseq
  %v64 = vshrl.u32 %v63, 7
  %v65 = vsub.s32 0, %v64
  %v66 = vrot.slane %v61, %v65
  %v68 = vld [vmem:[%s0] sm:$0xff]
  %v69 = vld [vmem:[%s0 + $0x8] sm:$0xf]
  %v70 = vld [vmem:[%s0 + $0xc] sm:$0xff]
  %v71 = vld [vmem:[%s0 + $0x14] sm:$0xf]
  %v72 = vld [vmem:[%s0 + $0x18] sm:$0xff]
  %v73 = vld [vmem:[%s0 + $0x20] sm:$0xf]
  %v74 = vld [vmem:[%s0 + $0x24] sm:$0xff]
  %v75 = vld [vmem:[%s0 + $0x2c] sm:$0xf]
  %v84 = vunpack.c.l.b16 %v68
  %v85 = vunpack.c.h.b16 %v68
  %v86 = vunpack.c.l.b16 %v69
  %v87 = vunpack.c.l.b16 %v70
  %v88 = vunpack.c.h.b16 %v70
  %v89 = vunpack.c.l.b16 %v71
  %v90 = vunpack.c.l.b16 %v72
  %v91 = vunpack.c.h.b16 %v72
  %v92 = vunpack.c.l.b16 %v73
  %v93 = vunpack.c.l.b16 %v74
  %v94 = vunpack.c.h.b16 %v74
  %v95 = vunpack.c.l.b16 %v75
  %v96 = vpack.c.b16 %v87, %v84
  %v97 = vpack.c.b16 %v88, %v85
  %v98 = vpack.c.b16 %v89, %v86
  %v99 = vpack.c.b16 %v93, %v90
  %v100 = vpack.c.b16 %v94, %v91
  %v101 = vpack.c.b16 %v95, %v92
  %v142 = vunpack.c.l.b16 %v18
  %v143 = vunpack.c.l.b16 %v19
  %v144 = vunpack.c.l.b16 %v20
  %v145 = vunpack.c.l.b16 %v21
  %v146 = vunpack.c.l.b16 %v22
  %v147 = vunpack.c.l.b16 %v23
  %v148 = vunpack.c.l.b16 %v24
  %v149 = vunpack.c.l.b16 %v25
  %v150 = vunpack.c.l.b16 %v26
  %v151 = vunpack.c.l.b16 %v27
  %v152 = vunpack.c.l.b16 %v28
  %v153 = vunpack.c.l.b16 %v29
  %v154 = vunpack.c.l.b16 %v30
  %v155 = vunpack.c.l.b16 %v31
  %v156 = vunpack.c.l.b16 %v32
  %v157 = vunpack.c.l.b16 %v33
  %v158 = vunpack.c.l.b16 %v34
  %v159 = vunpack.c.l.b16 %v35
  %v160 = vunpack.c.l.b16 %v36
  %v161 = vunpack.c.l.b16 %v37
  %v162 = vunpack.c.l.b16 %v38
  %v163 = vunpack.c.l.b16 %v39
  %v164 = vunpack.c.l.b16 %v40
  %v165 = vunpack.c.l.b16 %v41
  %v166 = vunpack.c.l.b16 %v42
  %v167 = vunpack.c.l.b16 %v43
  %v168 = vunpack.c.l.b16 %v44
  %v169 = vunpack.c.l.b16 %v45
  %v170 = vunpack.c.l.b16 %v46
  %v171 = vunpack.c.l.b16 %v47
  %v172 = vunpack.c.l.b16 %v48
  %v173 = vunpack.c.l.b16 %v49
  %v174 = vunpack.c.l.b16 %v50
  %v175 = vunpack.c.l.b16 %v51
  %v176 = vunpack.c.l.b16 %v52
  %v177 = vunpack.c.l.b16 %v53
  %v178 = vpack.c.b16 %v143, %v142
  %v179 = vpack.c.b16 %v145, %v144
  %v180 = vpack.c.b16 %v147, %v146
  %v181 = vpack.c.b16 %v149, %v148
  %v182 = vpack.c.b16 %v151, %v150
  %v183 = vpack.c.b16 %v153, %v152
  %v184 = vpack.c.b16 %v155, %v154
  %v185 = vpack.c.b16 %v157, %v156
  %v186 = vpack.c.b16 %v159, %v158
  %v187 = vpack.c.b16 %v161, %v160
  %v188 = vpack.c.b16 %v163, %v162
  %v189 = vpack.c.b16 %v165, %v164
  %v190 = vpack.c.b16 %v167, %v166
  %v191 = vpack.c.b16 %v169, %v168
  %v192 = vpack.c.b16 %v171, %v170
  %v193 = vpack.c.b16 %v173, %v172
  %v194 = vpack.c.b16 %v175, %v174
  %v195 = vpack.c.b16 %v177, %v176
  %vm214 = vcmask 261120
  %v216 = vsel %vm214, %v98, 0
  %v219 = vsel %vm214, %v101, 0
  %221 = vmatprep.subr.bf16.mxu0 0
  %222 = vmatpush1.bf16.msra.mxu0 %v185
  %223 = vmatprep.subr.bf16.mxu0 0
  %224 = vmatpush1.bf16.msra.mxu0 %v184
  %225 = vmatprep.subr.bf16.mxu0 0
  %226 = vmatpush1.bf16.msra.mxu0 %v183
  %227 = vmatprep.subr.bf16.mxu0 0
  %228 = vmatpush1.bf16.msra.mxu0 %v182
  %229 = vmatprep.subr.bf16.mxu0 0
  %230 = vmatpush1.bf16.msra.mxu0 %v181
  %231 = vmatprep.subr.bf16.mxu0 0
  %232 = vmatpush1.bf16.msra.mxu0 %v180
  %233 = vmatprep.subr.bf16.mxu0 0
  %234 = vmatpush1.bf16.msra.mxu0 %v179
  %235 = vmatprep.subr.bf16.mxu0 0
  %236 = vmatpush1.bf16.msra.mxu0 %v178
  %237 = vmatprep.subr.bf16.mxu0 0
  %238 = vmatpush2.bf16.msra.mxu0 %v193
  %239 = vmatprep.subr.bf16.mxu0 0
  %240 = vmatpush2.bf16.msra.mxu0 %v192
  %241 = vmatprep.subr.bf16.mxu0 0
  %242 = vmatpush2.bf16.msra.mxu0 %v191
  %243 = vmatprep.subr.bf16.mxu0 0
  %244 = vmatpush2.bf16.msra.mxu0 %v190
  %245 = vmatprep.subr.bf16.mxu0 0
  %246 = vmatpush2.bf16.msra.mxu0 %v189
  %247 = vmatprep.subr.bf16.mxu0 0
  %248 = vmatpush2.bf16.msra.mxu0 %v188
  %249 = vmatprep.subr.bf16.mxu0 0
  %250 = vmatpush2.bf16.msra.mxu0 %v187
  %251 = vmatprep.subr.bf16.mxu0 0
  %252 = vmatpush2.bf16.msra.mxu0 %v186
  %253 = vmatprep.mubr.bf16.mxu0 %v97
  %254 = vmatmul.mubr.bf16.gmra.mxu0 %v96
  %v255 = vpop.f32.mrf.mxu0
  %v256 = vadd.f32 0.0, %v255
  %v257 = vpop.f32.mrf.mxu0
  %v258 = vpop.f32.mrf.mxu0
  %v259 = vadd.f32 0.0, %v258
  %v260 = vpop.f32.mrf.mxu0
  %261 = vmatprep.mubr.bf16.mxu0 %v100
  %262 = vmatmul.mubr.bf16.gmra.mxu0 %v99
  %v263 = vpop.f32.mrf.mxu0
  %v264 = vadd.f32 0.0, %v263
  %v265 = vpop.f32.mrf.mxu0
  %v266 = vpop.f32.mrf.mxu0
  %v267 = vadd.f32 0.0, %v266
  %v268 = vpop.f32.mrf.mxu0
  %269 = vdwg.mxu0
  %270 = vmatprep.subr.bf16.mxu0 0
  %271 = vmatpush1.bf16.msra.mxu0 0
  %272 = vmatprep.subr.bf16.mxu0 0
  %273 = vmatpush1.bf16.msra.mxu0 0
  %274 = vmatprep.subr.bf16.mxu0 0
  %275 = vmatpush1.bf16.msra.mxu0 0
  %276 = vmatprep.subr.bf16.mxu0 0
  %277 = vmatpush1.bf16.msra.mxu0 0
  %278 = vmatprep.subr.bf16.mxu0 0
  %279 = vmatpush1.bf16.msra.mxu0 0
  %280 = vmatprep.subr.bf16.mxu0 0
  %281 = vmatpush1.bf16.msra.mxu0 0
  %282 = vmatprep.subr.bf16.mxu0 0
  %283 = vmatpush1.bf16.msra.mxu0 %v195
  %284 = vmatprep.subr.bf16.mxu0 0
  %285 = vmatpush1.bf16.msra.mxu0 %v194
  %286 = vmatprep.subr.bf16.mxu0 0
  %287 = vmatpush2.bf16.msra.mxu0 0
  %288 = vmatprep.subr.bf16.mxu0 0
  %289 = vmatpush2.bf16.msra.mxu0 0
  %290 = vmatprep.subr.bf16.mxu0 0
  %291 = vmatpush2.bf16.msra.mxu0 0
  %292 = vmatprep.subr.bf16.mxu0 0
  %293 = vmatpush2.bf16.msra.mxu0 0
  %294 = vmatprep.subr.bf16.mxu0 0
  %295 = vmatpush2.bf16.msra.mxu0 0
  %296 = vmatprep.subr.bf16.mxu0 0
  %297 = vmatpush2.bf16.msra.mxu0 0
  %298 = vmatprep.subr.bf16.mxu0 0
  %299 = vmatpush2.bf16.msra.mxu0 0
  %300 = vmatprep.subr.bf16.mxu0 0
  %301 = vmatpush2.bf16.msra.mxu0 0
  %302 = vmatprep.mubr.bf16.mxu0 0
  %303 = vmatmul.mubr.bf16.gmra.mxu0 %v216
  %v304 = vpop.f32.mrf.mxu0
  %v305 = vadd.f32 %v256, %v304
  %v306 = vpop.f32.mrf.mxu0
  %v307 = vpop.f32.mrf.mxu0
  %v308 = vadd.f32 %v259, %v307
  %v309 = vpop.f32.mrf.mxu0
  %310 = vmatprep.mubr.bf16.mxu0 0
  %311 = vmatmul.mubr.bf16.gmra.mxu0 %v219
  %v312 = vpop.f32.mrf.mxu0
  %v313 = vadd.f32 %v264, %v312
  %v314 = vpop.f32.mrf.mxu0
  %v315 = vpop.f32.mrf.mxu0
  %v316 = vadd.f32 %v267, %v315
  %v317 = vpop.f32.mrf.mxu0
  %318 = vdwg.mxu0
  %v319 = vmul.f32 %v305, %v59
  %v320 = vmul.f32 %v308, %v59
  %v321 = vmul.f32 %v313, %v59
  %v322 = vmul.f32 %v316, %v59
  %v323 = vadd.f32 %v319, %v66
  %v324 = vadd.f32 %v320, %v66
  %v325 = vadd.f32 %v321, %v66
  %v326 = vadd.f32 %v322, %v66
  %s327 = scalar_lea.vmem %s0, 48
  %v328 = vld [vmem:[%s327] sm:$0xff]
  %v329 = vld [vmem:[%s327 + $0x8] sm:$0xf]
  %v330 = vld [vmem:[%s327 + $0xc] sm:$0xff]
  %v331 = vld [vmem:[%s327 + $0x14] sm:$0xf]
  %v332 = vld [vmem:[%s327 + $0x18] sm:$0xff]
  %v333 = vld [vmem:[%s327 + $0x20] sm:$0xf]
  %v334 = vld [vmem:[%s327 + $0x24] sm:$0xff]
  %v335 = vld [vmem:[%s327 + $0x2c] sm:$0xf]
  %v344 = vunpack.c.l.b16 %v328
  %v345 = vunpack.c.h.b16 %v328
  %v346 = vunpack.c.l.b16 %v329
  %v347 = vunpack.c.l.b16 %v330
  %v348 = vunpack.c.h.b16 %v330
  %v349 = vunpack.c.l.b16 %v331
  %v350 = vunpack.c.l.b16 %v332
  %v351 = vunpack.c.h.b16 %v332
  %v352 = vunpack.c.l.b16 %v333
  %v353 = vunpack.c.l.b16 %v334
  %v354 = vunpack.c.h.b16 %v334
  %v355 = vunpack.c.l.b16 %v335
  %v356 = vpack.c.b16 %v347, %v344
  %v357 = vpack.c.b16 %v348, %v345
  %v358 = vpack.c.b16 %v349, %v346
  %v359 = vpack.c.b16 %v353, %v350
  %v360 = vpack.c.b16 %v354, %v351
  %v361 = vpack.c.b16 %v355, %v352
  %v367 = vsel %vm214, %v358, 0
  %v370 = vsel %vm214, %v361, 0
  %372 = vmatprep.subr.bf16.mxu0 0
  %373 = vmatpush1.bf16.msra.mxu0 %v185
  %374 = vmatprep.subr.bf16.mxu0 0
  %375 = vmatpush1.bf16.msra.mxu0 %v184
  %376 = vmatprep.subr.bf16.mxu0 0
  %377 = vmatpush1.bf16.msra.mxu0 %v183
  %378 = vmatprep.subr.bf16.mxu0 0
  %379 = vmatpush1.bf16.msra.mxu0 %v182
  %380 = vmatprep.subr.bf16.mxu0 0
  %381 = vmatpush1.bf16.msra.mxu0 %v181
  %382 = vmatprep.subr.bf16.mxu0 0
  %383 = vmatpush1.bf16.msra.mxu0 %v180
  %384 = vmatprep.subr.bf16.mxu0 0
  %385 = vmatpush1.bf16.msra.mxu0 %v179
  %386 = vmatprep.subr.bf16.mxu0 0
  %387 = vmatpush1.bf16.msra.mxu0 %v178
  %388 = vmatprep.subr.bf16.mxu0 0
  %389 = vmatpush2.bf16.msra.mxu0 %v193
  %390 = vmatprep.subr.bf16.mxu0 0
  %391 = vmatpush2.bf16.msra.mxu0 %v192
  %392 = vmatprep.subr.bf16.mxu0 0
  %393 = vmatpush2.bf16.msra.mxu0 %v191
  %394 = vmatprep.subr.bf16.mxu0 0
  %395 = vmatpush2.bf16.msra.mxu0 %v190
  %396 = vmatprep.subr.bf16.mxu0 0
  %397 = vmatpush2.bf16.msra.mxu0 %v189
  %398 = vmatprep.subr.bf16.mxu0 0
  %399 = vmatpush2.bf16.msra.mxu0 %v188
  %400 = vmatprep.subr.bf16.mxu0 0
  %401 = vmatpush2.bf16.msra.mxu0 %v187
  %402 = vmatprep.subr.bf16.mxu0 0
  %403 = vmatpush2.bf16.msra.mxu0 %v186
  %404 = vmatprep.mubr.bf16.mxu0 %v357
  %405 = vmatmul.mubr.bf16.gmra.mxu0 %v356
  %v406 = vpop.f32.mrf.mxu0
  %v407 = vadd.f32 0.0, %v406
  %v408 = vpop.f32.mrf.mxu0
  %v409 = vpop.f32.mrf.mxu0
  %v410 = vadd.f32 0.0, %v409
  %v411 = vpop.f32.mrf.mxu0
  %412 = vmatprep.mubr.bf16.mxu0 %v360
  %413 = vmatmul.mubr.bf16.gmra.mxu0 %v359
  %v414 = vpop.f32.mrf.mxu0
  %v415 = vadd.f32 0.0, %v414
  %v416 = vpop.f32.mrf.mxu0
  %v417 = vpop.f32.mrf.mxu0
  %v418 = vadd.f32 0.0, %v417
  %v419 = vpop.f32.mrf.mxu0
  %420 = vdwg.mxu0
  %421 = vmatprep.subr.bf16.mxu0 0
  %422 = vmatpush1.bf16.msra.mxu0 0
  %423 = vmatprep.subr.bf16.mxu0 0
  %424 = vmatpush1.bf16.msra.mxu0 0
  %425 = vmatprep.subr.bf16.mxu0 0
  %426 = vmatpush1.bf16.msra.mxu0 0
  %427 = vmatprep.subr.bf16.mxu0 0
  %428 = vmatpush1.bf16.msra.mxu0 0
  %429 = vmatprep.subr.bf16.mxu0 0
  %430 = vmatpush1.bf16.msra.mxu0 0
  %431 = vmatprep.subr.bf16.mxu0 0
  %432 = vmatpush1.bf16.msra.mxu0 0
  %433 = vmatprep.subr.bf16.mxu0 0
  %434 = vmatpush1.bf16.msra.mxu0 %v195
  %435 = vmatprep.subr.bf16.mxu0 0
  %436 = vmatpush1.bf16.msra.mxu0 %v194
  %437 = vmatprep.subr.bf16.mxu0 0
  %438 = vmatpush2.bf16.msra.mxu0 0
  %439 = vmatprep.subr.bf16.mxu0 0
  %440 = vmatpush2.bf16.msra.mxu0 0
  %441 = vmatprep.subr.bf16.mxu0 0
  %442 = vmatpush2.bf16.msra.mxu0 0
  %443 = vmatprep.subr.bf16.mxu0 0
  %444 = vmatpush2.bf16.msra.mxu0 0
  %445 = vmatprep.subr.bf16.mxu0 0
  %446 = vmatpush2.bf16.msra.mxu0 0
  %447 = vmatprep.subr.bf16.mxu0 0
  %448 = vmatpush2.bf16.msra.mxu0 0
  %449 = vmatprep.subr.bf16.mxu0 0
  %450 = vmatpush2.bf16.msra.mxu0 0
  %451 = vmatprep.subr.bf16.mxu0 0
  %452 = vmatpush2.bf16.msra.mxu0 0
  %453 = vmatprep.mubr.bf16.mxu0 0
  %454 = vmatmul.mubr.bf16.gmra.mxu0 %v367
  %v455 = vpop.f32.mrf.mxu0
  %v456 = vadd.f32 %v407, %v455
  %v457 = vpop.f32.mrf.mxu0
  %v458 = vpop.f32.mrf.mxu0
  %v459 = vadd.f32 %v410, %v458
  %v460 = vpop.f32.mrf.mxu0
  %461 = vmatprep.mubr.bf16.mxu0 0
  %462 = vmatmul.mubr.bf16.gmra.mxu0 %v370
  %v463 = vpop.f32.mrf.mxu0
  %v464 = vadd.f32 %v415, %v463
  %v465 = vpop.f32.mrf.mxu0
  %v466 = vpop.f32.mrf.mxu0
  %v467 = vadd.f32 %v418, %v466
  %v468 = vpop.f32.mrf.mxu0
  %469 = vdwg.mxu0
  %v470 = vmul.f32 %v456, %v59
  %v471 = vmul.f32 %v459, %v59
  %v472 = vmul.f32 %v464, %v59
  %v473 = vmul.f32 %v467, %v59
  %v474 = vadd.f32 %v470, %v66
  %v475 = vadd.f32 %v471, %v66
  %v476 = vadd.f32 %v472, %v66
  %v477 = vadd.f32 %v473, %v66
  %v478 = vmax.f32 %v323, %v474
  %v479 = vmax.f32 %v324, %v475
  %v480 = vmax.f32 %v325, %v476
  %v481 = vmax.f32 %v326, %v477
  %s482 = scalar_lea.vmem %s0, 96
  %v483 = vld [vmem:[%s482] sm:$0xff]
  %v484 = vld [vmem:[%s482 + $0x8] sm:$0xf]
  %v485 = vld [vmem:[%s482 + $0xc] sm:$0xff]
  %v486 = vld [vmem:[%s482 + $0x14] sm:$0xf]
  %v487 = vld [vmem:[%s482 + $0x18] sm:$0xff]
  %v488 = vld [vmem:[%s482 + $0x20] sm:$0xf]
  %v489 = vld [vmem:[%s482 + $0x24] sm:$0xff]
  %v490 = vld [vmem:[%s482 + $0x2c] sm:$0xf]
  %v499 = vunpack.c.l.b16 %v483
  %v500 = vunpack.c.h.b16 %v483
  %v501 = vunpack.c.l.b16 %v484
  %v502 = vunpack.c.l.b16 %v485
  %v503 = vunpack.c.h.b16 %v485
  %v504 = vunpack.c.l.b16 %v486
  %v505 = vunpack.c.l.b16 %v487
  %v506 = vunpack.c.h.b16 %v487
  %v507 = vunpack.c.l.b16 %v488
  %v508 = vunpack.c.l.b16 %v489
  %v509 = vunpack.c.h.b16 %v489
  %v510 = vunpack.c.l.b16 %v490
  %v511 = vpack.c.b16 %v502, %v499
  %v512 = vpack.c.b16 %v503, %v500
  %v513 = vpack.c.b16 %v504, %v501
  %v514 = vpack.c.b16 %v508, %v505
  %v515 = vpack.c.b16 %v509, %v506
  %v516 = vpack.c.b16 %v510, %v507
  %v522 = vsel %vm214, %v513, 0
  %v525 = vsel %vm214, %v516, 0
  %527 = vmatprep.subr.bf16.mxu0 0
  %528 = vmatpush1.bf16.msra.mxu0 %v185
  %529 = vmatprep.subr.bf16.mxu0 0
  %530 = vmatpush1.bf16.msra.mxu0 %v184
  %531 = vmatprep.subr.bf16.mxu0 0
  %532 = vmatpush1.bf16.msra.mxu0 %v183
  %533 = vmatprep.subr.bf16.mxu0 0
  %534 = vmatpush1.bf16.msra.mxu0 %v182
  %535 = vmatprep.subr.bf16.mxu0 0
  %536 = vmatpush1.bf16.msra.mxu0 %v181
  %537 = vmatprep.subr.bf16.mxu0 0
  %538 = vmatpush1.bf16.msra.mxu0 %v180
  %539 = vmatprep.subr.bf16.mxu0 0
  %540 = vmatpush1.bf16.msra.mxu0 %v179
  %541 = vmatprep.subr.bf16.mxu0 0
  %542 = vmatpush1.bf16.msra.mxu0 %v178
  %543 = vmatprep.subr.bf16.mxu0 0
  %544 = vmatpush2.bf16.msra.mxu0 %v193
  %545 = vmatprep.subr.bf16.mxu0 0
  %546 = vmatpush2.bf16.msra.mxu0 %v192
  %547 = vmatprep.subr.bf16.mxu0 0
  %548 = vmatpush2.bf16.msra.mxu0 %v191
  %549 = vmatprep.subr.bf16.mxu0 0
  %550 = vmatpush2.bf16.msra.mxu0 %v190
  %551 = vmatprep.subr.bf16.mxu0 0
  %552 = vmatpush2.bf16.msra.mxu0 %v189
  %553 = vmatprep.subr.bf16.mxu0 0
  %554 = vmatpush2.bf16.msra.mxu0 %v188
  %555 = vmatprep.subr.bf16.mxu0 0
  %556 = vmatpush2.bf16.msra.mxu0 %v187
  %557 = vmatprep.subr.bf16.mxu0 0
  %558 = vmatpush2.bf16.msra.mxu0 %v186
  %559 = vmatprep.mubr.bf16.mxu0 %v512
  %560 = vmatmul.mubr.bf16.gmra.mxu0 %v511
  %v561 = vpop.f32.mrf.mxu0
  %v562 = vadd.f32 0.0, %v561
  %v563 = vpop.f32.mrf.mxu0
  %v564 = vpop.f32.mrf.mxu0
  %v565 = vadd.f32 0.0, %v564
  %v566 = vpop.f32.mrf.mxu0
  %567 = vmatprep.mubr.bf16.mxu0 %v515
  %568 = vmatmul.mubr.bf16.gmra.mxu0 %v514
  %v569 = vpop.f32.mrf.mxu0
  %v570 = vadd.f32 0.0, %v569
  %v571 = vpop.f32.mrf.mxu0
  %v572 = vpop.f32.mrf.mxu0
  %v573 = vadd.f32 0.0, %v572
  %v574 = vpop.f32.mrf.mxu0
  %575 = vdwg.mxu0
  %576 = vmatprep.subr.bf16.mxu0 0
  %577 = vmatpush1.bf16.msra.mxu0 0
  %578 = vmatprep.subr.bf16.mxu0 0
  %579 = vmatpush1.bf16.msra.mxu0 0
  %580 = vmatprep.subr.bf16.mxu0 0
  %581 = vmatpush1.bf16.msra.mxu0 0
  %582 = vmatprep.subr.bf16.mxu0 0
  %583 = vmatpush1.bf16.msra.mxu0 0
  %584 = vmatprep.subr.bf16.mxu0 0
  %585 = vmatpush1.bf16.msra.mxu0 0
  %586 = vmatprep.subr.bf16.mxu0 0
  %587 = vmatpush1.bf16.msra.mxu0 0
  %588 = vmatprep.subr.bf16.mxu0 0
  %589 = vmatpush1.bf16.msra.mxu0 %v195
  %590 = vmatprep.subr.bf16.mxu0 0
  %591 = vmatpush1.bf16.msra.mxu0 %v194
  %592 = vmatprep.subr.bf16.mxu0 0
  %593 = vmatpush2.bf16.msra.mxu0 0
  %594 = vmatprep.subr.bf16.mxu0 0
  %595 = vmatpush2.bf16.msra.mxu0 0
  %596 = vmatprep.subr.bf16.mxu0 0
  %597 = vmatpush2.bf16.msra.mxu0 0
  %598 = vmatprep.subr.bf16.mxu0 0
  %599 = vmatpush2.bf16.msra.mxu0 0
  %600 = vmatprep.subr.bf16.mxu0 0
  %601 = vmatpush2.bf16.msra.mxu0 0
  %602 = vmatprep.subr.bf16.mxu0 0
  %603 = vmatpush2.bf16.msra.mxu0 0
  %604 = vmatprep.subr.bf16.mxu0 0
  %605 = vmatpush2.bf16.msra.mxu0 0
  %606 = vmatprep.subr.bf16.mxu0 0
  %607 = vmatpush2.bf16.msra.mxu0 0
  %608 = vmatprep.mubr.bf16.mxu0 0
  %609 = vmatmul.mubr.bf16.gmra.mxu0 %v522
  %v610 = vpop.f32.mrf.mxu0
  %v611 = vadd.f32 %v562, %v610
  %v612 = vpop.f32.mrf.mxu0
  %v613 = vpop.f32.mrf.mxu0
  %v614 = vadd.f32 %v565, %v613
  %v615 = vpop.f32.mrf.mxu0
  %616 = vmatprep.mubr.bf16.mxu0 0
  %617 = vmatmul.mubr.bf16.gmra.mxu0 %v525
  %v618 = vpop.f32.mrf.mxu0
  %v619 = vadd.f32 %v570, %v618
  %v620 = vpop.f32.mrf.mxu0
  %v621 = vpop.f32.mrf.mxu0
  %v622 = vadd.f32 %v573, %v621
  %v623 = vpop.f32.mrf.mxu0
  %624 = vdwg.mxu0
  %v625 = vmul.f32 %v611, %v59
  %v626 = vmul.f32 %v614, %v59
  %v627 = vmul.f32 %v619, %v59
  %v628 = vmul.f32 %v622, %v59
  %v629 = vadd.f32 %v625, %v66
  %v630 = vadd.f32 %v626, %v66
  %v631 = vadd.f32 %v627, %v66
  %v632 = vadd.f32 %v628, %v66
  %v633 = vmax.f32 %v478, %v629
  %v634 = vmax.f32 %v479, %v630
  %v635 = vmax.f32 %v480, %v631
  %v636 = vmax.f32 %v481, %v632
  %s637 = scalar_lea.vmem %s0, 144
  %v638 = vld [vmem:[%s637] sm:$0xff]
  %v639 = vld [vmem:[%s637 + $0x8] sm:$0xf]
  %v640 = vld [vmem:[%s637 + $0xc] sm:$0xff]
  %v641 = vld [vmem:[%s637 + $0x14] sm:$0xf]
  %v642 = vld [vmem:[%s637 + $0x18] sm:$0xff]
  %v643 = vld [vmem:[%s637 + $0x20] sm:$0xf]
  %v644 = vld [vmem:[%s637 + $0x24] sm:$0xff]
  %v645 = vld [vmem:[%s637 + $0x2c] sm:$0xf]
  %v654 = vunpack.c.l.b16 %v638
  %v655 = vunpack.c.h.b16 %v638
  %v656 = vunpack.c.l.b16 %v639
  %v657 = vunpack.c.l.b16 %v640
  %v658 = vunpack.c.h.b16 %v640
  %v659 = vunpack.c.l.b16 %v641
  %v660 = vunpack.c.l.b16 %v642
  %v661 = vunpack.c.h.b16 %v642
  %v662 = vunpack.c.l.b16 %v643
  %v663 = vunpack.c.l.b16 %v644
  %v664 = vunpack.c.h.b16 %v644
  %v665 = vunpack.c.l.b16 %v645
  %v666 = vpack.c.b16 %v657, %v654
  %v667 = vpack.c.b16 %v658, %v655
  %v668 = vpack.c.b16 %v659, %v656
  %v669 = vpack.c.b16 %v663, %v660
  %v670 = vpack.c.b16 %v664, %v661
  %v671 = vpack.c.b16 %v665, %v662
  %v677 = vsel %vm214, %v668, 0
  %v680 = vsel %vm214, %v671, 0
  %682 = vmatprep.subr.bf16.mxu0 0
  %683 = vmatpush1.bf16.msra.mxu0 %v185
  %684 = vmatprep.subr.bf16.mxu0 0
  %685 = vmatpush1.bf16.msra.mxu0 %v184
  %686 = vmatprep.subr.bf16.mxu0 0
  %687 = vmatpush1.bf16.msra.mxu0 %v183
  %688 = vmatprep.subr.bf16.mxu0 0
  %689 = vmatpush1.bf16.msra.mxu0 %v182
  %690 = vmatprep.subr.bf16.mxu0 0
  %691 = vmatpush1.bf16.msra.mxu0 %v181
  %692 = vmatprep.subr.bf16.mxu0 0
  %693 = vmatpush1.bf16.msra.mxu0 %v180
  %694 = vmatprep.subr.bf16.mxu0 0
  %695 = vmatpush1.bf16.msra.mxu0 %v179
  %696 = vmatprep.subr.bf16.mxu0 0
  %697 = vmatpush1.bf16.msra.mxu0 %v178
  %698 = vmatprep.subr.bf16.mxu0 0
  %699 = vmatpush2.bf16.msra.mxu0 %v193
  %700 = vmatprep.subr.bf16.mxu0 0
  %701 = vmatpush2.bf16.msra.mxu0 %v192
  %702 = vmatprep.subr.bf16.mxu0 0
  %703 = vmatpush2.bf16.msra.mxu0 %v191
  %704 = vmatprep.subr.bf16.mxu0 0
  %705 = vmatpush2.bf16.msra.mxu0 %v190
  %706 = vmatprep.subr.bf16.mxu0 0
  %707 = vmatpush2.bf16.msra.mxu0 %v189
  %708 = vmatprep.subr.bf16.mxu0 0
  %709 = vmatpush2.bf16.msra.mxu0 %v188
  %710 = vmatprep.subr.bf16.mxu0 0
  %711 = vmatpush2.bf16.msra.mxu0 %v187
  %712 = vmatprep.subr.bf16.mxu0 0
  %713 = vmatpush2.bf16.msra.mxu0 %v186
  %714 = vmatprep.mubr.bf16.mxu0 %v667
  %715 = vmatmul.mubr.bf16.gmra.mxu0 %v666
  %v716 = vpop.f32.mrf.mxu0
  %v717 = vadd.f32 0.0, %v716
  %v718 = vpop.f32.mrf.mxu0
  %v719 = vpop.f32.mrf.mxu0
  %v720 = vadd.f32 0.0, %v719
  %v721 = vpop.f32.mrf.mxu0
  %722 = vmatprep.mubr.bf16.mxu0 %v670
  %723 = vmatmul.mubr.bf16.gmra.mxu0 %v669
  %v724 = vpop.f32.mrf.mxu0
  %v725 = vadd.f32 0.0, %v724
  %v726 = vpop.f32.mrf.mxu0
  %v727 = vpop.f32.mrf.mxu0
  %v728 = vadd.f32 0.0, %v727
  %v729 = vpop.f32.mrf.mxu0
  %730 = vdwg.mxu0
  %731 = vmatprep.subr.bf16.mxu0 0
  %732 = vmatpush1.bf16.msra.mxu0 0
  %733 = vmatprep.subr.bf16.mxu0 0
  %734 = vmatpush1.bf16.msra.mxu0 0
  %735 = vmatprep.subr.bf16.mxu0 0
  %736 = vmatpush1.bf16.msra.mxu0 0
  %737 = vmatprep.subr.bf16.mxu0 0
  %738 = vmatpush1.bf16.msra.mxu0 0
  %739 = vmatprep.subr.bf16.mxu0 0
  %740 = vmatpush1.bf16.msra.mxu0 0
  %741 = vmatprep.subr.bf16.mxu0 0
  %742 = vmatpush1.bf16.msra.mxu0 0
  %743 = vmatprep.subr.bf16.mxu0 0
  %744 = vmatpush1.bf16.msra.mxu0 %v195
  %745 = vmatprep.subr.bf16.mxu0 0
  %746 = vmatpush1.bf16.msra.mxu0 %v194
  %747 = vmatprep.subr.bf16.mxu0 0
  %748 = vmatpush2.bf16.msra.mxu0 0
  %749 = vmatprep.subr.bf16.mxu0 0
  %750 = vmatpush2.bf16.msra.mxu0 0
  %751 = vmatprep.subr.bf16.mxu0 0
  %752 = vmatpush2.bf16.msra.mxu0 0
  %753 = vmatprep.subr.bf16.mxu0 0
  %754 = vmatpush2.bf16.msra.mxu0 0
  %755 = vmatprep.subr.bf16.mxu0 0
  %756 = vmatpush2.bf16.msra.mxu0 0
  %757 = vmatprep.subr.bf16.mxu0 0
  %758 = vmatpush2.bf16.msra.mxu0 0
  %759 = vmatprep.subr.bf16.mxu0 0
  %760 = vmatpush2.bf16.msra.mxu0 0
  %761 = vmatprep.subr.bf16.mxu0 0
  %762 = vmatpush2.bf16.msra.mxu0 0
  %763 = vmatprep.mubr.bf16.mxu0 0
  %764 = vmatmul.mubr.bf16.gmra.mxu0 %v677
  %v765 = vpop.f32.mrf.mxu0
  %v766 = vadd.f32 %v717, %v765
  %v767 = vpop.f32.mrf.mxu0
  %v768 = vpop.f32.mrf.mxu0
  %v769 = vadd.f32 %v720, %v768
  %v770 = vpop.f32.mrf.mxu0
  %771 = vmatprep.mubr.bf16.mxu0 0
  %772 = vmatmul.mubr.bf16.gmra.mxu0 %v680
  %v773 = vpop.f32.mrf.mxu0
  %v774 = vadd.f32 %v725, %v773
  %v775 = vpop.f32.mrf.mxu0
  %v776 = vpop.f32.mrf.mxu0
  %v777 = vadd.f32 %v728, %v776
  %v778 = vpop.f32.mrf.mxu0
  %779 = vdwg.mxu0
  %v780 = vmul.f32 %v766, %v59
  %v781 = vmul.f32 %v769, %v59
  %v782 = vmul.f32 %v774, %v59
  %v783 = vmul.f32 %v777, %v59
  %v784 = vadd.f32 %v780, %v66
  %v785 = vadd.f32 %v781, %v66
  %v786 = vadd.f32 %v782, %v66
  %v787 = vadd.f32 %v783, %v66
  %v788 = vmax.f32 %v633, %v784
  %v789 = vmax.f32 %v634, %v785
  %v790 = vmax.f32 %v635, %v786
  %v791 = vmax.f32 %v636, %v787
  %v792 = vmax.f32 %v788, 0.0
  %v793 = vmax.f32 %v789, 0.0
  %v794 = vmax.f32 %v790, 0.0
  %v795 = vmax.f32 %v791, 0.0
  %vm796 = vcmask 523264
  %797 = vst.msk [vmem:[%s4] sm:$0xff] %vm796, %v792
  %798 = vst.msk [vmem:[%s4 + $0x8] sm:$0xff] %vm796, %v793
  %799 = vst.msk [vmem:[%s4 + $0x10] sm:$0xff] %vm796, %v794
  %800 = vst.msk [vmem:[%s4 + $0x18] sm:$0xff] %vm796, %v795
  // Predicated region
  $region18: #{simple_cnn_forward.5} parent=0 // pred_check
    _
  $region19: #{simple_cnn_forward.5} parent=0 // pred_check_branch
    %802 = sbr.rel (0) target = $region21
  $region20: #{simple_cnn_forward.5} parent=0 // pred_region
    _
  $region21: #{simple_cnn_forward.5} parent=0 // pred_fallthru
    _
  // Predicated region
  $region22: #{simple_cnn_forward.5} parent=0 // pred_check
    _
  $region23: #{simple_cnn_forward.5} parent=0 // pred_check_branch
    %804 = sbr.rel (0) target = $region25
  $region24: #{simple_cnn_forward.5} parent=0 // pred_region
    _
  $region25: #{simple_cnn_forward.5} parent=0 // pred_fallthru
    _

// kernel: simple_cnn_forward.6
$region0: #{simple_cnn_forward.6}
  #allocation0 [shape = 'u32[]', space=smem, size = 0x4, offset = 0x4, fixed_abs, tag = 'smem constant byte address 0x4 - core index']
  #allocation1 [shape = 'u32[144,128]{1,0:T(1,128)}', space=vmem, size = 0x12000, scoped, tag = 'internal scratch']
  %s0 = inlined_call_operand.vmem [shape: bf16[4,8,576], index: 0, kind: input, shape index: {}]
  %s1 = inlined_call_operand.vmem [shape: bf16[576,128], index: 1, kind: input, shape index: {}]
  %s2 = inlined_call_operand.vmem [shape: f32[1,128], index: 2, kind: input, shape index: {}]
  %s3 = inlined_call_operand.vmem [shape: f32[1,128], index: 3, kind: input, shape index: {}]
  %s4 = inlined_call_operand.vmem [shape: f32[8,128], index: 4, kind: output, shape index: {}]
  %s5 = sld [smem:[#allocation0]]
  $region26: #{simple_cnn_forward.6} parent=0
    _
  %s7 = ssub.s32 1, %s5
  %s8 = scalar_select 0, %s7, %s5
  // Predicated region
  $region2: #{simple_cnn_forward.6} parent=0 // pred_check
    _
  $region3: #{simple_cnn_forward.6} parent=0 // pred_check_branch
    %10 = sbr.rel (0) target = $region5
  $region4: #{simple_cnn_forward.6} parent=0 // pred_region
    _
  $region5: #{simple_cnn_forward.6} parent=0 // pred_fallthru
    _
  // Predicated region
  $region6: #{simple_cnn_forward.6} parent=0 // pred_check
    _
  $region7: #{simple_cnn_forward.6} parent=0 // pred_check_branch
    %12 = sbr.rel (0) target = $region9
  $region8: #{simple_cnn_forward.6} parent=0 // pred_region
    _
  $region9: #{simple_cnn_forward.6} parent=0 // pred_fallthru
    _
  // Predicated region
  $region10: #{simple_cnn_forward.6} parent=0 // pred_check
    _
  $region11: #{simple_cnn_forward.6} parent=0 // pred_check_branch
    %14 = sbr.rel (0) target = $region13
  $region12: #{simple_cnn_forward.6} parent=0 // pred_region
    _
  $region13: #{simple_cnn_forward.6} parent=0 // pred_fallthru
    _
  // Predicated region
  $region14: #{simple_cnn_forward.6} parent=0 // pred_check
    _
  $region15: #{simple_cnn_forward.6} parent=0 // pred_check_branch
    %16 = sbr.rel (0) target = $region17
  $region16: #{simple_cnn_forward.6} parent=0 // pred_region
    _
  $region17: #{simple_cnn_forward.6} parent=0 // pred_fallthru
    _
  %v18 = vld [vmem:[%s1] sm:$0xf]
  %v19 = vld [vmem:[%s1 + $0x4] sm:$0xf]
  %v20 = vld [vmem:[%s1 + $0x8] sm:$0xf]
  %v21 = vld [vmem:[%s1 + $0xc] sm:$0xf]
  %v22 = vld [vmem:[%s1 + $0x10] sm:$0xf]
  %v23 = vld [vmem:[%s1 + $0x14] sm:$0xf]
  %v24 = vld [vmem:[%s1 + $0x18] sm:$0xf]
  %v25 = vld [vmem:[%s1 + $0x1c] sm:$0xf]
  %v26 = vld [vmem:[%s1 + $0x20] sm:$0xf]
  %v27 = vld [vmem:[%s1 + $0x24] sm:$0xf]
  %v28 = vld [vmem:[%s1 + $0x28] sm:$0xf]
  %v29 = vld [vmem:[%s1 + $0x2c] sm:$0xf]
  %v30 = vld [vmem:[%s1 + $0x30] sm:$0xf]
  %v31 = vld [vmem:[%s1 + $0x34] sm:$0xf]
  %v32 = vld [vmem:[%s1 + $0x38] sm:$0xf]
  %v33 = vld [vmem:[%s1 + $0x3c] sm:$0xf]
  %v34 = vld [vmem:[%s1 + $0x40] sm:$0xf]
  %v35 = vld [vmem:[%s1 + $0x44] sm:$0xf]
  %v36 = vld [vmem:[%s1 + $0x48] sm:$0xf]
  %v37 = vld [vmem:[%s1 + $0x4c] sm:$0xf]
  %v38 = vld [vmem:[%s1 + $0x50] sm:$0xf]
  %v39 = vld [vmem:[%s1 + $0x54] sm:$0xf]
  %v40 = vld [vmem:[%s1 + $0x58] sm:$0xf]
  %v41 = vld [vmem:[%s1 + $0x5c] sm:$0xf]
  %v42 = vld [vmem:[%s1 + $0x60] sm:$0xf]
  %v43 = vld [vmem:[%s1 + $0x64] sm:$0xf]
  %v44 = vld [vmem:[%s1 + $0x68] sm:$0xf]
  %v45 = vld [vmem:[%s1 + $0x6c] sm:$0xf]
  %v46 = vld [vmem:[%s1 + $0x70] sm:$0xf]
  %v47 = vld [vmem:[%s1 + $0x74] sm:$0xf]
  %v48 = vld [vmem:[%s1 + $0x78] sm:$0xf]
  %v49 = vld [vmem:[%s1 + $0x7c] sm:$0xf]
  %v50 = vld [vmem:[%s1 + $0x80] sm:$0xf]
  %v51 = vld [vmem:[%s1 + $0x84] sm:$0xf]
  %v52 = vld [vmem:[%s1 + $0x88] sm:$0xf]
  %v53 = vld [vmem:[%s1 + $0x8c] sm:$0xf]
  %v54 = vld [vmem:[%s1 + $0x90] sm:$0xf]
  %v55 = vld [vmem:[%s1 + $0x94] sm:$0xf]
  %v56 = vld [vmem:[%s1 + $0x98] sm:$0xf]
  %v57 = vld [vmem:[%s1 + $0x9c] sm:$0xf]
  %v58 = vld [vmem:[%s1 + $0xa0] sm:$0xf]
  %v59 = vld [vmem:[%s1 + $0xa4] sm:$0xf]
  %v60 = vld [vmem:[%s1 + $0xa8] sm:$0xf]
  %v61 = vld [vmem:[%s1 + $0xac] sm:$0xf]
  %v62 = vld [vmem:[%s1 + $0xb0] sm:$0xf]
  %v63 = vld [vmem:[%s1 + $0xb4] sm:$0xf]
  %v64 = vld [vmem:[%s1 + $0xb8] sm:$0xf]
  %v65 = vld [vmem:[%s1 + $0xbc] sm:$0xf]
  %v66 = vld [vmem:[%s1 + $0xc0] sm:$0xf]
  %v67 = vld [vmem:[%s1 + $0xc4] sm:$0xf]
  %v68 = vld [vmem:[%s1 + $0xc8] sm:$0xf]
  %v69 = vld [vmem:[%s1 + $0xcc] sm:$0xf]
  %v70 = vld [vmem:[%s1 + $0xd0] sm:$0xf]
  %v71 = vld [vmem:[%s1 + $0xd4] sm:$0xf]
  %v72 = vld [vmem:[%s1 + $0xd8] sm:$0xf]
  %v73 = vld [vmem:[%s1 + $0xdc] sm:$0xf]
  %v74 = vld [vmem:[%s1 + $0xe0] sm:$0xf]
  %v75 = vld [vmem:[%s1 + $0xe4] sm:$0xf]
  %v76 = vld [vmem:[%s1 + $0xe8] sm:$0xf]
  %v77 = vld [vmem:[%s1 + $0xec] sm:$0xf]
  %v78 = vld [vmem:[%s1 + $0xf0] sm:$0xf]
  %v79 = vld [vmem:[%s1 + $0xf4] sm:$0xf]
  %v80 = vld [vmem:[%s1 + $0xf8] sm:$0xf]
  %v81 = vld [vmem:[%s1 + $0xfc] sm:$0xf]
  %v82 = vld [vmem:[%s1 + $0x100] sm:$0xf]
  %v83 = vld [vmem:[%s1 + $0x104] sm:$0xf]
  %v84 = vld [vmem:[%s1 + $0x108] sm:$0xf]
  %v85 = vld [vmem:[%s1 + $0x10c] sm:$0xf]
  %v86 = vld [vmem:[%s1 + $0x110] sm:$0xf]
  %v87 = vld [vmem:[%s1 + $0x114] sm:$0xf]
  %v88 = vld [vmem:[%s1 + $0x118] sm:$0xf]
  %v89 = vld [vmem:[%s1 + $0x11c] sm:$0xf]
  %v90 = vld [vmem:[%s2] sm:$0x1]
  %v92 = vlaneseq
  %v93 = vshrl.u32 %v92, 7
  %v94 = vsub.s32 0, %v93
  %v95 = vrot.slane %v90, %v94
  %v97 = vld [vmem:[%s3] sm:$0x1]
  %v99 = vlaneseq
  %v100 = vshrl.u32 %v99, 7
  %v101 = vsub.s32 0, %v100
  %v102 = vrot.slane %v97, %v101
  %v104 = vld [vmem:[%s0] sm:$0xff]
  %v105 = vld [vmem:[%s0 + $0x8] sm:$0xff]
  %v106 = vld [vmem:[%s0 + $0x10] sm:$0xf]
  %v110 = vunpack.c.l.b16 %v104
  %v111 = vunpack.c.h.b16 %v104
  %v112 = vunpack.c.l.b16 %v105
  %v113 = vunpack.c.h.b16 %v105
  %v114 = vunpack.c.l.b16 %v106
  %v115 = vpack.c.b16 %v110, %v110
  %v116 = vpack.c.b16 %v111, %v111
  %v117 = vpack.c.b16 %v112, %v112
  %v118 = vpack.c.b16 %v113, %v113
  %v119 = vpack.c.b16 %v114, %v114
  %v196 = vunpack.c.l.b16 %v18
  %v197 = vunpack.c.l.b16 %v19
  %v198 = vunpack.c.l.b16 %v20
  %v199 = vunpack.c.l.b16 %v21
  %v200 = vunpack.c.l.b16 %v22
  %v201 = vunpack.c.l.b16 %v23
  %v202 = vunpack.c.l.b16 %v24
  %v203 = vunpack.c.l.b16 %v25
  %v204 = vunpack.c.l.b16 %v26
  %v205 = vunpack.c.l.b16 %v27
  %v206 = vunpack.c.l.b16 %v28
  %v207 = vunpack.c.l.b16 %v29
  %v208 = vunpack.c.l.b16 %v30
  %v209 = vunpack.c.l.b16 %v31
  %v210 = vunpack.c.l.b16 %v32
  %v211 = vunpack.c.l.b16 %v33
  %v212 = vunpack.c.l.b16 %v34
  %v213 = vunpack.c.l.b16 %v35
  %v214 = vunpack.c.l.b16 %v36
  %v215 = vunpack.c.l.b16 %v37
  %v216 = vunpack.c.l.b16 %v38
  %v217 = vunpack.c.l.b16 %v39
  %v218 = vunpack.c.l.b16 %v40
  %v219 = vunpack.c.l.b16 %v41
  %v220 = vunpack.c.l.b16 %v42
  %v221 = vunpack.c.l.b16 %v43
  %v222 = vunpack.c.l.b16 %v44
  %v223 = vunpack.c.l.b16 %v45
  %v224 = vunpack.c.l.b16 %v46
  %v225 = vunpack.c.l.b16 %v47
  %v226 = vunpack.c.l.b16 %v48
  %v227 = vunpack.c.l.b16 %v49
  %v228 = vunpack.c.l.b16 %v50
  %v229 = vunpack.c.l.b16 %v51
  %v230 = vunpack.c.l.b16 %v52
  %v231 = vunpack.c.l.b16 %v53
  %v232 = vunpack.c.l.b16 %v54
  %v233 = vunpack.c.l.b16 %v55
  %v234 = vunpack.c.l.b16 %v56
  %v235 = vunpack.c.l.b16 %v57
  %v236 = vunpack.c.l.b16 %v58
  %v237 = vunpack.c.l.b16 %v59
  %v238 = vunpack.c.l.b16 %v60
  %v239 = vunpack.c.l.b16 %v61
  %v240 = vunpack.c.l.b16 %v62
  %v241 = vunpack.c.l.b16 %v63
  %v242 = vunpack.c.l.b16 %v64
  %v243 = vunpack.c.l.b16 %v65
  %v244 = vunpack.c.l.b16 %v66
  %v245 = vunpack.c.l.b16 %v67
  %v246 = vunpack.c.l.b16 %v68
  %v247 = vunpack.c.l.b16 %v69
  %v248 = vunpack.c.l.b16 %v70
  %v249 = vunpack.c.l.b16 %v71
  %v250 = vunpack.c.l.b16 %v72
  %v251 = vunpack.c.l.b16 %v73
  %v252 = vunpack.c.l.b16 %v74
  %v253 = vunpack.c.l.b16 %v75
  %v254 = vunpack.c.l.b16 %v76
  %v255 = vunpack.c.l.b16 %v77
  %v256 = vunpack.c.l.b16 %v78
  %v257 = vunpack.c.l.b16 %v79
  %v258 = vunpack.c.l.b16 %v80
  %v259 = vunpack.c.l.b16 %v81
  %v260 = vunpack.c.l.b16 %v82
  %v261 = vunpack.c.l.b16 %v83
  %v262 = vunpack.c.l.b16 %v84
  %v263 = vunpack.c.l.b16 %v85
  %v264 = vunpack.c.l.b16 %v86
  %v265 = vunpack.c.l.b16 %v87
  %v266 = vunpack.c.l.b16 %v88
  %v267 = vunpack.c.l.b16 %v89
  %v268 = vpack.c.b16 %v197, %v196
  %v269 = vpack.c.b16 %v199, %v198
  %v270 = vpack.c.b16 %v201, %v200
  %v271 = vpack.c.b16 %v203, %v202
  %v272 = vpack.c.b16 %v205, %v204
  %v273 = vpack.c.b16 %v207, %v206
  %v274 = vpack.c.b16 %v209, %v208
  %v275 = vpack.c.b16 %v211, %v210
  %v276 = vpack.c.b16 %v213, %v212
  %v277 = vpack.c.b16 %v215, %v214
  %v278 = vpack.c.b16 %v217, %v216
  %v279 = vpack.c.b16 %v219, %v218
  %v280 = vpack.c.b16 %v221, %v220
  %v281 = vpack.c.b16 %v223, %v222
  %v282 = vpack.c.b16 %v225, %v224
  %v283 = vpack.c.b16 %v227, %v226
  %v284 = vpack.c.b16 %v229, %v228
  %v285 = vpack.c.b16 %v231, %v230
  %v286 = vpack.c.b16 %v233, %v232
  %v287 = vpack.c.b16 %v235, %v234
  %v288 = vpack.c.b16 %v237, %v236
  %v289 = vpack.c.b16 %v239, %v238
  %v290 = vpack.c.b16 %v241, %v240
  %v291 = vpack.c.b16 %v243, %v242
  %v292 = vpack.c.b16 %v245, %v244
  %v293 = vpack.c.b16 %v247, %v246
  %v294 = vpack.c.b16 %v249, %v248
  %v295 = vpack.c.b16 %v251, %v250
  %v296 = vpack.c.b16 %v253, %v252
  %v297 = vpack.c.b16 %v255, %v254
  %v298 = vpack.c.b16 %v257, %v256
  %v299 = vpack.c.b16 %v259, %v258
  %v300 = vpack.c.b16 %v261, %v260
  %v301 = vpack.c.b16 %v263, %v262
  %v302 = vpack.c.b16 %v265, %v264
  %v303 = vpack.c.b16 %v267, %v266
  %vm340 = vcmask 523264
  %v342 = vsel %vm340, %v119, 0
  %344 = vmatprep.subr.bf16.mxu0 0
  %345 = vmatpush1.bf16.msra.mxu0 %v275
  %346 = vmatprep.subr.bf16.mxu0 0
  %347 = vmatpush1.bf16.msra.mxu0 %v274
  %348 = vmatprep.subr.bf16.mxu0 0
  %349 = vmatpush1.bf16.msra.mxu0 %v273
  %350 = vmatprep.subr.bf16.mxu0 0
  %351 = vmatpush1.bf16.msra.mxu0 %v272
  %352 = vmatprep.subr.bf16.mxu0 0
  %353 = vmatpush1.bf16.msra.mxu0 %v271
  %354 = vmatprep.subr.bf16.mxu0 0
  %355 = vmatpush1.bf16.msra.mxu0 %v270
  %356 = vmatprep.subr.bf16.mxu0 0
  %357 = vmatpush1.bf16.msra.mxu0 %v269
  %358 = vmatprep.subr.bf16.mxu0 0
  %359 = vmatpush1.bf16.msra.mxu0 %v268
  %360 = vmatprep.subr.bf16.mxu0 0
  %361 = vmatpush2.bf16.msra.mxu0 %v283
  %362 = vmatprep.subr.bf16.mxu0 0
  %363 = vmatpush2.bf16.msra.mxu0 %v282
  %364 = vmatprep.subr.bf16.mxu0 0
  %365 = vmatpush2.bf16.msra.mxu0 %v281
  %366 = vmatprep.subr.bf16.mxu0 0
  %367 = vmatpush2.bf16.msra.mxu0 %v280
  %368 = vmatprep.subr.bf16.mxu0 0
  %369 = vmatpush2.bf16.msra.mxu0 %v279
  %370 = vmatprep.subr.bf16.mxu0 0
  %371 = vmatpush2.bf16.msra.mxu0 %v278
  %372 = vmatprep.subr.bf16.mxu0 0
  %373 = vmatpush2.bf16.msra.mxu0 %v277
  %374 = vmatprep.subr.bf16.mxu0 0
  %375 = vmatpush2.bf16.msra.mxu0 %v276
  %376 = vmatprep.mubr.bf16.mxu0 %v116
  %377 = vmatmul.mubr.bf16.gmra.mxu0 %v115
  %v378 = vpop.f32.mrf.mxu0
  %v379 = vadd.f32 0.0, %v378
  %v380 = vpop.f32.mrf.mxu0
  %v381 = vpop.f32.mrf.mxu0
  %v382 = vpop.f32.mrf.mxu0
  %383 = vdwg.mxu0
  %384 = vmatprep.subr.bf16.mxu0 0
  %385 = vmatpush1.bf16.msra.mxu0 %v291
  %386 = vmatprep.subr.bf16.mxu0 0
  %387 = vmatpush1.bf16.msra.mxu0 %v290
  %388 = vmatprep.subr.bf16.mxu0 0
  %389 = vmatpush1.bf16.msra.mxu0 %v289
  %390 = vmatprep.subr.bf16.mxu0 0
  %391 = vmatpush1.bf16.msra.mxu0 %v288
  %392 = vmatprep.subr.bf16.mxu0 0
  %393 = vmatpush1.bf16.msra.mxu0 %v287
  %394 = vmatprep.subr.bf16.mxu0 0
  %395 = vmatpush1.bf16.msra.mxu0 %v286
  %396 = vmatprep.subr.bf16.mxu0 0
  %397 = vmatpush1.bf16.msra.mxu0 %v285
  %398 = vmatprep.subr.bf16.mxu0 0
  %399 = vmatpush1.bf16.msra.mxu0 %v284
  %400 = vmatprep.subr.bf16.mxu0 0
  %401 = vmatpush2.bf16.msra.mxu0 %v299
  %402 = vmatprep.subr.bf16.mxu0 0
  %403 = vmatpush2.bf16.msra.mxu0 %v298
  %404 = vmatprep.subr.bf16.mxu0 0
  %405 = vmatpush2.bf16.msra.mxu0 %v297
  %406 = vmatprep.subr.bf16.mxu0 0
  %407 = vmatpush2.bf16.msra.mxu0 %v296
  %408 = vmatprep.subr.bf16.mxu0 0
  %409 = vmatpush2.bf16.msra.mxu0 %v295
  %410 = vmatprep.subr.bf16.mxu0 0
  %411 = vmatpush2.bf16.msra.mxu0 %v294
  %412 = vmatprep.subr.bf16.mxu0 0
  %413 = vmatpush2.bf16.msra.mxu0 %v293
  %414 = vmatprep.subr.bf16.mxu0 0
  %415 = vmatpush2.bf16.msra.mxu0 %v292
  %416 = vmatprep.mubr.bf16.mxu0 %v118
  %417 = vmatmul.mubr.bf16.gmra.mxu0 %v117
  %v418 = vpop.f32.mrf.mxu0
  %v419 = vadd.f32 %v379, %v418
  %v420 = vpop.f32.mrf.mxu0
  %v421 = vpop.f32.mrf.mxu0
  %v422 = vpop.f32.mrf.mxu0
  %423 = vdwg.mxu0
  %424 = vmatprep.subr.bf16.mxu0 0
  %425 = vmatpush1.bf16.msra.mxu0 0
  %426 = vmatprep.subr.bf16.mxu0 0
  %427 = vmatpush1.bf16.msra.mxu0 0
  %428 = vmatprep.subr.bf16.mxu0 0
  %429 = vmatpush1.bf16.msra.mxu0 0
  %430 = vmatprep.subr.bf16.mxu0 0
  %431 = vmatpush1.bf16.msra.mxu0 0
  %432 = vmatprep.subr.bf16.mxu0 0
  %433 = vmatpush1.bf16.msra.mxu0 %v303
  %434 = vmatprep.subr.bf16.mxu0 0
  %435 = vmatpush1.bf16.msra.mxu0 %v302
  %436 = vmatprep.subr.bf16.mxu0 0
  %437 = vmatpush1.bf16.msra.mxu0 %v301
  %438 = vmatprep.subr.bf16.mxu0 0
  %439 = vmatpush1.bf16.msra.mxu0 %v300
  %440 = vmatprep.subr.bf16.mxu0 0
  %441 = vmatpush2.bf16.msra.mxu0 0
  %442 = vmatprep.subr.bf16.mxu0 0
  %443 = vmatpush2.bf16.msra.mxu0 0
  %444 = vmatprep.subr.bf16.mxu0 0
  %445 = vmatpush2.bf16.msra.mxu0 0
  %446 = vmatprep.subr.bf16.mxu0 0
  %447 = vmatpush2.bf16.msra.mxu0 0
  %448 = vmatprep.subr.bf16.mxu0 0
  %449 = vmatpush2.bf16.msra.mxu0 0
  %450 = vmatprep.subr.bf16.mxu0 0
  %451 = vmatpush2.bf16.msra.mxu0 0
  %452 = vmatprep.subr.bf16.mxu0 0
  %453 = vmatpush2.bf16.msra.mxu0 0
  %454 = vmatprep.subr.bf16.mxu0 0
  %455 = vmatpush2.bf16.msra.mxu0 0
  %456 = vmatprep.mubr.bf16.mxu0 0
  %457 = vmatmul.mubr.bf16.gmra.mxu0 %v342
  %v458 = vpop.f32.mrf.mxu0
  %v459 = vadd.f32 %v419, %v458
  %v460 = vpop.f32.mrf.mxu0
  %v461 = vpop.f32.mrf.mxu0
  %v462 = vpop.f32.mrf.mxu0
  %463 = vdwg.mxu0
  %v464 = vmul.f32 %v459, %v95
  %v465 = vadd.f32 %v464, %v102
  %s466 = scalar_lea.vmem %s0, 20
  %v467 = vld [vmem:[%s466] sm:$0xff]
  %v468 = vld [vmem:[%s466 + $0x8] sm:$0xff]
  %v469 = vld [vmem:[%s466 + $0x10] sm:$0xf]
  %v473 = vunpack.c.l.b16 %v467
  %v474 = vunpack.c.h.b16 %v467
  %v475 = vunpack.c.l.b16 %v468
  %v476 = vunpack.c.h.b16 %v468
  %v477 = vunpack.c.l.b16 %v469
  %v478 = vpack.c.b16 %v473, %v473
  %v479 = vpack.c.b16 %v474, %v474
  %v480 = vpack.c.b16 %v475, %v475
  %v481 = vpack.c.b16 %v476, %v476
  %v482 = vpack.c.b16 %v477, %v477
  %v488 = vsel %vm340, %v482, 0
  %490 = vmatprep.subr.bf16.mxu0 0
  %491 = vmatpush1.bf16.msra.mxu0 %v275
  %492 = vmatprep.subr.bf16.mxu0 0
  %493 = vmatpush1.bf16.msra.mxu0 %v274
  %494 = vmatprep.subr.bf16.mxu0 0
  %495 = vmatpush1.bf16.msra.mxu0 %v273
  %496 = vmatprep.subr.bf16.mxu0 0
  %497 = vmatpush1.bf16.msra.mxu0 %v272
  %498 = vmatprep.subr.bf16.mxu0 0
  %499 = vmatpush1.bf16.msra.mxu0 %v271
  %500 = vmatprep.subr.bf16.mxu0 0
  %501 = vmatpush1.bf16.msra.mxu0 %v270
  %502 = vmatprep.subr.bf16.mxu0 0
  %503 = vmatpush1.bf16.msra.mxu0 %v269
  %504 = vmatprep.subr.bf16.mxu0 0
  %505 = vmatpush1.bf16.msra.mxu0 %v268
  %506 = vmatprep.subr.bf16.mxu0 0
  %507 = vmatpush2.bf16.msra.mxu0 %v283
  %508 = vmatprep.subr.bf16.mxu0 0
  %509 = vmatpush2.bf16.msra.mxu0 %v282
  %510 = vmatprep.subr.bf16.mxu0 0
  %511 = vmatpush2.bf16.msra.mxu0 %v281
  %512 = vmatprep.subr.bf16.mxu0 0
  %513 = vmatpush2.bf16.msra.mxu0 %v280
  %514 = vmatprep.subr.bf16.mxu0 0
  %515 = vmatpush2.bf16.msra.mxu0 %v279
  %516 = vmatprep.subr.bf16.mxu0 0
  %517 = vmatpush2.bf16.msra.mxu0 %v278
  %518 = vmatprep.subr.bf16.mxu0 0
  %519 = vmatpush2.bf16.msra.mxu0 %v277
  %520 = vmatprep.subr.bf16.mxu0 0
  %521 = vmatpush2.bf16.msra.mxu0 %v276
  %522 = vmatprep.mubr.bf16.mxu0 %v479
  %523 = vmatmul.mubr.bf16.gmra.mxu0 %v478
  %v524 = vpop.f32.mrf.mxu0
  %v525 = vadd.f32 0.0, %v524
  %v526 = vpop.f32.mrf.mxu0
  %v527 = vpop.f32.mrf.mxu0
  %v528 = vpop.f32.mrf.mxu0
  %529 = vdwg.mxu0
  %530 = vmatprep.subr.bf16.mxu0 0
  %531 = vmatpush1.bf16.msra.mxu0 %v291
  %532 = vmatprep.subr.bf16.mxu0 0
  %533 = vmatpush1.bf16.msra.mxu0 %v290
  %534 = vmatprep.subr.bf16.mxu0 0
  %535 = vmatpush1.bf16.msra.mxu0 %v289
  %536 = vmatprep.subr.bf16.mxu0 0
  %537 = vmatpush1.bf16.msra.mxu0 %v288
  %538 = vmatprep.subr.bf16.mxu0 0
  %539 = vmatpush1.bf16.msra.mxu0 %v287
  %540 = vmatprep.subr.bf16.mxu0 0
  %541 = vmatpush1.bf16.msra.mxu0 %v286
  %542 = vmatprep.subr.bf16.mxu0 0
  %543 = vmatpush1.bf16.msra.mxu0 %v285
  %544 = vmatprep.subr.bf16.mxu0 0
  %545 = vmatpush1.bf16.msra.mxu0 %v284
  %546 = vmatprep.subr.bf16.mxu0 0
  %547 = vmatpush2.bf16.msra.mxu0 %v299
  %548 = vmatprep.subr.bf16.mxu0 0
  %549 = vmatpush2.bf16.msra.mxu0 %v298
  %550 = vmatprep.subr.bf16.mxu0 0
  %551 = vmatpush2.bf16.msra.mxu0 %v297
  %552 = vmatprep.subr.bf16.mxu0 0
  %553 = vmatpush2.bf16.msra.mxu0 %v296
  %554 = vmatprep.subr.bf16.mxu0 0
  %555 = vmatpush2.bf16.msra.mxu0 %v295
  %556 = vmatprep.subr.bf16.mxu0 0
  %557 = vmatpush2.bf16.msra.mxu0 %v294
  %558 = vmatprep.subr.bf16.mxu0 0
  %559 = vmatpush2.bf16.msra.mxu0 %v293
  %560 = vmatprep.subr.bf16.mxu0 0
  %561 = vmatpush2.bf16.msra.mxu0 %v292
  %562 = vmatprep.mubr.bf16.mxu0 %v481
  %563 = vmatmul.mubr.bf16.gmra.mxu0 %v480
  %v564 = vpop.f32.mrf.mxu0
  %v565 = vadd.f32 %v525, %v564
  %v566 = vpop.f32.mrf.mxu0
  %v567 = vpop.f32.mrf.mxu0
  %v568 = vpop.f32.mrf.mxu0
  %569 = vdwg.mxu0
  %570 = vmatprep.subr.bf16.mxu0 0
  %571 = vmatpush1.bf16.msra.mxu0 0
  %572 = vmatprep.subr.bf16.mxu0 0
  %573 = vmatpush1.bf16.msra.mxu0 0
  %574 = vmatprep.subr.bf16.mxu0 0
  %575 = vmatpush1.bf16.msra.mxu0 0
  %576 = vmatprep.subr.bf16.mxu0 0
  %577 = vmatpush1.bf16.msra.mxu0 0
  %578 = vmatprep.subr.bf16.mxu0 0
  %579 = vmatpush1.bf16.msra.mxu0 %v303
  %580 = vmatprep.subr.bf16.mxu0 0
  %581 = vmatpush1.bf16.msra.mxu0 %v302
  %582 = vmatprep.subr.bf16.mxu0 0
  %583 = vmatpush1.bf16.msra.mxu0 %v301
  %584 = vmatprep.subr.bf16.mxu0 0
  %585 = vmatpush1.bf16.msra.mxu0 %v300
  %586 = vmatprep.subr.bf16.mxu0 0
  %587 = vmatpush2.bf16.msra.mxu0 0
  %588 = vmatprep.subr.bf16.mxu0 0
  %589 = vmatpush2.bf16.msra.mxu0 0
  %590 = vmatprep.subr.bf16.mxu0 0
  %591 = vmatpush2.bf16.msra.mxu0 0
  %592 = vmatprep.subr.bf16.mxu0 0
  %593 = vmatpush2.bf16.msra.mxu0 0
  %594 = vmatprep.subr.bf16.mxu0 0
  %595 = vmatpush2.bf16.msra.mxu0 0
  %596 = vmatprep.subr.bf16.mxu0 0
  %597 = vmatpush2.bf16.msra.mxu0 0
  %598 = vmatprep.subr.bf16.mxu0 0
  %599 = vmatpush2.bf16.msra.mxu0 0
  %600 = vmatprep.subr.bf16.mxu0 0
  %601 = vmatpush2.bf16.msra.mxu0 0
  %602 = vmatprep.mubr.bf16.mxu0 0
  %603 = vmatmul.mubr.bf16.gmra.mxu0 %v488
  %v604 = vpop.f32.mrf.mxu0
  %v605 = vadd.f32 %v565, %v604
  %v606 = vpop.f32.mrf.mxu0
  %v607 = vpop.f32.mrf.mxu0
  %v608 = vpop.f32.mrf.mxu0
  %609 = vdwg.mxu0
  %v610 = vmul.f32 %v605, %v95
  %v611 = vadd.f32 %v610, %v102
  %v612 = vmax.f32 %v465, %v611
  %s613 = scalar_lea.vmem %s0, 40
  %v614 = vld [vmem:[%s613] sm:$0xff]
  %v615 = vld [vmem:[%s613 + $0x8] sm:$0xff]
  %v616 = vld [vmem:[%s613 + $0x10] sm:$0xf]
  %v620 = vunpack.c.l.b16 %v614
  %v621 = vunpack.c.h.b16 %v614
  %v622 = vunpack.c.l.b16 %v615
  %v623 = vunpack.c.h.b16 %v615
  %v624 = vunpack.c.l.b16 %v616
  %v625 = vpack.c.b16 %v620, %v620
  %v626 = vpack.c.b16 %v621, %v621
  %v627 = vpack.c.b16 %v622, %v622
  %v628 = vpack.c.b16 %v623, %v623
  %v629 = vpack.c.b16 %v624, %v624
  %v635 = vsel %vm340, %v629, 0
  %637 = vmatprep.subr.bf16.mxu0 0
  %638 = vmatpush1.bf16.msra.mxu0 %v275
  %639 = vmatprep.subr.bf16.mxu0 0
  %640 = vmatpush1.bf16.msra.mxu0 %v274
  %641 = vmatprep.subr.bf16.mxu0 0
  %642 = vmatpush1.bf16.msra.mxu0 %v273
  %643 = vmatprep.subr.bf16.mxu0 0
  %644 = vmatpush1.bf16.msra.mxu0 %v272
  %645 = vmatprep.subr.bf16.mxu0 0
  %646 = vmatpush1.bf16.msra.mxu0 %v271
  %647 = vmatprep.subr.bf16.mxu0 0
  %648 = vmatpush1.bf16.msra.mxu0 %v270
  %649 = vmatprep.subr.bf16.mxu0 0
  %650 = vmatpush1.bf16.msra.mxu0 %v269
  %651 = vmatprep.subr.bf16.mxu0 0
  %652 = vmatpush1.bf16.msra.mxu0 %v268
  %653 = vmatprep.subr.bf16.mxu0 0
  %654 = vmatpush2.bf16.msra.mxu0 %v283
  %655 = vmatprep.subr.bf16.mxu0 0
  %656 = vmatpush2.bf16.msra.mxu0 %v282
  %657 = vmatprep.subr.bf16.mxu0 0
  %658 = vmatpush2.bf16.msra.mxu0 %v281
  %659 = vmatprep.subr.bf16.mxu0 0
  %660 = vmatpush2.bf16.msra.mxu0 %v280
  %661 = vmatprep.subr.bf16.mxu0 0
  %662 = vmatpush2.bf16.msra.mxu0 %v279
  %663 = vmatprep.subr.bf16.mxu0 0
  %664 = vmatpush2.bf16.msra.mxu0 %v278
  %665 = vmatprep.subr.bf16.mxu0 0
  %666 = vmatpush2.bf16.msra.mxu0 %v277
  %667 = vmatprep.subr.bf16.mxu0 0
  %668 = vmatpush2.bf16.msra.mxu0 %v276
  %669 = vmatprep.mubr.bf16.mxu0 %v626
  %670 = vmatmul.mubr.bf16.gmra.mxu0 %v625
  %v671 = vpop.f32.mrf.mxu0
  %v672 = vadd.f32 0.0, %v671
  %v673 = vpop.f32.mrf.mxu0
  %v674 = vpop.f32.mrf.mxu0
  %v675 = vpop.f32.mrf.mxu0
  %676 = vdwg.mxu0
  %677 = vmatprep.subr.bf16.mxu0 0
  %678 = vmatpush1.bf16.msra.mxu0 %v291
  %679 = vmatprep.subr.bf16.mxu0 0
  %680 = vmatpush1.bf16.msra.mxu0 %v290
  %681 = vmatprep.subr.bf16.mxu0 0
  %682 = vmatpush1.bf16.msra.mxu0 %v289
  %683 = vmatprep.subr.bf16.mxu0 0
  %684 = vmatpush1.bf16.msra.mxu0 %v288
  %685 = vmatprep.subr.bf16.mxu0 0
  %686 = vmatpush1.bf16.msra.mxu0 %v287
  %687 = vmatprep.subr.bf16.mxu0 0
  %688 = vmatpush1.bf16.msra.mxu0 %v286
  %689 = vmatprep.subr.bf16.mxu0 0
  %690 = vmatpush1.bf16.msra.mxu0 %v285
  %691 = vmatprep.subr.bf16.mxu0 0
  %692 = vmatpush1.bf16.msra.mxu0 %v284
  %693 = vmatprep.subr.bf16.mxu0 0
  %694 = vmatpush2.bf16.msra.mxu0 %v299
  %695 = vmatprep.subr.bf16.mxu0 0
  %696 = vmatpush2.bf16.msra.mxu0 %v298
  %697 = vmatprep.subr.bf16.mxu0 0
  %698 = vmatpush2.bf16.msra.mxu0 %v297
  %699 = vmatprep.subr.bf16.mxu0 0
  %700 = vmatpush2.bf16.msra.mxu0 %v296
  %701 = vmatprep.subr.bf16.mxu0 0
  %702 = vmatpush2.bf16.msra.mxu0 %v295
  %703 = vmatprep.subr.bf16.mxu0 0
  %704 = vmatpush2.bf16.msra.mxu0 %v294
  %705 = vmatprep.subr.bf16.mxu0 0
  %706 = vmatpush2.bf16.msra.mxu0 %v293
  %707 = vmatprep.subr.bf16.mxu0 0
  %708 = vmatpush2.bf16.msra.mxu0 %v292
  %709 = vmatprep.mubr.bf16.mxu0 %v628
  %710 = vmatmul.mubr.bf16.gmra.mxu0 %v627
  %v711 = vpop.f32.mrf.mxu0
  %v712 = vadd.f32 %v672, %v711
  %v713 = vpop.f32.mrf.mxu0
  %v714 = vpop.f32.mrf.mxu0
  %v715 = vpop.f32.mrf.mxu0
  %716 = vdwg.mxu0
  %717 = vmatprep.subr.bf16.mxu0 0
  %718 = vmatpush1.bf16.msra.mxu0 0
  %719 = vmatprep.subr.bf16.mxu0 0
  %720 = vmatpush1.bf16.msra.mxu0 0
  %721 = vmatprep.subr.bf16.mxu0 0
  %722 = vmatpush1.bf16.msra.mxu0 0
  %723 = vmatprep.subr.bf16.mxu0 0
  %724 = vmatpush1.bf16.msra.mxu0 0
  %725 = vmatprep.subr.bf16.mxu0 0
  %726 = vmatpush1.bf16.msra.mxu0 %v303
  %727 = vmatprep.subr.bf16.mxu0 0
  %728 = vmatpush1.bf16.msra.mxu0 %v302
  %729 = vmatprep.subr.bf16.mxu0 0
  %730 = vmatpush1.bf16.msra.mxu0 %v301
  %731 = vmatprep.subr.bf16.mxu0 0
  %732 = vmatpush1.bf16.msra.mxu0 %v300
  %733 = vmatprep.subr.bf16.mxu0 0
  %734 = vmatpush2.bf16.msra.mxu0 0
  %735 = vmatprep.subr.bf16.mxu0 0
  %736 = vmatpush2.bf16.msra.mxu0 0
  %737 = vmatprep.subr.bf16.mxu0 0
  %738 = vmatpush2.bf16.msra.mxu0 0
  %739 = vmatprep.subr.bf16.mxu0 0
  %740 = vmatpush2.bf16.msra.mxu0 0
  %741 = vmatprep.subr.bf16.mxu0 0
  %742 = vmatpush2.bf16.msra.mxu0 0
  %743 = vmatprep.subr.bf16.mxu0 0
  %744 = vmatpush2.bf16.msra.mxu0 0
  %745 = vmatprep.subr.bf16.mxu0 0
  %746 = vmatpush2.bf16.msra.mxu0 0
  %747 = vmatprep.subr.bf16.mxu0 0
  %748 = vmatpush2.bf16.msra.mxu0 0
  %749 = vmatprep.mubr.bf16.mxu0 0
  %750 = vmatmul.mubr.bf16.gmra.mxu0 %v635
  %v751 = vpop.f32.mrf.mxu0
  %v752 = vadd.f32 %v712, %v751
  %v753 = vpop.f32.mrf.mxu0
  %v754 = vpop.f32.mrf.mxu0
  %v755 = vpop.f32.mrf.mxu0
  %756 = vdwg.mxu0
  %v757 = vmul.f32 %v752, %v95
  %v758 = vadd.f32 %v757, %v102
  %v759 = vmax.f32 %v612, %v758
  %s760 = scalar_lea.vmem %s0, 60
  %v761 = vld [vmem:[%s760] sm:$0xff]
  %v762 = vld [vmem:[%s760 + $0x8] sm:$0xff]
  %v763 = vld [vmem:[%s760 + $0x10] sm:$0xf]
  %v767 = vunpack.c.l.b16 %v761
  %v768 = vunpack.c.h.b16 %v761
  %v769 = vunpack.c.l.b16 %v762
  %v770 = vunpack.c.h.b16 %v762
  %v771 = vunpack.c.l.b16 %v763
  %v772 = vpack.c.b16 %v767, %v767
  %v773 = vpack.c.b16 %v768, %v768
  %v774 = vpack.c.b16 %v769, %v769
  %v775 = vpack.c.b16 %v770, %v770
  %v776 = vpack.c.b16 %v771, %v771
  %v782 = vsel %vm340, %v776, 0
  %784 = vmatprep.subr.bf16.mxu0 0
  %785 = vmatpush1.bf16.msra.mxu0 %v275
  %786 = vmatprep.subr.bf16.mxu0 0
  %787 = vmatpush1.bf16.msra.mxu0 %v274
  %788 = vmatprep.subr.bf16.mxu0 0
  %789 = vmatpush1.bf16.msra.mxu0 %v273
  %790 = vmatprep.subr.bf16.mxu0 0
  %791 = vmatpush1.bf16.msra.mxu0 %v272
  %792 = vmatprep.subr.bf16.mxu0 0
  %793 = vmatpush1.bf16.msra.mxu0 %v271
  %794 = vmatprep.subr.bf16.mxu0 0
  %795 = vmatpush1.bf16.msra.mxu0 %v270
  %796 = vmatprep.subr.bf16.mxu0 0
  %797 = vmatpush1.bf16.msra.mxu0 %v269
  %798 = vmatprep.subr.bf16.mxu0 0
  %799 = vmatpush1.bf16.msra.mxu0 %v268
  %800 = vmatprep.subr.bf16.mxu0 0
  %801 = vmatpush2.bf16.msra.mxu0 %v283
  %802 = vmatprep.subr.bf16.mxu0 0
  %803 = vmatpush2.bf16.msra.mxu0 %v282
  %804 = vmatprep.subr.bf16.mxu0 0
  %805 = vmatpush2.bf16.msra.mxu0 %v281
  %806 = vmatprep.subr.bf16.mxu0 0
  %807 = vmatpush2.bf16.msra.mxu0 %v280
  %808 = vmatprep.subr.bf16.mxu0 0
  %809 = vmatpush2.bf16.msra.mxu0 %v279
  %810 = vmatprep.subr.bf16.mxu0 0
  %811 = vmatpush2.bf16.msra.mxu0 %v278
  %812 = vmatprep.subr.bf16.mxu0 0
  %813 = vmatpush2.bf16.msra.mxu0 %v277
  %814 = vmatprep.subr.bf16.mxu0 0
  %815 = vmatpush2.bf16.msra.mxu0 %v276
  %816 = vmatprep.mubr.bf16.mxu0 %v773
  %817 = vmatmul.mubr.bf16.gmra.mxu0 %v772
  %v818 = vpop.f32.mrf.mxu0
  %v819 = vadd.f32 0.0, %v818
  %v820 = vpop.f32.mrf.mxu0
  %v821 = vpop.f32.mrf.mxu0
  %v822 = vpop.f32.mrf.mxu0
  %823 = vdwg.mxu0
  %824 = vmatprep.subr.bf16.mxu0 0
  %825 = vmatpush1.bf16.msra.mxu0 %v291
  %826 = vmatprep.subr.bf16.mxu0 0
  %827 = vmatpush1.bf16.msra.mxu0 %v290
  %828 = vmatprep.subr.bf16.mxu0 0
  %829 = vmatpush1.bf16.msra.mxu0 %v289
  %830 = vmatprep.subr.bf16.mxu0 0
  %831 = vmatpush1.bf16.msra.mxu0 %v288
  %832 = vmatprep.subr.bf16.mxu0 0
  %833 = vmatpush1.bf16.msra.mxu0 %v287
  %834 = vmatprep.subr.bf16.mxu0 0
  %835 = vmatpush1.bf16.msra.mxu0 %v286
  %836 = vmatprep.subr.bf16.mxu0 0
  %837 = vmatpush1.bf16.msra.mxu0 %v285
  %838 = vmatprep.subr.bf16.mxu0 0
  %839 = vmatpush1.bf16.msra.mxu0 %v284
  %840 = vmatprep.subr.bf16.mxu0 0
  %841 = vmatpush2.bf16.msra.mxu0 %v299
  %842 = vmatprep.subr.bf16.mxu0 0
  %843 = vmatpush2.bf16.msra.mxu0 %v298
  %844 = vmatprep.subr.bf16.mxu0 0
  %845 = vmatpush2.bf16.msra.mxu0 %v297
  %846 = vmatprep.subr.bf16.mxu0 0
  %847 = vmatpush2.bf16.msra.mxu0 %v296
  %848 = vmatprep.subr.bf16.mxu0 0
  %849 = vmatpush2.bf16.msra.mxu0 %v295
  %850 = vmatprep.subr.bf16.mxu0 0
  %851 = vmatpush2.bf16.msra.mxu0 %v294
  %852 = vmatprep.subr.bf16.mxu0 0
  %853 = vmatpush2.bf16.msra.mxu0 %v293
  %854 = vmatprep.subr.bf16.mxu0 0
  %855 = vmatpush2.bf16.msra.mxu0 %v292
  %856 = vmatprep.mubr.bf16.mxu0 %v775
  %857 = vmatmul.mubr.bf16.gmra.mxu0 %v774
  %v858 = vpop.f32.mrf.mxu0
  %v859 = vadd.f32 %v819, %v858
  %v860 = vpop.f32.mrf.mxu0
  %v861 = vpop.f32.mrf.mxu0
  %v862 = vpop.f32.mrf.mxu0
  %863 = vdwg.mxu0
  %864 = vmatprep.subr.bf16.mxu0 0
  %865 = vmatpush1.bf16.msra.mxu0 0
  %866 = vmatprep.subr.bf16.mxu0 0
  %867 = vmatpush1.bf16.msra.mxu0 0
  %868 = vmatprep.subr.bf16.mxu0 0
  %869 = vmatpush1.bf16.msra.mxu0 0
  %870 = vmatprep.subr.bf16.mxu0 0
  %871 = vmatpush1.bf16.msra.mxu0 0
  %872 = vmatprep.subr.bf16.mxu0 0
  %873 = vmatpush1.bf16.msra.mxu0 %v303
  %874 = vmatprep.subr.bf16.mxu0 0
  %875 = vmatpush1.bf16.msra.mxu0 %v302
  %876 = vmatprep.subr.bf16.mxu0 0
  %877 = vmatpush1.bf16.msra.mxu0 %v301
  %878 = vmatprep.subr.bf16.mxu0 0
  %879 = vmatpush1.bf16.msra.mxu0 %v300
  %880 = vmatprep.subr.bf16.mxu0 0
  %881 = vmatpush2.bf16.msra.mxu0 0
  %882 = vmatprep.subr.bf16.mxu0 0
  %883 = vmatpush2.bf16.msra.mxu0 0
  %884 = vmatprep.subr.bf16.mxu0 0
  %885 = vmatpush2.bf16.msra.mxu0 0
  %886 = vmatprep.subr.bf16.mxu0 0
  %887 = vmatpush2.bf16.msra.mxu0 0
  %888 = vmatprep.subr.bf16.mxu0 0
  %889 = vmatpush2.bf16.msra.mxu0 0
  %890 = vmatprep.subr.bf16.mxu0 0
  %891 = vmatpush2.bf16.msra.mxu0 0
  %892 = vmatprep.subr.bf16.mxu0 0
  %893 = vmatpush2.bf16.msra.mxu0 0
  %894 = vmatprep.subr.bf16.mxu0 0
  %895 = vmatpush2.bf16.msra.mxu0 0
  %896 = vmatprep.mubr.bf16.mxu0 0
  %897 = vmatmul.mubr.bf16.gmra.mxu0 %v782
  %v898 = vpop.f32.mrf.mxu0
  %v899 = vadd.f32 %v859, %v898
  %v900 = vpop.f32.mrf.mxu0
  %v901 = vpop.f32.mrf.mxu0
  %v902 = vpop.f32.mrf.mxu0
  %903 = vdwg.mxu0
  %v904 = vmul.f32 %v899, %v95
  %v905 = vadd.f32 %v904, %v102
  %v906 = vmax.f32 %v759, %v905
  %v907 = vmax.f32 %v906, 0.0
  %908 = vst [vmem:[%s4] sm:$0xff] %v907
  // Predicated region
  $region18: #{simple_cnn_forward.6} parent=0 // pred_check
    _
  $region19: #{simple_cnn_forward.6} parent=0 // pred_check_branch
    %910 = sbr.rel (0) target = $region21
  $region20: #{simple_cnn_forward.6} parent=0 // pred_region
    _
  $region21: #{simple_cnn_forward.6} parent=0 // pred_fallthru
    _
  // Predicated region
  $region22: #{simple_cnn_forward.6} parent=0 // pred_check
    _
  $region23: #{simple_cnn_forward.6} parent=0 // pred_check_branch
    %912 = sbr.rel (0) target = $region25
  $region24: #{simple_cnn_forward.6} parent=0 // pred_region
    _
  $region25: #{simple_cnn_forward.6} parent=0 // pred_fallthru
    _

// kernel: simple_cnn_forward.7
$region0: #{simple_cnn_forward.7}
  #allocation0 [shape = 'u32[]', space=smem, size = 0x4, offset = 0x4, fixed_abs, tag = 'smem constant byte address 0x4 - core index']
  #allocation1 [shape = 'u32[144,128]{1,0:T(1,128)}', space=vmem, size = 0x12000, scoped, tag = 'internal scratch']
  %s0 = inlined_call_operand.vmem [shape: bf16[4,2,1152], index: 0, kind: input, shape index: {}]
  %s1 = inlined_call_operand.vmem [shape: bf16[1152,256], index: 1, kind: input, shape index: {}]
  %s2 = inlined_call_operand.vmem [shape: f32[1,256], index: 2, kind: input, shape index: {}]
  %s3 = inlined_call_operand.vmem [shape: f32[1,256], index: 3, kind: input, shape index: {}]
  %s4 = inlined_call_operand.vmem [shape: bf16[256,128], index: 4, kind: input, shape index: {}]
  %s5 = inlined_call_operand.vmem [shape: f32[1,128], index: 5, kind: input, shape index: {}]
  %s6 = inlined_call_operand.vmem [shape: bf16[128,2], index: 6, kind: input, shape index: {}]
  %s7 = inlined_call_operand.vmem [shape: f32[1,2], index: 7, kind: input, shape index: {}]
  %s8 = inlined_call_operand.hbm [shape: f32[2,2], index: 8, kind: output, shape index: {}]
  %s9 = sld [smem:[#allocation0]]
  $region42: #{simple_cnn_forward.7} parent=0
    _
  %s11 = ssub.s32 1, %s9
  %s12 = scalar_select 0, %s11, %s9
  $region1: #{simple_cnn_forward.7} parent=0
    #allocation2 [shape = 'u8[1024]{0}', space=vmem, size = 0x400, scoped, tag = 'output window, operand 0, single buffered']
    #allocation3 [shape = 's32[1]{0}', space=sflag, size = 0x4, scoped, tag = 'scoped memory for simple_cnn_forward.7']
    %13 = vsyncpa [#allocation3], 0
    // Predicated region
    $region2: #{simple_cnn_forward.7} parent=1 // pred_check
      _
    $region3: #{simple_cnn_forward.7} parent=1 // pred_check_branch
      %15 = sbr.rel (0) target = $region5
    $region4: #{simple_cnn_forward.7} parent=1 // pred_region
      _
    $region5: #{simple_cnn_forward.7} parent=1 // pred_fallthru
      _
    // Predicated region
    $region6: #{simple_cnn_forward.7} parent=1 // pred_check
      _
    $region7: #{simple_cnn_forward.7} parent=1 // pred_check_branch
      %17 = sbr.rel (0) target = $region9
    $region8: #{simple_cnn_forward.7} parent=1 // pred_region
      _
    $region9: #{simple_cnn_forward.7} parent=1 // pred_fallthru
      _
    // Predicated region
    $region10: #{simple_cnn_forward.7} parent=1 // pred_check
      _
    $region11: #{simple_cnn_forward.7} parent=1 // pred_check_branch
      %19 = sbr.rel (0) target = $region13
    $region12: #{simple_cnn_forward.7} parent=1 // pred_region
      _
    $region13: #{simple_cnn_forward.7} parent=1 // pred_fallthru
      _
    // Predicated region
    $region14: #{simple_cnn_forward.7} parent=1 // pred_check
      _
    $region15: #{simple_cnn_forward.7} parent=1 // pred_check_branch
      %21 = sbr.rel (0) target = $region17
    $region16: #{simple_cnn_forward.7} parent=1 // pred_region
      _
    $region17: #{simple_cnn_forward.7} parent=1 // pred_fallthru
      _
    // Predicated region
    $region18: #{simple_cnn_forward.7} parent=1 // pred_check
      _
    $region19: #{simple_cnn_forward.7} parent=1 // pred_check_branch
      %23 = sbr.rel (0) target = $region21
    $region20: #{simple_cnn_forward.7} parent=1 // pred_region
      _
    $region21: #{simple_cnn_forward.7} parent=1 // pred_fallthru
      _
    // Predicated region
    $region22: #{simple_cnn_forward.7} parent=1 // pred_check
      _
    $region23: #{simple_cnn_forward.7} parent=1 // pred_check_branch
      %25 = sbr.rel (0) target = $region25
    $region24: #{simple_cnn_forward.7} parent=1 // pred_region
      _
    $region25: #{simple_cnn_forward.7} parent=1 // pred_fallthru
      _
    // Predicated region
    $region26: #{simple_cnn_forward.7} parent=1 // pred_check
      _
    $region27: #{simple_cnn_forward.7} parent=1 // pred_check_branch
      %27 = sbr.rel (0) target = $region29
    $region28: #{simple_cnn_forward.7} parent=1 // pred_region
      _
    $region29: #{simple_cnn_forward.7} parent=1 // pred_fallthru
      _
    // Predicated region
    $region30: #{simple_cnn_forward.7} parent=1 // pred_check
      _
    $region31: #{simple_cnn_forward.7} parent=1 // pred_check_branch
      %29 = sbr.rel (0) target = $region33
    $region32: #{simple_cnn_forward.7} parent=1 // pred_region
      _
    $region33: #{simple_cnn_forward.7} parent=1 // pred_fallthru
      _
    %v31 = vld [vmem:[%s1] sm:$0xff]
    %v32 = vld [vmem:[%s1 + $0x8] sm:$0xff]
    %v33 = vld [vmem:[%s1 + $0x10] sm:$0xff]
    %v34 = vld [vmem:[%s1 + $0x18] sm:$0xff]
    %v35 = vld [vmem:[%s1 + $0x20] sm:$0xff]
    %v36 = vld [vmem:[%s1 + $0x28] sm:$0xff]
    %v37 = vld [vmem:[%s1 + $0x30] sm:$0xff]
    %v38 = vld [vmem:[%s1 + $0x38] sm:$0xff]
    %v39 = vld [vmem:[%s1 + $0x40] sm:$0xff]
    %v40 = vld [vmem:[%s1 + $0x48] sm:$0xff]
    %v41 = vld [vmem:[%s1 + $0x50] sm:$0xff]
    %v42 = vld [vmem:[%s1 + $0x58] sm:$0xff]
    %v43 = vld [vmem:[%s1 + $0x60] sm:$0xff]
    %v44 = vld [vmem:[%s1 + $0x68] sm:$0xff]
    %v45 = vld [vmem:[%s1 + $0x70] sm:$0xff]
    %v46 = vld [vmem:[%s1 + $0x78] sm:$0xff]
    %v47 = vld [vmem:[%s1 + $0x80] sm:$0xff]
    %v48 = vld [vmem:[%s1 + $0x88] sm:$0xff]
    %v49 = vld [vmem:[%s1 + $0x90] sm:$0xff]
    %v50 = vld [vmem:[%s1 + $0x98] sm:$0xff]
    %v51 = vld [vmem:[%s1 + $0xa0] sm:$0xff]
    %v52 = vld [vmem:[%s1 + $0xa8] sm:$0xff]
    %v53 = vld [vmem:[%s1 + $0xb0] sm:$0xff]
    %v54 = vld [vmem:[%s1 + $0xb8] sm:$0xff]
    %v55 = vld [vmem:[%s1 + $0xc0] sm:$0xff]
    %v56 = vld [vmem:[%s1 + $0xc8] sm:$0xff]
    %v57 = vld [vmem:[%s1 + $0xd0] sm:$0xff]
    %v58 = vld [vmem:[%s1 + $0xd8] sm:$0xff]
    %v59 = vld [vmem:[%s1 + $0xe0] sm:$0xff]
    %v60 = vld [vmem:[%s1 + $0xe8] sm:$0xff]
    %v61 = vld [vmem:[%s1 + $0xf0] sm:$0xff]
    %v62 = vld [vmem:[%s1 + $0xf8] sm:$0xff]
    %v63 = vld [vmem:[%s1 + $0x100] sm:$0xff]
    %v64 = vld [vmem:[%s1 + $0x108] sm:$0xff]
    %v65 = vld [vmem:[%s1 + $0x110] sm:$0xff]
    %v66 = vld [vmem:[%s1 + $0x118] sm:$0xff]
    %v67 = vld [vmem:[%s1 + $0x120] sm:$0xff]
    %v68 = vld [vmem:[%s1 + $0x128] sm:$0xff]
    %v69 = vld [vmem:[%s1 + $0x130] sm:$0xff]
    %v70 = vld [vmem:[%s1 + $0x138] sm:$0xff]
    %v71 = vld [vmem:[%s1 + $0x140] sm:$0xff]
    %v72 = vld [vmem:[%s1 + $0x148] sm:$0xff]
    %v73 = vld [vmem:[%s1 + $0x150] sm:$0xff]
    %v74 = vld [vmem:[%s1 + $0x158] sm:$0xff]
    %v75 = vld [vmem:[%s1 + $0x160] sm:$0xff]
    %v76 = vld [vmem:[%s1 + $0x168] sm:$0xff]
    %v77 = vld [vmem:[%s1 + $0x170] sm:$0xff]
    %v78 = vld [vmem:[%s1 + $0x178] sm:$0xff]
    %v79 = vld [vmem:[%s1 + $0x180] sm:$0xff]
    %v80 = vld [vmem:[%s1 + $0x188] sm:$0xff]
    %v81 = vld [vmem:[%s1 + $0x190] sm:$0xff]
    %v82 = vld [vmem:[%s1 + $0x198] sm:$0xff]
    %v83 = vld [vmem:[%s1 + $0x1a0] sm:$0xff]
    %v84 = vld [vmem:[%s1 + $0x1a8] sm:$0xff]
    %v85 = vld [vmem:[%s1 + $0x1b0] sm:$0xff]
    %v86 = vld [vmem:[%s1 + $0x1b8] sm:$0xff]
    %v87 = vld [vmem:[%s1 + $0x1c0] sm:$0xff]
    %v88 = vld [vmem:[%s1 + $0x1c8] sm:$0xff]
    %v89 = vld [vmem:[%s1 + $0x1d0] sm:$0xff]
    %v90 = vld [vmem:[%s1 + $0x1d8] sm:$0xff]
    %v91 = vld [vmem:[%s1 + $0x1e0] sm:$0xff]
    %v92 = vld [vmem:[%s1 + $0x1e8] sm:$0xff]
    %v93 = vld [vmem:[%s1 + $0x1f0] sm:$0xff]
    %v94 = vld [vmem:[%s1 + $0x1f8] sm:$0xff]
    %v95 = vld [vmem:[%s1 + $0x200] sm:$0xff]
    %v96 = vld [vmem:[%s1 + $0x208] sm:$0xff]
    %v97 = vld [vmem:[%s1 + $0x210] sm:$0xff]
    %v98 = vld [vmem:[%s1 + $0x218] sm:$0xff]
    %v99 = vld [vmem:[%s1 + $0x220] sm:$0xff]
    %v100 = vld [vmem:[%s1 + $0x228] sm:$0xff]
    %v101 = vld [vmem:[%s1 + $0x230] sm:$0xff]
    %v102 = vld [vmem:[%s1 + $0x238] sm:$0xff]
    %v103 = vld [vmem:[%s1 + $0x240] sm:$0xff]
    %v104 = vld [vmem:[%s1 + $0x248] sm:$0xff]
    %v105 = vld [vmem:[%s1 + $0x250] sm:$0xff]
    %v106 = vld [vmem:[%s1 + $0x258] sm:$0xff]
    %v107 = vld [vmem:[%s1 + $0x260] sm:$0xff]
    %v108 = vld [vmem:[%s1 + $0x268] sm:$0xff]
    %v109 = vld [vmem:[%s1 + $0x270] sm:$0xff]
    %v110 = vld [vmem:[%s1 + $0x278] sm:$0xff]
    %v111 = vld [vmem:[%s1 + $0x280] sm:$0xff]
    %v112 = vld [vmem:[%s1 + $0x288] sm:$0xff]
    %v113 = vld [vmem:[%s1 + $0x290] sm:$0xff]
    %v114 = vld [vmem:[%s1 + $0x298] sm:$0xff]
    %v115 = vld [vmem:[%s1 + $0x2a0] sm:$0xff]
    %v116 = vld [vmem:[%s1 + $0x2a8] sm:$0xff]
    %v117 = vld [vmem:[%s1 + $0x2b0] sm:$0xff]
    %v118 = vld [vmem:[%s1 + $0x2b8] sm:$0xff]
    %v119 = vld [vmem:[%s1 + $0x2c0] sm:$0xff]
    %v120 = vld [vmem:[%s1 + $0x2c8] sm:$0xff]
    %v121 = vld [vmem:[%s1 + $0x2d0] sm:$0xff]
    %v122 = vld [vmem:[%s1 + $0x2d8] sm:$0xff]
    %v123 = vld [vmem:[%s1 + $0x2e0] sm:$0xff]
    %v124 = vld [vmem:[%s1 + $0x2e8] sm:$0xff]
    %v125 = vld [vmem:[%s1 + $0x2f0] sm:$0xff]
    %v126 = vld [vmem:[%s1 + $0x2f8] sm:$0xff]
    %v127 = vld [vmem:[%s1 + $0x300] sm:$0xff]
    %v128 = vld [vmem:[%s1 + $0x308] sm:$0xff]
    %v129 = vld [vmem:[%s1 + $0x310] sm:$0xff]
    %v130 = vld [vmem:[%s1 + $0x318] sm:$0xff]
    %v131 = vld [vmem:[%s1 + $0x320] sm:$0xff]
    %v132 = vld [vmem:[%s1 + $0x328] sm:$0xff]
    %v133 = vld [vmem:[%s1 + $0x330] sm:$0xff]
    %v134 = vld [vmem:[%s1 + $0x338] sm:$0xff]
    %v135 = vld [vmem:[%s1 + $0x340] sm:$0xff]
    %v136 = vld [vmem:[%s1 + $0x348] sm:$0xff]
    %v137 = vld [vmem:[%s1 + $0x350] sm:$0xff]
    %v138 = vld [vmem:[%s1 + $0x358] sm:$0xff]
    %v139 = vld [vmem:[%s1 + $0x360] sm:$0xff]
    %v140 = vld [vmem:[%s1 + $0x368] sm:$0xff]
    %v141 = vld [vmem:[%s1 + $0x370] sm:$0xff]
    %v142 = vld [vmem:[%s1 + $0x378] sm:$0xff]
    %v143 = vld [vmem:[%s1 + $0x380] sm:$0xff]
    %v144 = vld [vmem:[%s1 + $0x388] sm:$0xff]
    %v145 = vld [vmem:[%s1 + $0x390] sm:$0xff]
    %v146 = vld [vmem:[%s1 + $0x398] sm:$0xff]
    %v147 = vld [vmem:[%s1 + $0x3a0] sm:$0xff]
    %v148 = vld [vmem:[%s1 + $0x3a8] sm:$0xff]
    %v149 = vld [vmem:[%s1 + $0x3b0] sm:$0xff]
    %v150 = vld [vmem:[%s1 + $0x3b8] sm:$0xff]
    %v151 = vld [vmem:[%s1 + $0x3c0] sm:$0xff]
    %v152 = vld [vmem:[%s1 + $0x3c8] sm:$0xff]
    %v153 = vld [vmem:[%s1 + $0x3d0] sm:$0xff]
    %v154 = vld [vmem:[%s1 + $0x3d8] sm:$0xff]
    %v155 = vld [vmem:[%s1 + $0x3e0] sm:$0xff]
    %v156 = vld [vmem:[%s1 + $0x3e8] sm:$0xff]
    %v157 = vld [vmem:[%s1 + $0x3f0] sm:$0xff]
    %v158 = vld [vmem:[%s1 + $0x3f8] sm:$0xff]
    %v159 = vld [vmem:[%s1 + $0x400] sm:$0xff]
    %v160 = vld [vmem:[%s1 + $0x408] sm:$0xff]
    %v161 = vld [vmem:[%s1 + $0x410] sm:$0xff]
    %v162 = vld [vmem:[%s1 + $0x418] sm:$0xff]
    %v163 = vld [vmem:[%s1 + $0x420] sm:$0xff]
    %v164 = vld [vmem:[%s1 + $0x428] sm:$0xff]
    %v165 = vld [vmem:[%s1 + $0x430] sm:$0xff]
    %v166 = vld [vmem:[%s1 + $0x438] sm:$0xff]
    %v167 = vld [vmem:[%s1 + $0x440] sm:$0xff]
    %v168 = vld [vmem:[%s1 + $0x448] sm:$0xff]
    %v169 = vld [vmem:[%s1 + $0x450] sm:$0xff]
    %v170 = vld [vmem:[%s1 + $0x458] sm:$0xff]
    %v171 = vld [vmem:[%s1 + $0x460] sm:$0xff]
    %v172 = vld [vmem:[%s1 + $0x468] sm:$0xff]
    %v173 = vld [vmem:[%s1 + $0x470] sm:$0xff]
    %v174 = vld [vmem:[%s1 + $0x478] sm:$0xff]
    %v175 = vld [vmem:[%s0] sm:$0xff]
    %v176 = vld [vmem:[%s0 + $0x8] sm:$0x1]
    %v179 = vcombine.high %v175, %v175
    %v181 = vunpack.c.l.s4 1966171168
    %v182 = vunpack.c.0.s8 %v181
    %v183 = vlaneseq
    %v184 = vshrl.u32 %v183, 7
    %v185 = vsub.s32 %v182, %v184
    %v186 = vrot.slane %v175, %v185
    %v188 = vunpack.c.l.s4 1966171168
    %v189 = vunpack.c.0.s8 %v188
    %v190 = vlaneseq
    %v191 = vshrl.u32 %v190, 7
    %v192 = vsub.s32 %v189, %v191
    %v193 = vrot.slane %v179, %v192
    %v194 = vcombine.high %v186, %v186
    %v195 = vcombine.high %v193, %v193
    %v197 = vunpack.c.l.s4 1966171168
    %v198 = vunpack.c.0.s8 %v197
    %v199 = vlaneseq
    %v200 = vshrl.u32 %v199, 7
    %v201 = vsub.s32 %v198, %v200
    %v202 = vrot.slane %v186, %v201
    %v204 = vunpack.c.l.s4 1966171168
    %v205 = vunpack.c.0.s8 %v204
    %v206 = vlaneseq
    %v207 = vshrl.u32 %v206, 7
    %v208 = vsub.s32 %v205, %v207
    %v209 = vrot.slane %v193, %v208
    %v211 = vunpack.c.l.s4 1966171168
    %v212 = vunpack.c.0.s8 %v211
    %v213 = vlaneseq
    %v214 = vshrl.u32 %v213, 7
    %v215 = vsub.s32 %v212, %v214
    %v216 = vrot.slane %v194, %v215
    %v218 = vunpack.c.l.s4 1966171168
    %v219 = vunpack.c.0.s8 %v218
    %v220 = vlaneseq
    %v221 = vshrl.u32 %v220, 7
    %v222 = vsub.s32 %v219, %v221
    %v223 = vrot.slane %v195, %v222
    %v224 = vcombine.high %v202, %v202
    %v225 = vcombine.high %v209, %v209
    %v226 = vcombine.high %v216, %v216
    %v227 = vcombine.high %v223, %v223
    %v229 = vunpack.c.l.s4 1966171168
    %v230 = vunpack.c.0.s8 %v229
    %v231 = vlaneseq
    %v232 = vshrl.u32 %v231, 7
    %v233 = vsub.s32 %v230, %v232
    %v234 = vrot.slane %v176, %v233
    %v236 = vunpack.c.l.s4 1966171168
    %v237 = vunpack.c.0.s8 %v236
    %v238 = vlaneseq
    %v239 = vshrl.u32 %v238, 7
    %v240 = vsub.s32 %v237, %v239
    %v241 = vrot.slane %v234, %v240
    %v395 = vunpack.c.l.b16 %v31
    %v396 = vunpack.c.h.b16 %v31
    %v397 = vunpack.c.l.b16 %v32
    %v398 = vunpack.c.h.b16 %v32
    %v399 = vunpack.c.l.b16 %v33
    %v400 = vunpack.c.h.b16 %v33
    %v401 = vunpack.c.l.b16 %v34
    %v402 = vunpack.c.h.b16 %v34
    %v403 = vunpack.c.l.b16 %v35
    %v404 = vunpack.c.h.b16 %v35
    %v405 = vunpack.c.l.b16 %v36
    %v406 = vunpack.c.h.b16 %v36
    %v407 = vunpack.c.l.b16 %v37
    %v408 = vunpack.c.h.b16 %v37
    %v409 = vunpack.c.l.b16 %v38
    %v410 = vunpack.c.h.b16 %v38
    %v411 = vunpack.c.l.b16 %v39
    %v412 = vunpack.c.h.b16 %v39
    %v413 = vunpack.c.l.b16 %v40
    %v414 = vunpack.c.h.b16 %v40
    %v415 = vunpack.c.l.b16 %v41
    %v416 = vunpack.c.h.b16 %v41
    %v417 = vunpack.c.l.b16 %v42
    %v418 = vunpack.c.h.b16 %v42
    %v419 = vunpack.c.l.b16 %v43
    %v420 = vunpack.c.h.b16 %v43
    %v421 = vunpack.c.l.b16 %v44
    %v422 = vunpack.c.h.b16 %v44
    %v423 = vunpack.c.l.b16 %v45
    %v424 = vunpack.c.h.b16 %v45
    %v425 = vunpack.c.l.b16 %v46
    %v426 = vunpack.c.h.b16 %v46
    %v427 = vunpack.c.l.b16 %v47
    %v428 = vunpack.c.h.b16 %v47
    %v429 = vunpack.c.l.b16 %v48
    %v430 = vunpack.c.h.b16 %v48
    %v431 = vunpack.c.l.b16 %v49
    %v432 = vunpack.c.h.b16 %v49
    %v433 = vunpack.c.l.b16 %v50
    %v434 = vunpack.c.h.b16 %v50
    %v435 = vunpack.c.l.b16 %v51
    %v436 = vunpack.c.h.b16 %v51
    %v437 = vunpack.c.l.b16 %v52
    %v438 = vunpack.c.h.b16 %v52
    %v439 = vunpack.c.l.b16 %v53
    %v440 = vunpack.c.h.b16 %v53
    %v441 = vunpack.c.l.b16 %v54
    %v442 = vunpack.c.h.b16 %v54
    %v443 = vunpack.c.l.b16 %v55
    %v444 = vunpack.c.h.b16 %v55
    %v445 = vunpack.c.l.b16 %v56
    %v446 = vunpack.c.h.b16 %v56
    %v447 = vunpack.c.l.b16 %v57
    %v448 = vunpack.c.h.b16 %v57
    %v449 = vunpack.c.l.b16 %v58
    %v450 = vunpack.c.h.b16 %v58
    %v451 = vunpack.c.l.b16 %v59
    %v452 = vunpack.c.h.b16 %v59
    %v453 = vunpack.c.l.b16 %v60
    %v454 = vunpack.c.h.b16 %v60
    %v455 = vunpack.c.l.b16 %v61
    %v456 = vunpack.c.h.b16 %v61
    %v457 = vunpack.c.l.b16 %v62
    %v458 = vunpack.c.h.b16 %v62
    %v459 = vunpack.c.l.b16 %v63
    %v460 = vunpack.c.h.b16 %v63
    %v461 = vunpack.c.l.b16 %v64
    %v462 = vunpack.c.h.b16 %v64
    %v463 = vunpack.c.l.b16 %v65
    %v464 = vunpack.c.h.b16 %v65
    %v465 = vunpack.c.l.b16 %v66
    %v466 = vunpack.c.h.b16 %v66
    %v467 = vunpack.c.l.b16 %v67
    %v468 = vunpack.c.h.b16 %v67
    %v469 = vunpack.c.l.b16 %v68
    %v470 = vunpack.c.h.b16 %v68
    %v471 = vunpack.c.l.b16 %v69
    %v472 = vunpack.c.h.b16 %v69
    %v473 = vunpack.c.l.b16 %v70
    %v474 = vunpack.c.h.b16 %v70
    %v475 = vunpack.c.l.b16 %v71
    %v476 = vunpack.c.h.b16 %v71
    %v477 = vunpack.c.l.b16 %v72
    %v478 = vunpack.c.h.b16 %v72
    %v479 = vunpack.c.l.b16 %v73
    %v480 = vunpack.c.h.b16 %v73
    %v481 = vunpack.c.l.b16 %v74
    %v482 = vunpack.c.h.b16 %v74
    %v483 = vunpack.c.l.b16 %v75
    %v484 = vunpack.c.h.b16 %v75
    %v485 = vunpack.c.l.b16 %v76
    %v486 = vunpack.c.h.b16 %v76
    %v487 = vunpack.c.l.b16 %v77
    %v488 = vunpack.c.h.b16 %v77
    %v489 = vunpack.c.l.b16 %v78
    %v490 = vunpack.c.h.b16 %v78
    %v491 = vunpack.c.l.b16 %v79
    %v492 = vunpack.c.h.b16 %v79
    %v493 = vunpack.c.l.b16 %v80
    %v494 = vunpack.c.h.b16 %v80
    %v495 = vunpack.c.l.b16 %v81
    %v496 = vunpack.c.h.b16 %v81
    %v497 = vunpack.c.l.b16 %v82
    %v498 = vunpack.c.h.b16 %v82
    %v499 = vunpack.c.l.b16 %v83
    %v500 = vunpack.c.h.b16 %v83
    %v501 = vunpack.c.l.b16 %v84
    %v502 = vunpack.c.h.b16 %v84
    %v503 = vunpack.c.l.b16 %v85
    %v504 = vunpack.c.h.b16 %v85
    %v505 = vunpack.c.l.b16 %v86
    %v506 = vunpack.c.h.b16 %v86
    %v507 = vunpack.c.l.b16 %v87
    %v508 = vunpack.c.h.b16 %v87
    %v509 = vunpack.c.l.b16 %v88
    %v510 = vunpack.c.h.b16 %v88
    %v511 = vunpack.c.l.b16 %v89
    %v512 = vunpack.c.h.b16 %v89
    %v513 = vunpack.c.l.b16 %v90
    %v514 = vunpack.c.h.b16 %v90
    %v515 = vunpack.c.l.b16 %v91
    %v516 = vunpack.c.h.b16 %v91
    %v517 = vunpack.c.l.b16 %v92
    %v518 = vunpack.c.h.b16 %v92
    %v519 = vunpack.c.l.b16 %v93
    %v520 = vunpack.c.h.b16 %v93
    %v521 = vunpack.c.l.b16 %v94
    %v522 = vunpack.c.h.b16 %v94
    %v523 = vunpack.c.l.b16 %v95
    %v524 = vunpack.c.h.b16 %v95
    %v525 = vunpack.c.l.b16 %v96
    %v526 = vunpack.c.h.b16 %v96
    %v527 = vunpack.c.l.b16 %v97
    %v528 = vunpack.c.h.b16 %v97
    %v529 = vunpack.c.l.b16 %v98
    %v530 = vunpack.c.h.b16 %v98
    %v531 = vunpack.c.l.b16 %v99
    %v532 = vunpack.c.h.b16 %v99
    %v533 = vunpack.c.l.b16 %v100
    %v534 = vunpack.c.h.b16 %v100
    %v535 = vunpack.c.l.b16 %v101
    %v536 = vunpack.c.h.b16 %v101
    %v537 = vunpack.c.l.b16 %v102
    %v538 = vunpack.c.h.b16 %v102
    %v539 = vunpack.c.l.b16 %v103
    %v540 = vunpack.c.h.b16 %v103
    %v541 = vunpack.c.l.b16 %v104
    %v542 = vunpack.c.h.b16 %v104
    %v543 = vunpack.c.l.b16 %v105
    %v544 = vunpack.c.h.b16 %v105
    %v545 = vunpack.c.l.b16 %v106
    %v546 = vunpack.c.h.b16 %v106
    %v547 = vunpack.c.l.b16 %v107
    %v548 = vunpack.c.h.b16 %v107
    %v549 = vunpack.c.l.b16 %v108
    %v550 = vunpack.c.h.b16 %v108
    %v551 = vunpack.c.l.b16 %v109
    %v552 = vunpack.c.h.b16 %v109
    %v553 = vunpack.c.l.b16 %v110
    %v554 = vunpack.c.h.b16 %v110
    %v555 = vunpack.c.l.b16 %v111
    %v556 = vunpack.c.h.b16 %v111
    %v557 = vunpack.c.l.b16 %v112
    %v558 = vunpack.c.h.b16 %v112
    %v559 = vunpack.c.l.b16 %v113
    %v560 = vunpack.c.h.b16 %v113
    %v561 = vunpack.c.l.b16 %v114
    %v562 = vunpack.c.h.b16 %v114
    %v563 = vunpack.c.l.b16 %v115
    %v564 = vunpack.c.h.b16 %v115
    %v565 = vunpack.c.l.b16 %v116
    %v566 = vunpack.c.h.b16 %v116
    %v567 = vunpack.c.l.b16 %v117
    %v568 = vunpack.c.h.b16 %v117
    %v569 = vunpack.c.l.b16 %v118
    %v570 = vunpack.c.h.b16 %v118
    %v571 = vunpack.c.l.b16 %v119
    %v572 = vunpack.c.h.b16 %v119
    %v573 = vunpack.c.l.b16 %v120
    %v574 = vunpack.c.h.b16 %v120
    %v575 = vunpack.c.l.b16 %v121
    %v576 = vunpack.c.h.b16 %v121
    %v577 = vunpack.c.l.b16 %v122
    %v578 = vunpack.c.h.b16 %v122
    %v579 = vunpack.c.l.b16 %v123
    %v580 = vunpack.c.h.b16 %v123
    %v581 = vunpack.c.l.b16 %v124
    %v582 = vunpack.c.h.b16 %v124
    %v583 = vunpack.c.l.b16 %v125
    %v584 = vunpack.c.h.b16 %v125
    %v585 = vunpack.c.l.b16 %v126
    %v586 = vunpack.c.h.b16 %v126
    %v587 = vunpack.c.l.b16 %v127
    %v588 = vunpack.c.h.b16 %v127
    %v589 = vunpack.c.l.b16 %v128
    %v590 = vunpack.c.h.b16 %v128
    %v591 = vunpack.c.l.b16 %v129
    %v592 = vunpack.c.h.b16 %v129
    %v593 = vunpack.c.l.b16 %v130
    %v594 = vunpack.c.h.b16 %v130
    %v595 = vunpack.c.l.b16 %v131
    %v596 = vunpack.c.h.b16 %v131
    %v597 = vunpack.c.l.b16 %v132
    %v598 = vunpack.c.h.b16 %v132
    %v599 = vunpack.c.l.b16 %v133
    %v600 = vunpack.c.h.b16 %v133
    %v601 = vunpack.c.l.b16 %v134
    %v602 = vunpack.c.h.b16 %v134
    %v603 = vunpack.c.l.b16 %v135
    %v604 = vunpack.c.h.b16 %v135
    %v605 = vunpack.c.l.b16 %v136
    %v606 = vunpack.c.h.b16 %v136
    %v607 = vunpack.c.l.b16 %v137
    %v608 = vunpack.c.h.b16 %v137
    %v609 = vunpack.c.l.b16 %v138
    %v610 = vunpack.c.h.b16 %v138
    %v611 = vunpack.c.l.b16 %v139
    %v612 = vunpack.c.h.b16 %v139
    %v613 = vunpack.c.l.b16 %v140
    %v614 = vunpack.c.h.b16 %v140
    %v615 = vunpack.c.l.b16 %v141
    %v616 = vunpack.c.h.b16 %v141
    %v617 = vunpack.c.l.b16 %v142
    %v618 = vunpack.c.h.b16 %v142
    %v619 = vunpack.c.l.b16 %v143
    %v620 = vunpack.c.h.b16 %v143
    %v621 = vunpack.c.l.b16 %v144
    %v622 = vunpack.c.h.b16 %v144
    %v623 = vunpack.c.l.b16 %v145
    %v624 = vunpack.c.h.b16 %v145
    %v625 = vunpack.c.l.b16 %v146
    %v626 = vunpack.c.h.b16 %v146
    %v627 = vunpack.c.l.b16 %v147
    %v628 = vunpack.c.h.b16 %v147
    %v629 = vunpack.c.l.b16 %v148
    %v630 = vunpack.c.h.b16 %v148
    %v631 = vunpack.c.l.b16 %v149
    %v632 = vunpack.c.h.b16 %v149
    %v633 = vunpack.c.l.b16 %v150
    %v634 = vunpack.c.h.b16 %v150
    %v635 = vunpack.c.l.b16 %v151
    %v636 = vunpack.c.h.b16 %v151
    %v637 = vunpack.c.l.b16 %v152
    %v638 = vunpack.c.h.b16 %v152
    %v639 = vunpack.c.l.b16 %v153
    %v640 = vunpack.c.h.b16 %v153
    %v641 = vunpack.c.l.b16 %v154
    %v642 = vunpack.c.h.b16 %v154
    %v643 = vunpack.c.l.b16 %v155
    %v644 = vunpack.c.h.b16 %v155
    %v645 = vunpack.c.l.b16 %v156
    %v646 = vunpack.c.h.b16 %v156
    %v647 = vunpack.c.l.b16 %v157
    %v648 = vunpack.c.h.b16 %v157
    %v649 = vunpack.c.l.b16 %v158
    %v650 = vunpack.c.h.b16 %v158
    %v651 = vunpack.c.l.b16 %v159
    %v652 = vunpack.c.h.b16 %v159
    %v653 = vunpack.c.l.b16 %v160
    %v654 = vunpack.c.h.b16 %v160
    %v655 = vunpack.c.l.b16 %v161
    %v656 = vunpack.c.h.b16 %v161
    %v657 = vunpack.c.l.b16 %v162
    %v658 = vunpack.c.h.b16 %v162
    %v659 = vunpack.c.l.b16 %v163
    %v660 = vunpack.c.h.b16 %v163
    %v661 = vunpack.c.l.b16 %v164
    %v662 = vunpack.c.h.b16 %v164
    %v663 = vunpack.c.l.b16 %v165
    %v664 = vunpack.c.h.b16 %v165
    %v665 = vunpack.c.l.b16 %v166
    %v666 = vunpack.c.h.b16 %v166
    %v667 = vunpack.c.l.b16 %v167
    %v668 = vunpack.c.h.b16 %v167
    %v669 = vunpack.c.l.b16 %v168
    %v670 = vunpack.c.h.b16 %v168
    %v671 = vunpack.c.l.b16 %v169
    %v672 = vunpack.c.h.b16 %v169
    %v673 = vunpack.c.l.b16 %v170
    %v674 = vunpack.c.h.b16 %v170
    %v675 = vunpack.c.l.b16 %v171
    %v676 = vunpack.c.h.b16 %v171
    %v677 = vunpack.c.l.b16 %v172
    %v678 = vunpack.c.h.b16 %v172
    %v679 = vunpack.c.l.b16 %v173
    %v680 = vunpack.c.h.b16 %v173
    %v681 = vunpack.c.l.b16 %v174
    %v682 = vunpack.c.h.b16 %v174
    %v683 = vpack.c.b16 %v397, %v395
    %v684 = vpack.c.b16 %v398, %v396
    %v685 = vpack.c.b16 %v401, %v399
    %v686 = vpack.c.b16 %v402, %v400
    %v687 = vpack.c.b16 %v405, %v403
    %v688 = vpack.c.b16 %v406, %v404
    %v689 = vpack.c.b16 %v409, %v407
    %v690 = vpack.c.b16 %v410, %v408
    %v691 = vpack.c.b16 %v413, %v411
    %v692 = vpack.c.b16 %v414, %v412
    %v693 = vpack.c.b16 %v417, %v415
    %v694 = vpack.c.b16 %v418, %v416
    %v695 = vpack.c.b16 %v421, %v419
    %v696 = vpack.c.b16 %v422, %v420
    %v697 = vpack.c.b16 %v425, %v423
    %v698 = vpack.c.b16 %v426, %v424
    %v699 = vpack.c.b16 %v429, %v427
    %v700 = vpack.c.b16 %v430, %v428
    %v701 = vpack.c.b16 %v433, %v431
    %v702 = vpack.c.b16 %v434, %v432
    %v703 = vpack.c.b16 %v437, %v435
    %v704 = vpack.c.b16 %v438, %v436
    %v705 = vpack.c.b16 %v441, %v439
    %v706 = vpack.c.b16 %v442, %v440
    %v707 = vpack.c.b16 %v445, %v443
    %v708 = vpack.c.b16 %v446, %v444
    %v709 = vpack.c.b16 %v449, %v447
    %v710 = vpack.c.b16 %v450, %v448
    %v711 = vpack.c.b16 %v453, %v451
    %v712 = vpack.c.b16 %v454, %v452
    %v713 = vpack.c.b16 %v457, %v455
    %v714 = vpack.c.b16 %v458, %v456
    %v715 = vpack.c.b16 %v461, %v459
    %v716 = vpack.c.b16 %v462, %v460
    %v717 = vpack.c.b16 %v465, %v463
    %v718 = vpack.c.b16 %v466, %v464
    %v719 = vpack.c.b16 %v469, %v467
    %v720 = vpack.c.b16 %v470, %v468
    %v721 = vpack.c.b16 %v473, %v471
    %v722 = vpack.c.b16 %v474, %v472
    %v723 = vpack.c.b16 %v477, %v475
    %v724 = vpack.c.b16 %v478, %v476
    %v725 = vpack.c.b16 %v481, %v479
    %v726 = vpack.c.b16 %v482, %v480
    %v727 = vpack.c.b16 %v485, %v483
    %v728 = vpack.c.b16 %v486, %v484
    %v729 = vpack.c.b16 %v489, %v487
    %v730 = vpack.c.b16 %v490, %v488
    %v731 = vpack.c.b16 %v493, %v491
    %v732 = vpack.c.b16 %v494, %v492
    %v733 = vpack.c.b16 %v497, %v495
    %v734 = vpack.c.b16 %v498, %v496
    %v735 = vpack.c.b16 %v501, %v499
    %v736 = vpack.c.b16 %v502, %v500
    %v737 = vpack.c.b16 %v505, %v503
    %v738 = vpack.c.b16 %v506, %v504
    %v739 = vpack.c.b16 %v509, %v507
    %v740 = vpack.c.b16 %v510, %v508
    %v741 = vpack.c.b16 %v513, %v511
    %v742 = vpack.c.b16 %v514, %v512
    %v743 = vpack.c.b16 %v517, %v515
    %v744 = vpack.c.b16 %v518, %v516
    %v745 = vpack.c.b16 %v521, %v519
    %v746 = vpack.c.b16 %v522, %v520
    %v747 = vpack.c.b16 %v525, %v523
    %v748 = vpack.c.b16 %v526, %v524
    %v749 = vpack.c.b16 %v529, %v527
    %v750 = vpack.c.b16 %v530, %v528
    %v751 = vpack.c.b16 %v533, %v531
    %v752 = vpack.c.b16 %v534, %v532
    %v753 = vpack.c.b16 %v537, %v535
    %v754 = vpack.c.b16 %v538, %v536
    %v755 = vpack.c.b16 %v541, %v539
    %v756 = vpack.c.b16 %v542, %v540
    %v757 = vpack.c.b16 %v545, %v543
    %v758 = vpack.c.b16 %v546, %v544
    %v759 = vpack.c.b16 %v549, %v547
    %v760 = vpack.c.b16 %v550, %v548
    %v761 = vpack.c.b16 %v553, %v551
    %v762 = vpack.c.b16 %v554, %v552
    %v763 = vpack.c.b16 %v557, %v555
    %v764 = vpack.c.b16 %v558, %v556
    %v765 = vpack.c.b16 %v561, %v559
    %v766 = vpack.c.b16 %v562, %v560
    %v767 = vpack.c.b16 %v565, %v563
    %v768 = vpack.c.b16 %v566, %v564
    %v769 = vpack.c.b16 %v569, %v567
    %v770 = vpack.c.b16 %v570, %v568
    %v771 = vpack.c.b16 %v573, %v571
    %v772 = vpack.c.b16 %v574, %v572
    %v773 = vpack.c.b16 %v577, %v575
    %v774 = vpack.c.b16 %v578, %v576
    %v775 = vpack.c.b16 %v581, %v579
    %v776 = vpack.c.b16 %v582, %v580
    %v777 = vpack.c.b16 %v585, %v583
    %v778 = vpack.c.b16 %v586, %v584
    %v779 = vpack.c.b16 %v589, %v587
    %v780 = vpack.c.b16 %v590, %v588
    %v781 = vpack.c.b16 %v593, %v591
    %v782 = vpack.c.b16 %v594, %v592
    %v783 = vpack.c.b16 %v597, %v595
    %v784 = vpack.c.b16 %v598, %v596
    %v785 = vpack.c.b16 %v601, %v599
    %v786 = vpack.c.b16 %v602, %v600
    %v787 = vpack.c.b16 %v605, %v603
    %v788 = vpack.c.b16 %v606, %v604
    %v789 = vpack.c.b16 %v609, %v607
    %v790 = vpack.c.b16 %v610, %v608
    %v791 = vpack.c.b16 %v613, %v611
    %v792 = vpack.c.b16 %v614, %v612
    %v793 = vpack.c.b16 %v617, %v615
    %v794 = vpack.c.b16 %v618, %v616
    %v795 = vpack.c.b16 %v621, %v619
    %v796 = vpack.c.b16 %v622, %v620
    %v797 = vpack.c.b16 %v625, %v623
    %v798 = vpack.c.b16 %v626, %v624
    %v799 = vpack.c.b16 %v629, %v627
    %v800 = vpack.c.b16 %v630, %v628
    %v801 = vpack.c.b16 %v633, %v631
    %v802 = vpack.c.b16 %v634, %v632
    %v803 = vpack.c.b16 %v637, %v635
    %v804 = vpack.c.b16 %v638, %v636
    %v805 = vpack.c.b16 %v641, %v639
    %v806 = vpack.c.b16 %v642, %v640
    %v807 = vpack.c.b16 %v645, %v643
    %v808 = vpack.c.b16 %v646, %v644
    %v809 = vpack.c.b16 %v649, %v647
    %v810 = vpack.c.b16 %v650, %v648
    %v811 = vpack.c.b16 %v653, %v651
    %v812 = vpack.c.b16 %v654, %v652
    %v813 = vpack.c.b16 %v657, %v655
    %v814 = vpack.c.b16 %v658, %v656
    %v815 = vpack.c.b16 %v661, %v659
    %v816 = vpack.c.b16 %v662, %v660
    %v817 = vpack.c.b16 %v665, %v663
    %v818 = vpack.c.b16 %v666, %v664
    %v819 = vpack.c.b16 %v669, %v667
    %v820 = vpack.c.b16 %v670, %v668
    %v821 = vpack.c.b16 %v673, %v671
    %v822 = vpack.c.b16 %v674, %v672
    %v823 = vpack.c.b16 %v677, %v675
    %v824 = vpack.c.b16 %v678, %v676
    %v825 = vpack.c.b16 %v681, %v679
    %v826 = vpack.c.b16 %v682, %v680
    %971 = vmatprep.subr.bf16.mxu0 %v698
    %972 = vmatpush1.bf16.msra.mxu0 %v697
    %973 = vmatprep.subr.bf16.mxu0 %v696
    %974 = vmatpush1.bf16.msra.mxu0 %v695
    %975 = vmatprep.subr.bf16.mxu0 %v694
    %976 = vmatpush1.bf16.msra.mxu0 %v693
    %977 = vmatprep.subr.bf16.mxu0 %v692
    %978 = vmatpush1.bf16.msra.mxu0 %v691
    %979 = vmatprep.subr.bf16.mxu0 %v690
    %980 = vmatpush1.bf16.msra.mxu0 %v689
    %981 = vmatprep.subr.bf16.mxu0 %v688
    %982 = vmatpush1.bf16.msra.mxu0 %v687
    %983 = vmatprep.subr.bf16.mxu0 %v686
    %984 = vmatpush1.bf16.msra.mxu0 %v685
    %985 = vmatprep.subr.bf16.mxu0 %v684
    %986 = vmatpush1.bf16.msra.mxu0 %v683
    %987 = vmatprep.subr.bf16.mxu0 %v714
    %988 = vmatpush2.bf16.msra.mxu0 %v713
    %989 = vmatprep.subr.bf16.mxu0 %v712
    %990 = vmatpush2.bf16.msra.mxu0 %v711
    %991 = vmatprep.subr.bf16.mxu0 %v710
    %992 = vmatpush2.bf16.msra.mxu0 %v709
    %993 = vmatprep.subr.bf16.mxu0 %v708
    %994 = vmatpush2.bf16.msra.mxu0 %v707
    %995 = vmatprep.subr.bf16.mxu0 %v706
    %996 = vmatpush2.bf16.msra.mxu0 %v705
    %997 = vmatprep.subr.bf16.mxu0 %v704
    %998 = vmatpush2.bf16.msra.mxu0 %v703
    %999 = vmatprep.subr.bf16.mxu0 %v702
    %1000 = vmatpush2.bf16.msra.mxu0 %v701
    %1001 = vmatprep.subr.bf16.mxu0 %v700
    %1002 = vmatpush2.bf16.msra.mxu0 %v699
    %1003 = vmatprep.mubr.bf16.mxu0 %v216
    %1004 = vmatmul.mubr.bf16.gmra.mxu0 %v202
    %v1005 = vpop.f32.mrf.mxu0
    %v1006 = vadd.f32 0.0, %v1005
    %v1007 = vpop.f32.mrf.mxu0
    %v1008 = vadd.f32 0.0, %v1007
    %v1009 = vpop.f32.mrf.mxu0
    %v1010 = vpop.f32.mrf.mxu0
    %1011 = vdwg.mxu0
    %1012 = vmatprep.subr.bf16.mxu0 %v730
    %1013 = vmatpush1.bf16.msra.mxu0 %v729
    %1014 = vmatprep.subr.bf16.mxu0 %v728
    %1015 = vmatpush1.bf16.msra.mxu0 %v727
    %1016 = vmatprep.subr.bf16.mxu0 %v726
    %1017 = vmatpush1.bf16.msra.mxu0 %v725
    %1018 = vmatprep.subr.bf16.mxu0 %v724
    %1019 = vmatpush1.bf16.msra.mxu0 %v723
    %1020 = vmatprep.subr.bf16.mxu0 %v722
    %1021 = vmatpush1.bf16.msra.mxu0 %v721
    %1022 = vmatprep.subr.bf16.mxu0 %v720
    %1023 = vmatpush1.bf16.msra.mxu0 %v719
    %1024 = vmatprep.subr.bf16.mxu0 %v718
    %1025 = vmatpush1.bf16.msra.mxu0 %v717
    %1026 = vmatprep.subr.bf16.mxu0 %v716
    %1027 = vmatpush1.bf16.msra.mxu0 %v715
    %1028 = vmatprep.subr.bf16.mxu0 %v746
    %1029 = vmatpush2.bf16.msra.mxu0 %v745
    %1030 = vmatprep.subr.bf16.mxu0 %v744
    %1031 = vmatpush2.bf16.msra.mxu0 %v743
    %1032 = vmatprep.subr.bf16.mxu0 %v742
    %1033 = vmatpush2.bf16.msra.mxu0 %v741
    %1034 = vmatprep.subr.bf16.mxu0 %v740
    %1035 = vmatpush2.bf16.msra.mxu0 %v739
    %1036 = vmatprep.subr.bf16.mxu0 %v738
    %1037 = vmatpush2.bf16.msra.mxu0 %v737
    %1038 = vmatprep.subr.bf16.mxu0 %v736
    %1039 = vmatpush2.bf16.msra.mxu0 %v735
    %1040 = vmatprep.subr.bf16.mxu0 %v734
    %1041 = vmatpush2.bf16.msra.mxu0 %v733
    %1042 = vmatprep.subr.bf16.mxu0 %v732
    %1043 = vmatpush2.bf16.msra.mxu0 %v731
    %1044 = vmatprep.mubr.bf16.mxu0 %v226
    %1045 = vmatmul.mubr.bf16.gmra.mxu0 %v224
    %v1046 = vpop.f32.mrf.mxu0
    %v1047 = vadd.f32 %v1006, %v1046
    %v1048 = vpop.f32.mrf.mxu0
    %v1049 = vadd.f32 %v1008, %v1048
    %v1050 = vpop.f32.mrf.mxu0
    %v1051 = vpop.f32.mrf.mxu0
    %1052 = vdwg.mxu0
    %1053 = vmatprep.subr.bf16.mxu0 %v762
    %1054 = vmatpush1.bf16.msra.mxu0 %v761
    %1055 = vmatprep.subr.bf16.mxu0 %v760
    %1056 = vmatpush1.bf16.msra.mxu0 %v759
    %1057 = vmatprep.subr.bf16.mxu0 %v758
    %1058 = vmatpush1.bf16.msra.mxu0 %v757
    %1059 = vmatprep.subr.bf16.mxu0 %v756
    %1060 = vmatpush1.bf16.msra.mxu0 %v755
    %1061 = vmatprep.subr.bf16.mxu0 %v754
    %1062 = vmatpush1.bf16.msra.mxu0 %v753
    %1063 = vmatprep.subr.bf16.mxu0 %v752
    %1064 = vmatpush1.bf16.msra.mxu0 %v751
    %1065 = vmatprep.subr.bf16.mxu0 %v750
    %1066 = vmatpush1.bf16.msra.mxu0 %v749
    %1067 = vmatprep.subr.bf16.mxu0 %v748
    %1068 = vmatpush1.bf16.msra.mxu0 %v747
    %1069 = vmatprep.subr.bf16.mxu0 %v778
    %1070 = vmatpush2.bf16.msra.mxu0 %v777
    %1071 = vmatprep.subr.bf16.mxu0 %v776
    %1072 = vmatpush2.bf16.msra.mxu0 %v775
    %1073 = vmatprep.subr.bf16.mxu0 %v774
    %1074 = vmatpush2.bf16.msra.mxu0 %v773
    %1075 = vmatprep.subr.bf16.mxu0 %v772
    %1076 = vmatpush2.bf16.msra.mxu0 %v771
    %1077 = vmatprep.subr.bf16.mxu0 %v770
    %1078 = vmatpush2.bf16.msra.mxu0 %v769
    %1079 = vmatprep.subr.bf16.mxu0 %v768
    %1080 = vmatpush2.bf16.msra.mxu0 %v767
    %1081 = vmatprep.subr.bf16.mxu0 %v766
    %1082 = vmatpush2.bf16.msra.mxu0 %v765
    %1083 = vmatprep.subr.bf16.mxu0 %v764
    %1084 = vmatpush2.bf16.msra.mxu0 %v763
    %1085 = vmatprep.mubr.bf16.mxu0 %v223
    %1086 = vmatmul.mubr.bf16.gmra.mxu0 %v209
    %v1087 = vpop.f32.mrf.mxu0
    %v1088 = vadd.f32 %v1047, %v1087
    %v1089 = vpop.f32.mrf.mxu0
    %v1090 = vadd.f32 %v1049, %v1089
    %v1091 = vpop.f32.mrf.mxu0
    %v1092 = vpop.f32.mrf.mxu0
    %1093 = vdwg.mxu0
    %1094 = vmatprep.subr.bf16.mxu0 %v794
    %1095 = vmatpush1.bf16.msra.mxu0 %v793
    %1096 = vmatprep.subr.bf16.mxu0 %v792
    %1097 = vmatpush1.bf16.msra.mxu0 %v791
    %1098 = vmatprep.subr.bf16.mxu0 %v790
    %1099 = vmatpush1.bf16.msra.mxu0 %v789
    %1100 = vmatprep.subr.bf16.mxu0 %v788
    %1101 = vmatpush1.bf16.msra.mxu0 %v787
    %1102 = vmatprep.subr.bf16.mxu0 %v786
    %1103 = vmatpush1.bf16.msra.mxu0 %v785
    %1104 = vmatprep.subr.bf16.mxu0 %v784
    %1105 = vmatpush1.bf16.msra.mxu0 %v783
    %1106 = vmatprep.subr.bf16.mxu0 %v782
    %1107 = vmatpush1.bf16.msra.mxu0 %v781
    %1108 = vmatprep.subr.bf16.mxu0 %v780
    %1109 = vmatpush1.bf16.msra.mxu0 %v779
    %1110 = vmatprep.subr.bf16.mxu0 %v810
    %1111 = vmatpush2.bf16.msra.mxu0 %v809
    %1112 = vmatprep.subr.bf16.mxu0 %v808
    %1113 = vmatpush2.bf16.msra.mxu0 %v807
    %1114 = vmatprep.subr.bf16.mxu0 %v806
    %1115 = vmatpush2.bf16.msra.mxu0 %v805
    %1116 = vmatprep.subr.bf16.mxu0 %v804
    %1117 = vmatpush2.bf16.msra.mxu0 %v803
    %1118 = vmatprep.subr.bf16.mxu0 %v802
    %1119 = vmatpush2.bf16.msra.mxu0 %v801
    %1120 = vmatprep.subr.bf16.mxu0 %v800
    %1121 = vmatpush2.bf16.msra.mxu0 %v799
    %1122 = vmatprep.subr.bf16.mxu0 %v798
    %1123 = vmatpush2.bf16.msra.mxu0 %v797
    %1124 = vmatprep.subr.bf16.mxu0 %v796
    %1125 = vmatpush2.bf16.msra.mxu0 %v795
    %1126 = vmatprep.mubr.bf16.mxu0 %v227
    %1127 = vmatmul.mubr.bf16.gmra.mxu0 %v225
    %v1128 = vpop.f32.mrf.mxu0
    %v1129 = vadd.f32 %v1088, %v1128
    %v1130 = vpop.f32.mrf.mxu0
    %v1131 = vadd.f32 %v1090, %v1130
    %v1132 = vpop.f32.mrf.mxu0
    %v1133 = vpop.f32.mrf.mxu0
    %1134 = vdwg.mxu0
    %1135 = vmatprep.subr.bf16.mxu0 %v826
    %1136 = vmatpush1.bf16.msra.mxu0 %v825
    %1137 = vmatprep.subr.bf16.mxu0 %v824
    %1138 = vmatpush1.bf16.msra.mxu0 %v823
    %1139 = vmatprep.subr.bf16.mxu0 %v822
    %1140 = vmatpush1.bf16.msra.mxu0 %v821
    %1141 = vmatprep.subr.bf16.mxu0 %v820
    %1142 = vmatpush1.bf16.msra.mxu0 %v819
    %1143 = vmatprep.subr.bf16.mxu0 %v818
    %1144 = vmatpush1.bf16.msra.mxu0 %v817
    %1145 = vmatprep.subr.bf16.mxu0 %v816
    %1146 = vmatpush1.bf16.msra.mxu0 %v815
    %1147 = vmatprep.subr.bf16.mxu0 %v814
    %1148 = vmatpush1.bf16.msra.mxu0 %v813
    %1149 = vmatprep.subr.bf16.mxu0 %v812
    %1150 = vmatpush1.bf16.msra.mxu0 %v811
    %1151 = vmatprep.subr.bf16.mxu0 0
    %1152 = vmatpush2.bf16.msra.mxu0 0
    %1153 = vmatprep.subr.bf16.mxu0 0
    %1154 = vmatpush2.bf16.msra.mxu0 0
    %1155 = vmatprep.subr.bf16.mxu0 0
    %1156 = vmatpush2.bf16.msra.mxu0 0
    %1157 = vmatprep.subr.bf16.mxu0 0
    %1158 = vmatpush2.bf16.msra.mxu0 0
    %1159 = vmatprep.subr.bf16.mxu0 0
    %1160 = vmatpush2.bf16.msra.mxu0 0
    %1161 = vmatprep.subr.bf16.mxu0 0
    %1162 = vmatpush2.bf16.msra.mxu0 0
    %1163 = vmatprep.subr.bf16.mxu0 0
    %1164 = vmatpush2.bf16.msra.mxu0 0
    %1165 = vmatprep.subr.bf16.mxu0 0
    %1166 = vmatpush2.bf16.msra.mxu0 0
    %1167 = vmatprep.mubr.bf16.mxu0 0
    %1168 = vmatmul.mubr.bf16.gmra.mxu0 %v241
    %v1169 = vpop.f32.mrf.mxu0
    %v1170 = vadd.f32 %v1129, %v1169
    %v1171 = vpop.f32.mrf.mxu0
    %v1172 = vadd.f32 %v1131, %v1171
    %v1173 = vpop.f32.mrf.mxu0
    %v1174 = vpop.f32.mrf.mxu0
    %1175 = vdwg.mxu0
    %v1176 = vld [vmem:[%s2] sm:$0x3]
    %v1178 = vlaneseq
    %v1179 = vshrl.u32 %v1178, 7
    %v1180 = vsub.s32 0, %v1179
    %v1181 = vrot.slane %v1176, %v1180
    %v1182 = vlaneseq
    %v1183 = vshrl.u32 %v1182, 7
    %v1184 = vsub.s32 1, %v1183
    %v1185 = vrot.slane %v1176, %v1184
    %v1188 = vmul.f32 %v1170, %v1181
    %v1189 = vmul.f32 %v1172, %v1185
    %v1190 = vld [vmem:[%s3] sm:$0x3]
    %v1192 = vlaneseq
    %v1193 = vshrl.u32 %v1192, 7
    %v1194 = vsub.s32 0, %v1193
    %v1195 = vrot.slane %v1190, %v1194
    %v1196 = vlaneseq
    %v1197 = vshrl.u32 %v1196, 7
    %v1198 = vsub.s32 1, %v1197
    %v1199 = vrot.slane %v1190, %v1198
    %v1202 = vadd.f32 %v1188, %v1195
    %v1203 = vadd.f32 %v1189, %v1199
    %s1204 = scalar_lea.vmem %s0, 9
    %v1205 = vld [vmem:[%s1204] sm:$0xff]
    %v1206 = vld [vmem:[%s1204 + $0x8] sm:$0x1]
    %v1209 = vcombine.high %v1205, %v1205
    %v1211 = vunpack.c.l.s4 1966171168
    %v1212 = vunpack.c.0.s8 %v1211
    %v1213 = vlaneseq
    %v1214 = vshrl.u32 %v1213, 7
    %v1215 = vsub.s32 %v1212, %v1214
    %v1216 = vrot.slane %v1205, %v1215
    %v1218 = vunpack.c.l.s4 1966171168
    %v1219 = vunpack.c.0.s8 %v1218
    %v1220 = vlaneseq
    %v1221 = vshrl.u32 %v1220, 7
    %v1222 = vsub.s32 %v1219, %v1221
    %v1223 = vrot.slane %v1209, %v1222
    %v1224 = vcombine.high %v1216, %v1216
    %v1225 = vcombine.high %v1223, %v1223
    %v1227 = vunpack.c.l.s4 1966171168
    %v1228 = vunpack.c.0.s8 %v1227
    %v1229 = vlaneseq
    %v1230 = vshrl.u32 %v1229, 7
    %v1231 = vsub.s32 %v1228, %v1230
    %v1232 = vrot.slane %v1216, %v1231
    %v1234 = vunpack.c.l.s4 1966171168
    %v1235 = vunpack.c.0.s8 %v1234
    %v1236 = vlaneseq
    %v1237 = vshrl.u32 %v1236, 7
    %v1238 = vsub.s32 %v1235, %v1237
    %v1239 = vrot.slane %v1223, %v1238
    %v1241 = vunpack.c.l.s4 1966171168
    %v1242 = vunpack.c.0.s8 %v1241
    %v1243 = vlaneseq
    %v1244 = vshrl.u32 %v1243, 7
    %v1245 = vsub.s32 %v1242, %v1244
    %v1246 = vrot.slane %v1224, %v1245
    %v1248 = vunpack.c.l.s4 1966171168
    %v1249 = vunpack.c.0.s8 %v1248
    %v1250 = vlaneseq
    %v1251 = vshrl.u32 %v1250, 7
    %v1252 = vsub.s32 %v1249, %v1251
    %v1253 = vrot.slane %v1225, %v1252
    %v1254 = vcombine.high %v1232, %v1232
    %v1255 = vcombine.high %v1239, %v1239
    %v1256 = vcombine.high %v1246, %v1246
    %v1257 = vcombine.high %v1253, %v1253
    %v1259 = vunpack.c.l.s4 1966171168
    %v1260 = vunpack.c.0.s8 %v1259
    %v1261 = vlaneseq
    %v1262 = vshrl.u32 %v1261, 7
    %v1263 = vsub.s32 %v1260, %v1262
    %v1264 = vrot.slane %v1206, %v1263
    %v1266 = vunpack.c.l.s4 1966171168
    %v1267 = vunpack.c.0.s8 %v1266
    %v1268 = vlaneseq
    %v1269 = vshrl.u32 %v1268, 7
    %v1270 = vsub.s32 %v1267, %v1269
    %v1271 = vrot.slane %v1264, %v1270
    %1281 = vmatprep.subr.bf16.mxu0 %v698
    %1282 = vmatpush1.bf16.msra.mxu0 %v697
    %1283 = vmatprep.subr.bf16.mxu0 %v696
    %1284 = vmatpush1.bf16.msra.mxu0 %v695
    %1285 = vmatprep.subr.bf16.mxu0 %v694
    %1286 = vmatpush1.bf16.msra.mxu0 %v693
    %1287 = vmatprep.subr.bf16.mxu0 %v692
    %1288 = vmatpush1.bf16.msra.mxu0 %v691
    %1289 = vmatprep.subr.bf16.mxu0 %v690
    %1290 = vmatpush1.bf16.msra.mxu0 %v689
    %1291 = vmatprep.subr.bf16.mxu0 %v688
    %1292 = vmatpush1.bf16.msra.mxu0 %v687
    %1293 = vmatprep.subr.bf16.mxu0 %v686
    %1294 = vmatpush1.bf16.msra.mxu0 %v685
    %1295 = vmatprep.subr.bf16.mxu0 %v684
    %1296 = vmatpush1.bf16.msra.mxu0 %v683
    %1297 = vmatprep.subr.bf16.mxu0 %v714
    %1298 = vmatpush2.bf16.msra.mxu0 %v713
    %1299 = vmatprep.subr.bf16.mxu0 %v712
    %1300 = vmatpush2.bf16.msra.mxu0 %v711
    %1301 = vmatprep.subr.bf16.mxu0 %v710
    %1302 = vmatpush2.bf16.msra.mxu0 %v709
    %1303 = vmatprep.subr.bf16.mxu0 %v708
    %1304 = vmatpush2.bf16.msra.mxu0 %v707
    %1305 = vmatprep.subr.bf16.mxu0 %v706
    %1306 = vmatpush2.bf16.msra.mxu0 %v705
    %1307 = vmatprep.subr.bf16.mxu0 %v704
    %1308 = vmatpush2.bf16.msra.mxu0 %v703
    %1309 = vmatprep.subr.bf16.mxu0 %v702
    %1310 = vmatpush2.bf16.msra.mxu0 %v701
    %1311 = vmatprep.subr.bf16.mxu0 %v700
    %1312 = vmatpush2.bf16.msra.mxu0 %v699
    %1313 = vmatprep.mubr.bf16.mxu0 %v1246
    %1314 = vmatmul.mubr.bf16.gmra.mxu0 %v1232
    %v1315 = vpop.f32.mrf.mxu0
    %v1316 = vadd.f32 0.0, %v1315
    %v1317 = vpop.f32.mrf.mxu0
    %v1318 = vadd.f32 0.0, %v1317
    %v1319 = vpop.f32.mrf.mxu0
    %v1320 = vpop.f32.mrf.mxu0
    %1321 = vdwg.mxu0
    %1322 = vmatprep.subr.bf16.mxu0 %v730
    %1323 = vmatpush1.bf16.msra.mxu0 %v729
    %1324 = vmatprep.subr.bf16.mxu0 %v728
    %1325 = vmatpush1.bf16.msra.mxu0 %v727
    %1326 = vmatprep.subr.bf16.mxu0 %v726
    %1327 = vmatpush1.bf16.msra.mxu0 %v725
    %1328 = vmatprep.subr.bf16.mxu0 %v724
    %1329 = vmatpush1.bf16.msra.mxu0 %v723
    %1330 = vmatprep.subr.bf16.mxu0 %v722
    %1331 = vmatpush1.bf16.msra.mxu0 %v721
    %1332 = vmatprep.subr.bf16.mxu0 %v720
    %1333 = vmatpush1.bf16.msra.mxu0 %v719
    %1334 = vmatprep.subr.bf16.mxu0 %v718
    %1335 = vmatpush1.bf16.msra.mxu0 %v717
    %1336 = vmatprep.subr.bf16.mxu0 %v716
    %1337 = vmatpush1.bf16.msra.mxu0 %v715
    %1338 = vmatprep.subr.bf16.mxu0 %v746
    %1339 = vmatpush2.bf16.msra.mxu0 %v745
    %1340 = vmatprep.subr.bf16.mxu0 %v744
    %1341 = vmatpush2.bf16.msra.mxu0 %v743
    %1342 = vmatprep.subr.bf16.mxu0 %v742
    %1343 = vmatpush2.bf16.msra.mxu0 %v741
    %1344 = vmatprep.subr.bf16.mxu0 %v740
    %1345 = vmatpush2.bf16.msra.mxu0 %v739
    %1346 = vmatprep.subr.bf16.mxu0 %v738
    %1347 = vmatpush2.bf16.msra.mxu0 %v737
    %1348 = vmatprep.subr.bf16.mxu0 %v736
    %1349 = vmatpush2.bf16.msra.mxu0 %v735
    %1350 = vmatprep.subr.bf16.mxu0 %v734
    %1351 = vmatpush2.bf16.msra.mxu0 %v733
    %1352 = vmatprep.subr.bf16.mxu0 %v732
    %1353 = vmatpush2.bf16.msra.mxu0 %v731
    %1354 = vmatprep.mubr.bf16.mxu0 %v1256
    %1355 = vmatmul.mubr.bf16.gmra.mxu0 %v1254
    %v1356 = vpop.f32.mrf.mxu0
    %v1357 = vadd.f32 %v1316, %v1356
    %v1358 = vpop.f32.mrf.mxu0
    %v1359 = vadd.f32 %v1318, %v1358
    %v1360 = vpop.f32.mrf.mxu0
    %v1361 = vpop.f32.mrf.mxu0
    %1362 = vdwg.mxu0
    %1363 = vmatprep.subr.bf16.mxu0 %v762
    %1364 = vmatpush1.bf16.msra.mxu0 %v761
    %1365 = vmatprep.subr.bf16.mxu0 %v760
    %1366 = vmatpush1.bf16.msra.mxu0 %v759
    %1367 = vmatprep.subr.bf16.mxu0 %v758
    %1368 = vmatpush1.bf16.msra.mxu0 %v757
    %1369 = vmatprep.subr.bf16.mxu0 %v756
    %1370 = vmatpush1.bf16.msra.mxu0 %v755
    %1371 = vmatprep.subr.bf16.mxu0 %v754
    %1372 = vmatpush1.bf16.msra.mxu0 %v753
    %1373 = vmatprep.subr.bf16.mxu0 %v752
    %1374 = vmatpush1.bf16.msra.mxu0 %v751
    %1375 = vmatprep.subr.bf16.mxu0 %v750
    %1376 = vmatpush1.bf16.msra.mxu0 %v749
    %1377 = vmatprep.subr.bf16.mxu0 %v748
    %1378 = vmatpush1.bf16.msra.mxu0 %v747
    %1379 = vmatprep.subr.bf16.mxu0 %v778
    %1380 = vmatpush2.bf16.msra.mxu0 %v777
    %1381 = vmatprep.subr.bf16.mxu0 %v776
    %1382 = vmatpush2.bf16.msra.mxu0 %v775
    %1383 = vmatprep.subr.bf16.mxu0 %v774
    %1384 = vmatpush2.bf16.msra.mxu0 %v773
    %1385 = vmatprep.subr.bf16.mxu0 %v772
    %1386 = vmatpush2.bf16.msra.mxu0 %v771
    %1387 = vmatprep.subr.bf16.mxu0 %v770
    %1388 = vmatpush2.bf16.msra.mxu0 %v769
    %1389 = vmatprep.subr.bf16.mxu0 %v768
    %1390 = vmatpush2.bf16.msra.mxu0 %v767
    %1391 = vmatprep.subr.bf16.mxu0 %v766
    %1392 = vmatpush2.bf16.msra.mxu0 %v765
    %1393 = vmatprep.subr.bf16.mxu0 %v764
    %1394 = vmatpush2.bf16.msra.mxu0 %v763
    %1395 = vmatprep.mubr.bf16.mxu0 %v1253
    %1396 = vmatmul.mubr.bf16.gmra.mxu0 %v1239
    %v1397 = vpop.f32.mrf.mxu0
    %v1398 = vadd.f32 %v1357, %v1397
    %v1399 = vpop.f32.mrf.mxu0
    %v1400 = vadd.f32 %v1359, %v1399
    %v1401 = vpop.f32.mrf.mxu0
    %v1402 = vpop.f32.mrf.mxu0
    %1403 = vdwg.mxu0
    %1404 = vmatprep.subr.bf16.mxu0 %v794
    %1405 = vmatpush1.bf16.msra.mxu0 %v793
    %1406 = vmatprep.subr.bf16.mxu0 %v792
    %1407 = vmatpush1.bf16.msra.mxu0 %v791
    %1408 = vmatprep.subr.bf16.mxu0 %v790
    %1409 = vmatpush1.bf16.msra.mxu0 %v789
    %1410 = vmatprep.subr.bf16.mxu0 %v788
    %1411 = vmatpush1.bf16.msra.mxu0 %v787
    %1412 = vmatprep.subr.bf16.mxu0 %v786
    %1413 = vmatpush1.bf16.msra.mxu0 %v785
    %1414 = vmatprep.subr.bf16.mxu0 %v784
    %1415 = vmatpush1.bf16.msra.mxu0 %v783
    %1416 = vmatprep.subr.bf16.mxu0 %v782
    %1417 = vmatpush1.bf16.msra.mxu0 %v781
    %1418 = vmatprep.subr.bf16.mxu0 %v780
    %1419 = vmatpush1.bf16.msra.mxu0 %v779
    %1420 = vmatprep.subr.bf16.mxu0 %v810
    %1421 = vmatpush2.bf16.msra.mxu0 %v809
    %1422 = vmatprep.subr.bf16.mxu0 %v808
    %1423 = vmatpush2.bf16.msra.mxu0 %v807
    %1424 = vmatprep.subr.bf16.mxu0 %v806
    %1425 = vmatpush2.bf16.msra.mxu0 %v805
    %1426 = vmatprep.subr.bf16.mxu0 %v804
    %1427 = vmatpush2.bf16.msra.mxu0 %v803
    %1428 = vmatprep.subr.bf16.mxu0 %v802
    %1429 = vmatpush2.bf16.msra.mxu0 %v801
    %1430 = vmatprep.subr.bf16.mxu0 %v800
    %1431 = vmatpush2.bf16.msra.mxu0 %v799
    %1432 = vmatprep.subr.bf16.mxu0 %v798
    %1433 = vmatpush2.bf16.msra.mxu0 %v797
    %1434 = vmatprep.subr.bf16.mxu0 %v796
    %1435 = vmatpush2.bf16.msra.mxu0 %v795
    %1436 = vmatprep.mubr.bf16.mxu0 %v1257
    %1437 = vmatmul.mubr.bf16.gmra.mxu0 %v1255
    %v1438 = vpop.f32.mrf.mxu0
    %v1439 = vadd.f32 %v1398, %v1438
    %v1440 = vpop.f32.mrf.mxu0
    %v1441 = vadd.f32 %v1400, %v1440
    %v1442 = vpop.f32.mrf.mxu0
    %v1443 = vpop.f32.mrf.mxu0
    %1444 = vdwg.mxu0
    %1445 = vmatprep.subr.bf16.mxu0 %v826
    %1446 = vmatpush1.bf16.msra.mxu0 %v825
    %1447 = vmatprep.subr.bf16.mxu0 %v824
    %1448 = vmatpush1.bf16.msra.mxu0 %v823
    %1449 = vmatprep.subr.bf16.mxu0 %v822
    %1450 = vmatpush1.bf16.msra.mxu0 %v821
    %1451 = vmatprep.subr.bf16.mxu0 %v820
    %1452 = vmatpush1.bf16.msra.mxu0 %v819
    %1453 = vmatprep.subr.bf16.mxu0 %v818
    %1454 = vmatpush1.bf16.msra.mxu0 %v817
    %1455 = vmatprep.subr.bf16.mxu0 %v816
    %1456 = vmatpush1.bf16.msra.mxu0 %v815
    %1457 = vmatprep.subr.bf16.mxu0 %v814
    %1458 = vmatpush1.bf16.msra.mxu0 %v813
    %1459 = vmatprep.subr.bf16.mxu0 %v812
    %1460 = vmatpush1.bf16.msra.mxu0 %v811
    %1461 = vmatprep.subr.bf16.mxu0 0
    %1462 = vmatpush2.bf16.msra.mxu0 0
    %1463 = vmatprep.subr.bf16.mxu0 0
    %1464 = vmatpush2.bf16.msra.mxu0 0
    %1465 = vmatprep.subr.bf16.mxu0 0
    %1466 = vmatpush2.bf16.msra.mxu0 0
    %1467 = vmatprep.subr.bf16.mxu0 0
    %1468 = vmatpush2.bf16.msra.mxu0 0
    %1469 = vmatprep.subr.bf16.mxu0 0
    %1470 = vmatpush2.bf16.msra.mxu0 0
    %1471 = vmatprep.subr.bf16.mxu0 0
    %1472 = vmatpush2.bf16.msra.mxu0 0
    %1473 = vmatprep.subr.bf16.mxu0 0
    %1474 = vmatpush2.bf16.msra.mxu0 0
    %1475 = vmatprep.subr.bf16.mxu0 0
    %1476 = vmatpush2.bf16.msra.mxu0 0
    %1477 = vmatprep.mubr.bf16.mxu0 0
    %1478 = vmatmul.mubr.bf16.gmra.mxu0 %v1271
    %v1479 = vpop.f32.mrf.mxu0
    %v1480 = vadd.f32 %v1439, %v1479
    %v1481 = vpop.f32.mrf.mxu0
    %v1482 = vadd.f32 %v1441, %v1481
    %v1483 = vpop.f32.mrf.mxu0
    %v1484 = vpop.f32.mrf.mxu0
    %1485 = vdwg.mxu0
    %v1486 = vmul.f32 %v1480, %v1181
    %v1487 = vmul.f32 %v1482, %v1185
    %v1488 = vadd.f32 %v1486, %v1195
    %v1489 = vadd.f32 %v1487, %v1199
    %v1490 = vmax.f32 %v1202, %v1488
    %v1491 = vmax.f32 %v1203, %v1489
    %s1492 = scalar_lea.vmem %s0, 18
    %v1493 = vld [vmem:[%s1492] sm:$0xff]
    %v1494 = vld [vmem:[%s1492 + $0x8] sm:$0x1]
    %v1497 = vcombine.high %v1493, %v1493
    %v1499 = vunpack.c.l.s4 1966171168
    %v1500 = vunpack.c.0.s8 %v1499
    %v1501 = vlaneseq
    %v1502 = vshrl.u32 %v1501, 7
    %v1503 = vsub.s32 %v1500, %v1502
    %v1504 = vrot.slane %v1493, %v1503
    %v1506 = vunpack.c.l.s4 1966171168
    %v1507 = vunpack.c.0.s8 %v1506
    %v1508 = vlaneseq
    %v1509 = vshrl.u32 %v1508, 7
    %v1510 = vsub.s32 %v1507, %v1509
    %v1511 = vrot.slane %v1497, %v1510
    %v1512 = vcombine.high %v1504, %v1504
    %v1513 = vcombine.high %v1511, %v1511
    %v1515 = vunpack.c.l.s4 1966171168
    %v1516 = vunpack.c.0.s8 %v1515
    %v1517 = vlaneseq
    %v1518 = vshrl.u32 %v1517, 7
    %v1519 = vsub.s32 %v1516, %v1518
    %v1520 = vrot.slane %v1504, %v1519
    %v1522 = vunpack.c.l.s4 1966171168
    %v1523 = vunpack.c.0.s8 %v1522
    %v1524 = vlaneseq
    %v1525 = vshrl.u32 %v1524, 7
    %v1526 = vsub.s32 %v1523, %v1525
    %v1527 = vrot.slane %v1511, %v1526
    %v1529 = vunpack.c.l.s4 1966171168
    %v1530 = vunpack.c.0.s8 %v1529
    %v1531 = vlaneseq
    %v1532 = vshrl.u32 %v1531, 7
    %v1533 = vsub.s32 %v1530, %v1532
    %v1534 = vrot.slane %v1512, %v1533
    %v1536 = vunpack.c.l.s4 1966171168
    %v1537 = vunpack.c.0.s8 %v1536
    %v1538 = vlaneseq
    %v1539 = vshrl.u32 %v1538, 7
    %v1540 = vsub.s32 %v1537, %v1539
    %v1541 = vrot.slane %v1513, %v1540
    %v1542 = vcombine.high %v1520, %v1520
    %v1543 = vcombine.high %v1527, %v1527
    %v1544 = vcombine.high %v1534, %v1534
    %v1545 = vcombine.high %v1541, %v1541
    %v1547 = vunpack.c.l.s4 1966171168
    %v1548 = vunpack.c.0.s8 %v1547
    %v1549 = vlaneseq
    %v1550 = vshrl.u32 %v1549, 7
    %v1551 = vsub.s32 %v1548, %v1550
    %v1552 = vrot.slane %v1494, %v1551
    %v1554 = vunpack.c.l.s4 1966171168
    %v1555 = vunpack.c.0.s8 %v1554
    %v1556 = vlaneseq
    %v1557 = vshrl.u32 %v1556, 7
    %v1558 = vsub.s32 %v1555, %v1557
    %v1559 = vrot.slane %v1552, %v1558
    %1569 = vmatprep.subr.bf16.mxu0 %v698
    %1570 = vmatpush1.bf16.msra.mxu0 %v697
    %1571 = vmatprep.subr.bf16.mxu0 %v696
    %1572 = vmatpush1.bf16.msra.mxu0 %v695
    %1573 = vmatprep.subr.bf16.mxu0 %v694
    %1574 = vmatpush1.bf16.msra.mxu0 %v693
    %1575 = vmatprep.subr.bf16.mxu0 %v692
    %1576 = vmatpush1.bf16.msra.mxu0 %v691
    %1577 = vmatprep.subr.bf16.mxu0 %v690
    %1578 = vmatpush1.bf16.msra.mxu0 %v689
    %1579 = vmatprep.subr.bf16.mxu0 %v688
    %1580 = vmatpush1.bf16.msra.mxu0 %v687
    %1581 = vmatprep.subr.bf16.mxu0 %v686
    %1582 = vmatpush1.bf16.msra.mxu0 %v685
    %1583 = vmatprep.subr.bf16.mxu0 %v684
    %1584 = vmatpush1.bf16.msra.mxu0 %v683
    %1585 = vmatprep.subr.bf16.mxu0 %v714
    %1586 = vmatpush2.bf16.msra.mxu0 %v713
    %1587 = vmatprep.subr.bf16.mxu0 %v712
    %1588 = vmatpush2.bf16.msra.mxu0 %v711
    %1589 = vmatprep.subr.bf16.mxu0 %v710
    %1590 = vmatpush2.bf16.msra.mxu0 %v709
    %1591 = vmatprep.subr.bf16.mxu0 %v708
    %1592 = vmatpush2.bf16.msra.mxu0 %v707
    %1593 = vmatprep.subr.bf16.mxu0 %v706
    %1594 = vmatpush2.bf16.msra.mxu0 %v705
    %1595 = vmatprep.subr.bf16.mxu0 %v704
    %1596 = vmatpush2.bf16.msra.mxu0 %v703
    %1597 = vmatprep.subr.bf16.mxu0 %v702
    %1598 = vmatpush2.bf16.msra.mxu0 %v701
    %1599 = vmatprep.subr.bf16.mxu0 %v700
    %1600 = vmatpush2.bf16.msra.mxu0 %v699
    %1601 = vmatprep.mubr.bf16.mxu0 %v1534
    %1602 = vmatmul.mubr.bf16.gmra.mxu0 %v1520
    %v1603 = vpop.f32.mrf.mxu0
    %v1604 = vadd.f32 0.0, %v1603
    %v1605 = vpop.f32.mrf.mxu0
    %v1606 = vadd.f32 0.0, %v1605
    %v1607 = vpop.f32.mrf.mxu0
    %v1608 = vpop.f32.mrf.mxu0
    %1609 = vdwg.mxu0
    %1610 = vmatprep.subr.bf16.mxu0 %v730
    %1611 = vmatpush1.bf16.msra.mxu0 %v729
    %1612 = vmatprep.subr.bf16.mxu0 %v728
    %1613 = vmatpush1.bf16.msra.mxu0 %v727
    %1614 = vmatprep.subr.bf16.mxu0 %v726
    %1615 = vmatpush1.bf16.msra.mxu0 %v725
    %1616 = vmatprep.subr.bf16.mxu0 %v724
    %1617 = vmatpush1.bf16.msra.mxu0 %v723
    %1618 = vmatprep.subr.bf16.mxu0 %v722
    %1619 = vmatpush1.bf16.msra.mxu0 %v721
    %1620 = vmatprep.subr.bf16.mxu0 %v720
    %1621 = vmatpush1.bf16.msra.mxu0 %v719
    %1622 = vmatprep.subr.bf16.mxu0 %v718
    %1623 = vmatpush1.bf16.msra.mxu0 %v717
    %1624 = vmatprep.subr.bf16.mxu0 %v716
    %1625 = vmatpush1.bf16.msra.mxu0 %v715
    %1626 = vmatprep.subr.bf16.mxu0 %v746
    %1627 = vmatpush2.bf16.msra.mxu0 %v745
    %1628 = vmatprep.subr.bf16.mxu0 %v744
    %1629 = vmatpush2.bf16.msra.mxu0 %v743
    %1630 = vmatprep.subr.bf16.mxu0 %v742
    %1631 = vmatpush2.bf16.msra.mxu0 %v741
    %1632 = vmatprep.subr.bf16.mxu0 %v740
    %1633 = vmatpush2.bf16.msra.mxu0 %v739
    %1634 = vmatprep.subr.bf16.mxu0 %v738
    %1635 = vmatpush2.bf16.msra.mxu0 %v737
    %1636 = vmatprep.subr.bf16.mxu0 %v736
    %1637 = vmatpush2.bf16.msra.mxu0 %v735
    %1638 = vmatprep.subr.bf16.mxu0 %v734
    %1639 = vmatpush2.bf16.msra.mxu0 %v733
    %1640 = vmatprep.subr.bf16.mxu0 %v732
    %1641 = vmatpush2.bf16.msra.mxu0 %v731
    %1642 = vmatprep.mubr.bf16.mxu0 %v1544
    %1643 = vmatmul.mubr.bf16.gmra.mxu0 %v1542
    %v1644 = vpop.f32.mrf.mxu0
    %v1645 = vadd.f32 %v1604, %v1644
    %v1646 = vpop.f32.mrf.mxu0
    %v1647 = vadd.f32 %v1606, %v1646
    %v1648 = vpop.f32.mrf.mxu0
    %v1649 = vpop.f32.mrf.mxu0
    %1650 = vdwg.mxu0
    %1651 = vmatprep.subr.bf16.mxu0 %v762
    %1652 = vmatpush1.bf16.msra.mxu0 %v761
    %1653 = vmatprep.subr.bf16.mxu0 %v760
    %1654 = vmatpush1.bf16.msra.mxu0 %v759
    %1655 = vmatprep.subr.bf16.mxu0 %v758
    %1656 = vmatpush1.bf16.msra.mxu0 %v757
    %1657 = vmatprep.subr.bf16.mxu0 %v756
    %1658 = vmatpush1.bf16.msra.mxu0 %v755
    %1659 = vmatprep.subr.bf16.mxu0 %v754
    %1660 = vmatpush1.bf16.msra.mxu0 %v753
    %1661 = vmatprep.subr.bf16.mxu0 %v752
    %1662 = vmatpush1.bf16.msra.mxu0 %v751
    %1663 = vmatprep.subr.bf16.mxu0 %v750
    %1664 = vmatpush1.bf16.msra.mxu0 %v749
    %1665 = vmatprep.subr.bf16.mxu0 %v748
    %1666 = vmatpush1.bf16.msra.mxu0 %v747
    %1667 = vmatprep.subr.bf16.mxu0 %v778
    %1668 = vmatpush2.bf16.msra.mxu0 %v777
    %1669 = vmatprep.subr.bf16.mxu0 %v776
    %1670 = vmatpush2.bf16.msra.mxu0 %v775
    %1671 = vmatprep.subr.bf16.mxu0 %v774
    %1672 = vmatpush2.bf16.msra.mxu0 %v773
    %1673 = vmatprep.subr.bf16.mxu0 %v772
    %1674 = vmatpush2.bf16.msra.mxu0 %v771
    %1675 = vmatprep.subr.bf16.mxu0 %v770
    %1676 = vmatpush2.bf16.msra.mxu0 %v769
    %1677 = vmatprep.subr.bf16.mxu0 %v768
    %1678 = vmatpush2.bf16.msra.mxu0 %v767
    %1679 = vmatprep.subr.bf16.mxu0 %v766
    %1680 = vmatpush2.bf16.msra.mxu0 %v765
    %1681 = vmatprep.subr.bf16.mxu0 %v764
    %1682 = vmatpush2.bf16.msra.mxu0 %v763
    %1683 = vmatprep.mubr.bf16.mxu0 %v1541
    %1684 = vmatmul.mubr.bf16.gmra.mxu0 %v1527
    %v1685 = vpop.f32.mrf.mxu0
    %v1686 = vadd.f32 %v1645, %v1685
    %v1687 = vpop.f32.mrf.mxu0
    %v1688 = vadd.f32 %v1647, %v1687
    %v1689 = vpop.f32.mrf.mxu0
    %v1690 = vpop.f32.mrf.mxu0
    %1691 = vdwg.mxu0
    %1692 = vmatprep.subr.bf16.mxu0 %v794
    %1693 = vmatpush1.bf16.msra.mxu0 %v793
    %1694 = vmatprep.subr.bf16.mxu0 %v792
    %1695 = vmatpush1.bf16.msra.mxu0 %v791
    %1696 = vmatprep.subr.bf16.mxu0 %v790
    %1697 = vmatpush1.bf16.msra.mxu0 %v789
    %1698 = vmatprep.subr.bf16.mxu0 %v788
    %1699 = vmatpush1.bf16.msra.mxu0 %v787
    %1700 = vmatprep.subr.bf16.mxu0 %v786
    %1701 = vmatpush1.bf16.msra.mxu0 %v785
    %1702 = vmatprep.subr.bf16.mxu0 %v784
    %1703 = vmatpush1.bf16.msra.mxu0 %v783
    %1704 = vmatprep.subr.bf16.mxu0 %v782
    %1705 = vmatpush1.bf16.msra.mxu0 %v781
    %1706 = vmatprep.subr.bf16.mxu0 %v780
    %1707 = vmatpush1.bf16.msra.mxu0 %v779
    %1708 = vmatprep.subr.bf16.mxu0 %v810
    %1709 = vmatpush2.bf16.msra.mxu0 %v809
    %1710 = vmatprep.subr.bf16.mxu0 %v808
    %1711 = vmatpush2.bf16.msra.mxu0 %v807
    %1712 = vmatprep.subr.bf16.mxu0 %v806
    %1713 = vmatpush2.bf16.msra.mxu0 %v805
    %1714 = vmatprep.subr.bf16.mxu0 %v804
    %1715 = vmatpush2.bf16.msra.mxu0 %v803
    %1716 = vmatprep.subr.bf16.mxu0 %v802
    %1717 = vmatpush2.bf16.msra.mxu0 %v801
    %1718 = vmatprep.subr.bf16.mxu0 %v800
    %1719 = vmatpush2.bf16.msra.mxu0 %v799
    %1720 = vmatprep.subr.bf16.mxu0 %v798
    %1721 = vmatpush2.bf16.msra.mxu0 %v797
    %1722 = vmatprep.subr.bf16.mxu0 %v796
    %1723 = vmatpush2.bf16.msra.mxu0 %v795
    %1724 = vmatprep.mubr.bf16.mxu0 %v1545
    %1725 = vmatmul.mubr.bf16.gmra.mxu0 %v1543
    %v1726 = vpop.f32.mrf.mxu0
    %v1727 = vadd.f32 %v1686, %v1726
    %v1728 = vpop.f32.mrf.mxu0
    %v1729 = vadd.f32 %v1688, %v1728
    %v1730 = vpop.f32.mrf.mxu0
    %v1731 = vpop.f32.mrf.mxu0
    %1732 = vdwg.mxu0
    %1733 = vmatprep.subr.bf16.mxu0 %v826
    %1734 = vmatpush1.bf16.msra.mxu0 %v825
    %1735 = vmatprep.subr.bf16.mxu0 %v824
    %1736 = vmatpush1.bf16.msra.mxu0 %v823
    %1737 = vmatprep.subr.bf16.mxu0 %v822
    %1738 = vmatpush1.bf16.msra.mxu0 %v821
    %1739 = vmatprep.subr.bf16.mxu0 %v820
    %1740 = vmatpush1.bf16.msra.mxu0 %v819
    %1741 = vmatprep.subr.bf16.mxu0 %v818
    %1742 = vmatpush1.bf16.msra.mxu0 %v817
    %1743 = vmatprep.subr.bf16.mxu0 %v816
    %1744 = vmatpush1.bf16.msra.mxu0 %v815
    %1745 = vmatprep.subr.bf16.mxu0 %v814
    %1746 = vmatpush1.bf16.msra.mxu0 %v813
    %1747 = vmatprep.subr.bf16.mxu0 %v812
    %1748 = vmatpush1.bf16.msra.mxu0 %v811
    %1749 = vmatprep.subr.bf16.mxu0 0
    %1750 = vmatpush2.bf16.msra.mxu0 0
    %1751 = vmatprep.subr.bf16.mxu0 0
    %1752 = vmatpush2.bf16.msra.mxu0 0
    %1753 = vmatprep.subr.bf16.mxu0 0
    %1754 = vmatpush2.bf16.msra.mxu0 0
    %1755 = vmatprep.subr.bf16.mxu0 0
    %1756 = vmatpush2.bf16.msra.mxu0 0
    %1757 = vmatprep.subr.bf16.mxu0 0
    %1758 = vmatpush2.bf16.msra.mxu0 0
    %1759 = vmatprep.subr.bf16.mxu0 0
    %1760 = vmatpush2.bf16.msra.mxu0 0
    %1761 = vmatprep.subr.bf16.mxu0 0
    %1762 = vmatpush2.bf16.msra.mxu0 0
    %1763 = vmatprep.subr.bf16.mxu0 0
    %1764 = vmatpush2.bf16.msra.mxu0 0
    %1765 = vmatprep.mubr.bf16.mxu0 0
    %1766 = vmatmul.mubr.bf16.gmra.mxu0 %v1559
    %v1767 = vpop.f32.mrf.mxu0
    %v1768 = vadd.f32 %v1727, %v1767
    %v1769 = vpop.f32.mrf.mxu0
    %v1770 = vadd.f32 %v1729, %v1769
    %v1771 = vpop.f32.mrf.mxu0
    %v1772 = vpop.f32.mrf.mxu0
    %1773 = vdwg.mxu0
    %v1774 = vmul.f32 %v1768, %v1181
    %v1775 = vmul.f32 %v1770, %v1185
    %v1776 = vadd.f32 %v1774, %v1195
    %v1777 = vadd.f32 %v1775, %v1199
    %v1778 = vmax.f32 %v1490, %v1776
    %v1779 = vmax.f32 %v1491, %v1777
    %s1780 = scalar_lea.vmem %s0, 27
    %v1781 = vld [vmem:[%s1780] sm:$0xff]
    %v1782 = vld [vmem:[%s1780 + $0x8] sm:$0x1]
    %v1785 = vcombine.high %v1781, %v1781
    %v1787 = vunpack.c.l.s4 1966171168
    %v1788 = vunpack.c.0.s8 %v1787
    %v1789 = vlaneseq
    %v1790 = vshrl.u32 %v1789, 7
    %v1791 = vsub.s32 %v1788, %v1790
    %v1792 = vrot.slane %v1781, %v1791
    %v1794 = vunpack.c.l.s4 1966171168
    %v1795 = vunpack.c.0.s8 %v1794
    %v1796 = vlaneseq
    %v1797 = vshrl.u32 %v1796, 7
    %v1798 = vsub.s32 %v1795, %v1797
    %v1799 = vrot.slane %v1785, %v1798
    %v1800 = vcombine.high %v1792, %v1792
    %v1801 = vcombine.high %v1799, %v1799
    %v1803 = vunpack.c.l.s4 1966171168
    %v1804 = vunpack.c.0.s8 %v1803
    %v1805 = vlaneseq
    %v1806 = vshrl.u32 %v1805, 7
    %v1807 = vsub.s32 %v1804, %v1806
    %v1808 = vrot.slane %v1792, %v1807
    %v1810 = vunpack.c.l.s4 1966171168
    %v1811 = vunpack.c.0.s8 %v1810
    %v1812 = vlaneseq
    %v1813 = vshrl.u32 %v1812, 7
    %v1814 = vsub.s32 %v1811, %v1813
    %v1815 = vrot.slane %v1799, %v1814
    %v1817 = vunpack.c.l.s4 1966171168
    %v1818 = vunpack.c.0.s8 %v1817
    %v1819 = vlaneseq
    %v1820 = vshrl.u32 %v1819, 7
    %v1821 = vsub.s32 %v1818, %v1820
    %v1822 = vrot.slane %v1800, %v1821
    %v1824 = vunpack.c.l.s4 1966171168
    %v1825 = vunpack.c.0.s8 %v1824
    %v1826 = vlaneseq
    %v1827 = vshrl.u32 %v1826, 7
    %v1828 = vsub.s32 %v1825, %v1827
    %v1829 = vrot.slane %v1801, %v1828
    %v1830 = vcombine.high %v1808, %v1808
    %v1831 = vcombine.high %v1815, %v1815
    %v1832 = vcombine.high %v1822, %v1822
    %v1833 = vcombine.high %v1829, %v1829
    %v1835 = vunpack.c.l.s4 1966171168
    %v1836 = vunpack.c.0.s8 %v1835
    %v1837 = vlaneseq
    %v1838 = vshrl.u32 %v1837, 7
    %v1839 = vsub.s32 %v1836, %v1838
    %v1840 = vrot.slane %v1782, %v1839
    %v1842 = vunpack.c.l.s4 1966171168
    %v1843 = vunpack.c.0.s8 %v1842
    %v1844 = vlaneseq
    %v1845 = vshrl.u32 %v1844, 7
    %v1846 = vsub.s32 %v1843, %v1845
    %v1847 = vrot.slane %v1840, %v1846
    %1857 = vmatprep.subr.bf16.mxu0 %v698
    %1858 = vmatpush1.bf16.msra.mxu0 %v697
    %1859 = vmatprep.subr.bf16.mxu0 %v696
    %1860 = vmatpush1.bf16.msra.mxu0 %v695
    %1861 = vmatprep.subr.bf16.mxu0 %v694
    %1862 = vmatpush1.bf16.msra.mxu0 %v693
    %1863 = vmatprep.subr.bf16.mxu0 %v692
    %1864 = vmatpush1.bf16.msra.mxu0 %v691
    %1865 = vmatprep.subr.bf16.mxu0 %v690
    %1866 = vmatpush1.bf16.msra.mxu0 %v689
    %1867 = vmatprep.subr.bf16.mxu0 %v688
    %1868 = vmatpush1.bf16.msra.mxu0 %v687
    %1869 = vmatprep.subr.bf16.mxu0 %v686
    %1870 = vmatpush1.bf16.msra.mxu0 %v685
    %1871 = vmatprep.subr.bf16.mxu0 %v684
    %1872 = vmatpush1.bf16.msra.mxu0 %v683
    %1873 = vmatprep.subr.bf16.mxu0 %v714
    %1874 = vmatpush2.bf16.msra.mxu0 %v713
    %1875 = vmatprep.subr.bf16.mxu0 %v712
    %1876 = vmatpush2.bf16.msra.mxu0 %v711
    %1877 = vmatprep.subr.bf16.mxu0 %v710
    %1878 = vmatpush2.bf16.msra.mxu0 %v709
    %1879 = vmatprep.subr.bf16.mxu0 %v708
    %1880 = vmatpush2.bf16.msra.mxu0 %v707
    %1881 = vmatprep.subr.bf16.mxu0 %v706
    %1882 = vmatpush2.bf16.msra.mxu0 %v705
    %1883 = vmatprep.subr.bf16.mxu0 %v704
    %1884 = vmatpush2.bf16.msra.mxu0 %v703
    %1885 = vmatprep.subr.bf16.mxu0 %v702
    %1886 = vmatpush2.bf16.msra.mxu0 %v701
    %1887 = vmatprep.subr.bf16.mxu0 %v700
    %1888 = vmatpush2.bf16.msra.mxu0 %v699
    %1889 = vmatprep.mubr.bf16.mxu0 %v1822
    %1890 = vmatmul.mubr.bf16.gmra.mxu0 %v1808
    %v1891 = vpop.f32.mrf.mxu0
    %v1892 = vadd.f32 0.0, %v1891
    %v1893 = vpop.f32.mrf.mxu0
    %v1894 = vadd.f32 0.0, %v1893
    %v1895 = vpop.f32.mrf.mxu0
    %v1896 = vpop.f32.mrf.mxu0
    %1897 = vdwg.mxu0
    %1898 = vmatprep.subr.bf16.mxu0 %v730
    %1899 = vmatpush1.bf16.msra.mxu0 %v729
    %1900 = vmatprep.subr.bf16.mxu0 %v728
    %1901 = vmatpush1.bf16.msra.mxu0 %v727
    %1902 = vmatprep.subr.bf16.mxu0 %v726
    %1903 = vmatpush1.bf16.msra.mxu0 %v725
    %1904 = vmatprep.subr.bf16.mxu0 %v724
    %1905 = vmatpush1.bf16.msra.mxu0 %v723
    %1906 = vmatprep.subr.bf16.mxu0 %v722
    %1907 = vmatpush1.bf16.msra.mxu0 %v721
    %1908 = vmatprep.subr.bf16.mxu0 %v720
    %1909 = vmatpush1.bf16.msra.mxu0 %v719
    %1910 = vmatprep.subr.bf16.mxu0 %v718
    %1911 = vmatpush1.bf16.msra.mxu0 %v717
    %1912 = vmatprep.subr.bf16.mxu0 %v716
    %1913 = vmatpush1.bf16.msra.mxu0 %v715
    %1914 = vmatprep.subr.bf16.mxu0 %v746
    %1915 = vmatpush2.bf16.msra.mxu0 %v745
    %1916 = vmatprep.subr.bf16.mxu0 %v744
    %1917 = vmatpush2.bf16.msra.mxu0 %v743
    %1918 = vmatprep.subr.bf16.mxu0 %v742
    %1919 = vmatpush2.bf16.msra.mxu0 %v741
    %1920 = vmatprep.subr.bf16.mxu0 %v740
    %1921 = vmatpush2.bf16.msra.mxu0 %v739
    %1922 = vmatprep.subr.bf16.mxu0 %v738
    %1923 = vmatpush2.bf16.msra.mxu0 %v737
    %1924 = vmatprep.subr.bf16.mxu0 %v736
    %1925 = vmatpush2.bf16.msra.mxu0 %v735
    %1926 = vmatprep.subr.bf16.mxu0 %v734
    %1927 = vmatpush2.bf16.msra.mxu0 %v733
    %1928 = vmatprep.subr.bf16.mxu0 %v732
    %1929 = vmatpush2.bf16.msra.mxu0 %v731
    %1930 = vmatprep.mubr.bf16.mxu0 %v1832
    %1931 = vmatmul.mubr.bf16.gmra.mxu0 %v1830
    %v1932 = vpop.f32.mrf.mxu0
    %v1933 = vadd.f32 %v1892, %v1932
    %v1934 = vpop.f32.mrf.mxu0
    %v1935 = vadd.f32 %v1894, %v1934
    %v1936 = vpop.f32.mrf.mxu0
    %v1937 = vpop.f32.mrf.mxu0
    %1938 = vdwg.mxu0
    %1939 = vmatprep.subr.bf16.mxu0 %v762
    %1940 = vmatpush1.bf16.msra.mxu0 %v761
    %1941 = vmatprep.subr.bf16.mxu0 %v760
    %1942 = vmatpush1.bf16.msra.mxu0 %v759
    %1943 = vmatprep.subr.bf16.mxu0 %v758
    %1944 = vmatpush1.bf16.msra.mxu0 %v757
    %1945 = vmatprep.subr.bf16.mxu0 %v756
    %1946 = vmatpush1.bf16.msra.mxu0 %v755
    %1947 = vmatprep.subr.bf16.mxu0 %v754
    %1948 = vmatpush1.bf16.msra.mxu0 %v753
    %1949 = vmatprep.subr.bf16.mxu0 %v752
    %1950 = vmatpush1.bf16.msra.mxu0 %v751
    %1951 = vmatprep.subr.bf16.mxu0 %v750
    %1952 = vmatpush1.bf16.msra.mxu0 %v749
    %1953 = vmatprep.subr.bf16.mxu0 %v748
    %1954 = vmatpush1.bf16.msra.mxu0 %v747
    %1955 = vmatprep.subr.bf16.mxu0 %v778
    %1956 = vmatpush2.bf16.msra.mxu0 %v777
    %1957 = vmatprep.subr.bf16.mxu0 %v776
    %1958 = vmatpush2.bf16.msra.mxu0 %v775
    %1959 = vmatprep.subr.bf16.mxu0 %v774
    %1960 = vmatpush2.bf16.msra.mxu0 %v773
    %1961 = vmatprep.subr.bf16.mxu0 %v772
    %1962 = vmatpush2.bf16.msra.mxu0 %v771
    %1963 = vmatprep.subr.bf16.mxu0 %v770
    %1964 = vmatpush2.bf16.msra.mxu0 %v769
    %1965 = vmatprep.subr.bf16.mxu0 %v768
    %1966 = vmatpush2.bf16.msra.mxu0 %v767
    %1967 = vmatprep.subr.bf16.mxu0 %v766
    %1968 = vmatpush2.bf16.msra.mxu0 %v765
    %1969 = vmatprep.subr.bf16.mxu0 %v764
    %1970 = vmatpush2.bf16.msra.mxu0 %v763
    %1971 = vmatprep.mubr.bf16.mxu0 %v1829
    %1972 = vmatmul.mubr.bf16.gmra.mxu0 %v1815
    %v1973 = vpop.f32.mrf.mxu0
    %v1974 = vadd.f32 %v1933, %v1973
    %v1975 = vpop.f32.mrf.mxu0
    %v1976 = vadd.f32 %v1935, %v1975
    %v1977 = vpop.f32.mrf.mxu0
    %v1978 = vpop.f32.mrf.mxu0
    %1979 = vdwg.mxu0
    %1980 = vmatprep.subr.bf16.mxu0 %v794
    %1981 = vmatpush1.bf16.msra.mxu0 %v793
    %1982 = vmatprep.subr.bf16.mxu0 %v792
    %1983 = vmatpush1.bf16.msra.mxu0 %v791
    %1984 = vmatprep.subr.bf16.mxu0 %v790
    %1985 = vmatpush1.bf16.msra.mxu0 %v789
    %1986 = vmatprep.subr.bf16.mxu0 %v788
    %1987 = vmatpush1.bf16.msra.mxu0 %v787
    %1988 = vmatprep.subr.bf16.mxu0 %v786
    %1989 = vmatpush1.bf16.msra.mxu0 %v785
    %1990 = vmatprep.subr.bf16.mxu0 %v784
    %1991 = vmatpush1.bf16.msra.mxu0 %v783
    %1992 = vmatprep.subr.bf16.mxu0 %v782
    %1993 = vmatpush1.bf16.msra.mxu0 %v781
    %1994 = vmatprep.subr.bf16.mxu0 %v780
    %1995 = vmatpush1.bf16.msra.mxu0 %v779
    %1996 = vmatprep.subr.bf16.mxu0 %v810
    %1997 = vmatpush2.bf16.msra.mxu0 %v809
    %1998 = vmatprep.subr.bf16.mxu0 %v808
    %1999 = vmatpush2.bf16.msra.mxu0 %v807
    %2000 = vmatprep.subr.bf16.mxu0 %v806
    %2001 = vmatpush2.bf16.msra.mxu0 %v805
    %2002 = vmatprep.subr.bf16.mxu0 %v804
    %2003 = vmatpush2.bf16.msra.mxu0 %v803
    %2004 = vmatprep.subr.bf16.mxu0 %v802
    %2005 = vmatpush2.bf16.msra.mxu0 %v801
    %2006 = vmatprep.subr.bf16.mxu0 %v800
    %2007 = vmatpush2.bf16.msra.mxu0 %v799
    %2008 = vmatprep.subr.bf16.mxu0 %v798
    %2009 = vmatpush2.bf16.msra.mxu0 %v797
    %2010 = vmatprep.subr.bf16.mxu0 %v796
    %2011 = vmatpush2.bf16.msra.mxu0 %v795
    %2012 = vmatprep.mubr.bf16.mxu0 %v1833
    %2013 = vmatmul.mubr.bf16.gmra.mxu0 %v1831
    %v2014 = vpop.f32.mrf.mxu0
    %v2015 = vadd.f32 %v1974, %v2014
    %v2016 = vpop.f32.mrf.mxu0
    %v2017 = vadd.f32 %v1976, %v2016
    %v2018 = vpop.f32.mrf.mxu0
    %v2019 = vpop.f32.mrf.mxu0
    %2020 = vdwg.mxu0
    %2021 = vmatprep.subr.bf16.mxu0 %v826
    %2022 = vmatpush1.bf16.msra.mxu0 %v825
    %2023 = vmatprep.subr.bf16.mxu0 %v824
    %2024 = vmatpush1.bf16.msra.mxu0 %v823
    %2025 = vmatprep.subr.bf16.mxu0 %v822
    %2026 = vmatpush1.bf16.msra.mxu0 %v821
    %2027 = vmatprep.subr.bf16.mxu0 %v820
    %2028 = vmatpush1.bf16.msra.mxu0 %v819
    %2029 = vmatprep.subr.bf16.mxu0 %v818
    %2030 = vmatpush1.bf16.msra.mxu0 %v817
    %2031 = vmatprep.subr.bf16.mxu0 %v816
    %2032 = vmatpush1.bf16.msra.mxu0 %v815
    %2033 = vmatprep.subr.bf16.mxu0 %v814
    %2034 = vmatpush1.bf16.msra.mxu0 %v813
    %2035 = vmatprep.subr.bf16.mxu0 %v812
    %2036 = vmatpush1.bf16.msra.mxu0 %v811
    %2037 = vmatprep.subr.bf16.mxu0 0
    %2038 = vmatpush2.bf16.msra.mxu0 0
    %2039 = vmatprep.subr.bf16.mxu0 0
    %2040 = vmatpush2.bf16.msra.mxu0 0
    %2041 = vmatprep.subr.bf16.mxu0 0
    %2042 = vmatpush2.bf16.msra.mxu0 0
    %2043 = vmatprep.subr.bf16.mxu0 0
    %2044 = vmatpush2.bf16.msra.mxu0 0
    %2045 = vmatprep.subr.bf16.mxu0 0
    %2046 = vmatpush2.bf16.msra.mxu0 0
    %2047 = vmatprep.subr.bf16.mxu0 0
    %2048 = vmatpush2.bf16.msra.mxu0 0
    %2049 = vmatprep.subr.bf16.mxu0 0
    %2050 = vmatpush2.bf16.msra.mxu0 0
    %2051 = vmatprep.subr.bf16.mxu0 0
    %2052 = vmatpush2.bf16.msra.mxu0 0
    %2053 = vmatprep.mubr.bf16.mxu0 0
    %2054 = vmatmul.mubr.bf16.gmra.mxu0 %v1847
    %v2055 = vpop.f32.mrf.mxu0
    %v2056 = vadd.f32 %v2015, %v2055
    %v2057 = vpop.f32.mrf.mxu0
    %v2058 = vadd.f32 %v2017, %v2057
    %v2059 = vpop.f32.mrf.mxu0
    %v2060 = vpop.f32.mrf.mxu0
    %2061 = vdwg.mxu0
    %v2062 = vmul.f32 %v2056, %v1181
    %v2063 = vmul.f32 %v2058, %v1185
    %v2064 = vadd.f32 %v2062, %v1195
    %v2065 = vadd.f32 %v2063, %v1199
    %v2066 = vmax.f32 %v1778, %v2064
    %v2067 = vmax.f32 %v1779, %v2065
    %v2068 = vmax.f32 %v2066, 0.0
    %v2069 = vmax.f32 %v2067, 0.0
    %v2070 = vpack.c.bf16 %v2068, %v2068
    %v2071 = vpack.c.bf16 %v2069, %v2069
    %v2072 = vld [vmem:[%s4] sm:$0xf]
    %v2073 = vld [vmem:[%s4 + $0x4] sm:$0xf]
    %v2074 = vld [vmem:[%s4 + $0x8] sm:$0xf]
    %v2075 = vld [vmem:[%s4 + $0xc] sm:$0xf]
    %v2076 = vld [vmem:[%s4 + $0x10] sm:$0xf]
    %v2077 = vld [vmem:[%s4 + $0x14] sm:$0xf]
    %v2078 = vld [vmem:[%s4 + $0x18] sm:$0xf]
    %v2079 = vld [vmem:[%s4 + $0x1c] sm:$0xf]
    %v2080 = vld [vmem:[%s4 + $0x20] sm:$0xf]
    %v2081 = vld [vmem:[%s4 + $0x24] sm:$0xf]
    %v2082 = vld [vmem:[%s4 + $0x28] sm:$0xf]
    %v2083 = vld [vmem:[%s4 + $0x2c] sm:$0xf]
    %v2084 = vld [vmem:[%s4 + $0x30] sm:$0xf]
    %v2085 = vld [vmem:[%s4 + $0x34] sm:$0xf]
    %v2086 = vld [vmem:[%s4 + $0x38] sm:$0xf]
    %v2087 = vld [vmem:[%s4 + $0x3c] sm:$0xf]
    %v2088 = vld [vmem:[%s4 + $0x40] sm:$0xf]
    %v2089 = vld [vmem:[%s4 + $0x44] sm:$0xf]
    %v2090 = vld [vmem:[%s4 + $0x48] sm:$0xf]
    %v2091 = vld [vmem:[%s4 + $0x4c] sm:$0xf]
    %v2092 = vld [vmem:[%s4 + $0x50] sm:$0xf]
    %v2093 = vld [vmem:[%s4 + $0x54] sm:$0xf]
    %v2094 = vld [vmem:[%s4 + $0x58] sm:$0xf]
    %v2095 = vld [vmem:[%s4 + $0x5c] sm:$0xf]
    %v2096 = vld [vmem:[%s4 + $0x60] sm:$0xf]
    %v2097 = vld [vmem:[%s4 + $0x64] sm:$0xf]
    %v2098 = vld [vmem:[%s4 + $0x68] sm:$0xf]
    %v2099 = vld [vmem:[%s4 + $0x6c] sm:$0xf]
    %v2100 = vld [vmem:[%s4 + $0x70] sm:$0xf]
    %v2101 = vld [vmem:[%s4 + $0x74] sm:$0xf]
    %v2102 = vld [vmem:[%s4 + $0x78] sm:$0xf]
    %v2103 = vld [vmem:[%s4 + $0x7c] sm:$0xf]
    %v2104 = vld [vmem:[%s5] sm:$0x1]
    %v2106 = vlaneseq
    %v2107 = vshrl.u32 %v2106, 7
    %v2108 = vsub.s32 0, %v2107
    %v2109 = vrot.slane %v2104, %v2108
    %v2143 = vunpack.c.l.b16 %v2072
    %v2144 = vunpack.c.l.b16 %v2073
    %v2145 = vunpack.c.l.b16 %v2074
    %v2146 = vunpack.c.l.b16 %v2075
    %v2147 = vunpack.c.l.b16 %v2076
    %v2148 = vunpack.c.l.b16 %v2077
    %v2149 = vunpack.c.l.b16 %v2078
    %v2150 = vunpack.c.l.b16 %v2079
    %v2151 = vunpack.c.l.b16 %v2080
    %v2152 = vunpack.c.l.b16 %v2081
    %v2153 = vunpack.c.l.b16 %v2082
    %v2154 = vunpack.c.l.b16 %v2083
    %v2155 = vunpack.c.l.b16 %v2084
    %v2156 = vunpack.c.l.b16 %v2085
    %v2157 = vunpack.c.l.b16 %v2086
    %v2158 = vunpack.c.l.b16 %v2087
    %v2159 = vunpack.c.l.b16 %v2088
    %v2160 = vunpack.c.l.b16 %v2089
    %v2161 = vunpack.c.l.b16 %v2090
    %v2162 = vunpack.c.l.b16 %v2091
    %v2163 = vunpack.c.l.b16 %v2092
    %v2164 = vunpack.c.l.b16 %v2093
    %v2165 = vunpack.c.l.b16 %v2094
    %v2166 = vunpack.c.l.b16 %v2095
    %v2167 = vunpack.c.l.b16 %v2096
    %v2168 = vunpack.c.l.b16 %v2097
    %v2169 = vunpack.c.l.b16 %v2098
    %v2170 = vunpack.c.l.b16 %v2099
    %v2171 = vunpack.c.l.b16 %v2100
    %v2172 = vunpack.c.l.b16 %v2101
    %v2173 = vunpack.c.l.b16 %v2102
    %v2174 = vunpack.c.l.b16 %v2103
    %v2175 = vpack.c.b16 %v2144, %v2143
    %v2176 = vpack.c.b16 %v2146, %v2145
    %v2177 = vpack.c.b16 %v2148, %v2147
    %v2178 = vpack.c.b16 %v2150, %v2149
    %v2179 = vpack.c.b16 %v2152, %v2151
    %v2180 = vpack.c.b16 %v2154, %v2153
    %v2181 = vpack.c.b16 %v2156, %v2155
    %v2182 = vpack.c.b16 %v2158, %v2157
    %v2183 = vpack.c.b16 %v2160, %v2159
    %v2184 = vpack.c.b16 %v2162, %v2161
    %v2185 = vpack.c.b16 %v2164, %v2163
    %v2186 = vpack.c.b16 %v2166, %v2165
    %v2187 = vpack.c.b16 %v2168, %v2167
    %v2188 = vpack.c.b16 %v2170, %v2169
    %v2189 = vpack.c.b16 %v2172, %v2171
    %v2190 = vpack.c.b16 %v2174, %v2173
    %2207 = vmatprep.subr.bf16.mxu0 0
    %2208 = vmatpush1.bf16.msra.mxu0 %v2182
    %2209 = vmatprep.subr.bf16.mxu0 0
    %2210 = vmatpush1.bf16.msra.mxu0 %v2181
    %2211 = vmatprep.subr.bf16.mxu0 0
    %2212 = vmatpush1.bf16.msra.mxu0 %v2180
    %2213 = vmatprep.subr.bf16.mxu0 0
    %2214 = vmatpush1.bf16.msra.mxu0 %v2179
    %2215 = vmatprep.subr.bf16.mxu0 0
    %2216 = vmatpush1.bf16.msra.mxu0 %v2178
    %2217 = vmatprep.subr.bf16.mxu0 0
    %2218 = vmatpush1.bf16.msra.mxu0 %v2177
    %2219 = vmatprep.subr.bf16.mxu0 0
    %2220 = vmatpush1.bf16.msra.mxu0 %v2176
    %2221 = vmatprep.subr.bf16.mxu0 0
    %2222 = vmatpush1.bf16.msra.mxu0 %v2175
    %2223 = vmatprep.subr.bf16.mxu0 0
    %2224 = vmatpush2.bf16.msra.mxu0 %v2190
    %2225 = vmatprep.subr.bf16.mxu0 0
    %2226 = vmatpush2.bf16.msra.mxu0 %v2189
    %2227 = vmatprep.subr.bf16.mxu0 0
    %2228 = vmatpush2.bf16.msra.mxu0 %v2188
    %2229 = vmatprep.subr.bf16.mxu0 0
    %2230 = vmatpush2.bf16.msra.mxu0 %v2187
    %2231 = vmatprep.subr.bf16.mxu0 0
    %2232 = vmatpush2.bf16.msra.mxu0 %v2186
    %2233 = vmatprep.subr.bf16.mxu0 0
    %2234 = vmatpush2.bf16.msra.mxu0 %v2185
    %2235 = vmatprep.subr.bf16.mxu0 0
    %2236 = vmatpush2.bf16.msra.mxu0 %v2184
    %2237 = vmatprep.subr.bf16.mxu0 0
    %2238 = vmatpush2.bf16.msra.mxu0 %v2183
    %2239 = vmatprep.mubr.bf16.mxu0 %v2071
    %2240 = vmatmul.mubr.bf16.gmra.mxu0 %v2070
    %v2241 = vpop.f32.mrf.mxu0
    %v2242 = vadd.f32 %v2109, %v2241
    %v2243 = vpop.f32.mrf.mxu0
    %v2244 = vpop.f32.mrf.mxu0
    %v2245 = vpop.f32.mrf.mxu0
    %2246 = vdwg.mxu0
    %v2247 = vmax.f32 %v2242, 0.0
    %v2248 = vpack.c.bf16 %v2247, %v2247
    %v2249 = vld [vmem:[%s6] sm:$0xf]
    %v2250 = vld [vmem:[%s6 + $0x4] sm:$0xf]
    %v2251 = vld [vmem:[%s6 + $0x8] sm:$0xf]
    %v2252 = vld [vmem:[%s6 + $0xc] sm:$0xf]
    %v2253 = vld [vmem:[%s6 + $0x10] sm:$0xf]
    %v2254 = vld [vmem:[%s6 + $0x14] sm:$0xf]
    %v2255 = vld [vmem:[%s6 + $0x18] sm:$0xf]
    %v2256 = vld [vmem:[%s6 + $0x1c] sm:$0xf]
    %v2257 = vld [vmem:[%s6 + $0x20] sm:$0xf]
    %v2258 = vld [vmem:[%s6 + $0x24] sm:$0xf]
    %v2259 = vld [vmem:[%s6 + $0x28] sm:$0xf]
    %v2260 = vld [vmem:[%s6 + $0x2c] sm:$0xf]
    %v2261 = vld [vmem:[%s6 + $0x30] sm:$0xf]
    %v2262 = vld [vmem:[%s6 + $0x34] sm:$0xf]
    %v2263 = vld [vmem:[%s6 + $0x38] sm:$0xf]
    %v2264 = vld [vmem:[%s6 + $0x3c] sm:$0xf]
    %v2265 = vld [vmem:[%s7] sm:$0x1]
    %v2267 = vlaneseq
    %v2268 = vshrl.u32 %v2267, 7
    %v2269 = vsub.s32 0, %v2268
    %v2270 = vrot.slane %v2265, %v2269
    %v2288 = vunpack.c.l.b16 %v2249
    %v2289 = vunpack.c.l.b16 %v2250
    %v2290 = vunpack.c.l.b16 %v2251
    %v2291 = vunpack.c.l.b16 %v2252
    %v2292 = vunpack.c.l.b16 %v2253
    %v2293 = vunpack.c.l.b16 %v2254
    %v2294 = vunpack.c.l.b16 %v2255
    %v2295 = vunpack.c.l.b16 %v2256
    %v2296 = vunpack.c.l.b16 %v2257
    %v2297 = vunpack.c.l.b16 %v2258
    %v2298 = vunpack.c.l.b16 %v2259
    %v2299 = vunpack.c.l.b16 %v2260
    %v2300 = vunpack.c.l.b16 %v2261
    %v2301 = vunpack.c.l.b16 %v2262
    %v2302 = vunpack.c.l.b16 %v2263
    %v2303 = vunpack.c.l.b16 %v2264
    %v2304 = vpack.c.b16 %v2289, %v2288
    %v2305 = vpack.c.b16 %v2291, %v2290
    %v2306 = vpack.c.b16 %v2293, %v2292
    %v2307 = vpack.c.b16 %v2295, %v2294
    %v2308 = vpack.c.b16 %v2297, %v2296
    %v2309 = vpack.c.b16 %v2299, %v2298
    %v2310 = vpack.c.b16 %v2301, %v2300
    %v2311 = vpack.c.b16 %v2303, %v2302
    %2320 = vmatprep.subr.bf16.mxu0 0
    %2321 = vmatpush1.bf16.msra.mxu0 %v2311
    %2322 = vmatprep.subr.bf16.mxu0 0
    %2323 = vmatpush1.bf16.msra.mxu0 %v2310
    %2324 = vmatprep.subr.bf16.mxu0 0
    %2325 = vmatpush1.bf16.msra.mxu0 %v2309
    %2326 = vmatprep.subr.bf16.mxu0 0
    %2327 = vmatpush1.bf16.msra.mxu0 %v2308
    %2328 = vmatprep.subr.bf16.mxu0 0
    %2329 = vmatpush1.bf16.msra.mxu0 %v2307
    %2330 = vmatprep.subr.bf16.mxu0 0
    %2331 = vmatpush1.bf16.msra.mxu0 %v2306
    %2332 = vmatprep.subr.bf16.mxu0 0
    %2333 = vmatpush1.bf16.msra.mxu0 %v2305
    %2334 = vmatprep.subr.bf16.mxu0 0
    %2335 = vmatpush1.bf16.msra.mxu0 %v2304
    %2336 = vmatprep.subr.bf16.mxu0 0
    %2337 = vmatpush2.bf16.msra.mxu0 0
    %2338 = vmatprep.subr.bf16.mxu0 0
    %2339 = vmatpush2.bf16.msra.mxu0 0
    %2340 = vmatprep.subr.bf16.mxu0 0
    %2341 = vmatpush2.bf16.msra.mxu0 0
    %2342 = vmatprep.subr.bf16.mxu0 0
    %2343 = vmatpush2.bf16.msra.mxu0 0
    %2344 = vmatprep.subr.bf16.mxu0 0
    %2345 = vmatpush2.bf16.msra.mxu0 0
    %2346 = vmatprep.subr.bf16.mxu0 0
    %2347 = vmatpush2.bf16.msra.mxu0 0
    %2348 = vmatprep.subr.bf16.mxu0 0
    %2349 = vmatpush2.bf16.msra.mxu0 0
    %2350 = vmatprep.subr.bf16.mxu0 0
    %2351 = vmatpush2.bf16.msra.mxu0 0
    %2352 = vmatprep.mubr.bf16.mxu0 0
    %2353 = vmatmul.mubr.bf16.gmra.mxu0 %v2248
    %v2354 = vpop.f32.mrf.mxu0
    %v2355 = vadd.f32 %v2270, %v2354
    %v2356 = vpop.f32.mrf.mxu0
    %v2357 = vpop.f32.mrf.mxu0
    %v2358 = vpop.f32.mrf.mxu0
    %2359 = vdwg.mxu0
    %vm2360 = vcmask 9216
    %2361 = vst.msk [vmem:[#allocation2] sm:$0x3] %vm2360, %v2355
    // Predicated region
    $region34: #{simple_cnn_forward.7} parent=1 // pred_check
      _
    $region35: #{simple_cnn_forward.7} parent=1 // pred_check_branch
      %2363 = sbr.rel (0) target = $region37
    $region36: #{simple_cnn_forward.7} parent=1 // pred_region
      %s2365 = ssub.s32 32, 32
      %2366 = vsyncadd [#allocation3], %s2365
      %s2368 = sshll.u32 [#allocation2], 4
      %s2369 = int_to_ptr.vmem [resolvable:$true] %s2368
      %2371 = dma.vmem_to_hbm [thread:$0]  %s2369, 32, %s8, [#allocation3]
    $region37: #{simple_cnn_forward.7} parent=1 // pred_fallthru
      _
    // Predicated region
    $region38: #{simple_cnn_forward.7} parent=1 // pred_check
      _
    $region39: #{simple_cnn_forward.7} parent=1 // pred_check_branch
      %2373 = sbr.rel (0) target = $region41
    $region40: #{simple_cnn_forward.7} parent=1 // pred_region
      %2374 = dma.done [#allocation3], 32
    $region41: #{simple_cnn_forward.7} parent=1 // pred_fallthru
      _
    %2375 = vsyncpa [#allocation3], 1

</llo_original>
